<compile_context>
chip_gen: v7x
topology: tpu7x:2x2x1
jax: 0.10.0
libtpu: 0.0.40
codegen_flags: <defaults>
</compile_context>

<pallas_src>
import jax
import jax.numpy as jnp
from jax.experimental import pallas as pl
from jax.experimental.pallas import tpu as pltpu


def _gelu_kernel(x_ref, o_ref):
    # Compute in f32 even if the input is bf16 (stays within 1e-5 of the reference).
    x = x_ref[...].astype(jnp.float32)
    inv_sqrt2 = jnp.float32(0.7071067811865476)
    u = x * inv_sqrt2
    au = jnp.abs(u)
    # Abramowitz & Stegun 7.1.26:  erf(|u|) = 1 - poly(t) * exp(-u^2),
    # t = 1 / (1 + p*|u|), max abs erf error ~1.5e-7  ->  GELU abs error
    # <= 0.5*|x|*1.5e-7, comfortably inside 1e-5 for any sane activation range.
    p = jnp.float32(0.3275911)
    a1 = jnp.float32(0.254829592)
    a2 = jnp.float32(-0.284496736)
    a3 = jnp.float32(1.421413741)
    a4 = jnp.float32(-1.453152027)
    a5 = jnp.float32(1.061405429)
    # Full-precision reciprocal (EUP vrcp + refinement). approx=True is NOT accurate
    # enough here: d(erf)/dt ~ O(1), so ~1e-3 relative error in t breaks 1e-5.
    t = pl.reciprocal(1.0 + p * au, approx=False)
    poly = ((((a5 * t + a4) * t + a3) * t + a2) * t + a1) * t
    q = poly * jnp.exp(-au * au)            # EUP exp;  q = 1 - erf(|u|)
    # (1 + erf(u)) / 2  =  1 - q/2  for u >= 0,   q/2  for u < 0.
    half_one_plus_erf = jnp.where(u >= 0.0, 1.0 - 0.5 * q, 0.5 * q)
    o_ref[...] = (x * half_one_plus_erf).astype(o_ref.dtype)


def _target_grid_steps():
    """Chip-aware grid-step target.

    v5e: cleanly HBM-bound -> fewest steps (extra steps only add ~0.35us each).
    v7x: 2 TensorCores -> 8 steps total so each TC gets >=4 and head/tail DMA hides.
    v6e / other / unknown: 4 steps (>=2 per core, modest per-step overhead).
    """
    try:
        kind = jax.devices()[0].device_kind.lower()
    except Exception:
        return 4
    if "v5" in kind:
        return 2
    if "v7" in kind:
        return 8
    return 4


def _vmem_budget():
    # Stay well inside the scoped-VMEM default (16 MiB v5e / 32 MiB v6e, v7x).
    try:
        cap = pltpu.get_tpu_info().vmem_capacity_bytes
    except Exception:
        cap = 128 << 20
    return min(cap // 8, 16 << 20)


def _plan_tiling(R0, C0, itemsize):
    """Choose (R, C, row_tile, grid_steps) for the flattened (R0, C0) slab.

    Narrowing the lane dim by f and multiplying rows by f is a pure relabeling of
    the same contiguous buffer (elementwise op), so the wrapper reshape is free.
    Lane dim stays a multiple of 128 (unmasked stores); row tiles a multiple of the
    sublane pack; in+out double-buffered working set stays inside the VMEM budget.
    """
    sublane = 8 * max(1, 4 // itemsize)     # 8 (f32) / 16 (bf16) / 32 (int8)
    n_target = _target_grid_steps()
    budget = _vmem_budget()
    for n in (n_target, max(n_target // 2, 2), 2, 1):
        for f in (1, 2, 4, 8):
            if C0 % (128 * f):
                continue
            C, R = C0 // f, R0 * f
            if R % n:
                continue
            tile_r = R // n
            if tile_r % sublane and tile_r != R:
                continue
            if 4 * tile_r * C * itemsize > budget:   # in + out, double-buffered
                continue
            return R, C, tile_r, n
    # Single full block: block_shape == array shape is always a legal tiling.
    return R0, C0, R0, 1


def gelu_pallas(x):
    """Exact GELU (approximate='none') over an NHWC tensor via a Pallas TPU kernel."""
    orig_shape = x.shape
    C0 = orig_shape[-1]
    R0 = x.size // C0
    itemsize = x.dtype.itemsize

    R, C, tile_r, n_steps = _plan_tiling(R0, C0, itemsize)
    x2d = x.reshape(R, C)

    out2d = pl.pallas_call(
        _gelu_kernel,
        out_shape=jax.ShapeDtypeStruct((R, C), x2d.dtype),
        grid_spec=pl.GridSpec(
            grid=(n_steps,),
            in_specs=[pl.BlockSpec((tile_r, C), lambda i: (i, 0))],
            out_specs=pl.BlockSpec((tile_r, C), lambda i: (i, 0)),
        ),
        # Elementwise read-then-write per block is alias-safe: reuse the input
        # HBM buffer for the output (saves an allocation / copy when donated).
        input_output_aliases={0: 0},
        # Advisory cost so XLA's scheduler can overlap neighboring HLO with this
        # ~2-8us custom call instead of treating it as opaque.
        cost_estimate=pl.CostEstimate(
            flops=20 * R * C,
            transcendentals=2 * R * C,
            bytes_accessed=2 * R * C * itemsize,
        ),
        compiler_params=pltpu.CompilerParams(
            dimension_semantics=("parallel",),
        ),
    )(x2d)
    return out2d.reshape(orig_shape)


if __name__ == "__main__":
    key = jax.random.PRNGKey(0)
    # Same shape as the PyTorch module's input: [1, 28, 28, 1024]
    x = jax.random.normal(key, (1, 28, 28, 1024), dtype=jnp.float32)

    y = gelu_pallas(x)
    jax.block_until_ready(y)

    # Sanity check against pure-JAX exact GELU (approximate='none')
    y_ref = jax.nn.gelu(x, approximate=False)
    max_err = float(jnp.max(jnp.abs(y - y_ref)))
    assert jnp.allclose(y, y_ref, atol=1e-5, rtol=1e-5), max_err

    print("KERNEL_OK")
</pallas_src>

<mosaic_0001>
module attributes {stable_mosaic.version = 11 : i64} {
  func.func @_gelu_kernel(%arg0: i32, %arg1: memref<392x512xf32, #tpu.memory_space<vmem>>, %arg2: memref<392x512xf32, #tpu.memory_space<vmem>>) attributes {dimension_semantics = [#tpu.dimension_semantics<parallel>], iteration_bounds = array<i64: 4>, scalar_prefetch = 0 : i64, scratch_operands = 0 : i64, tpu.core_type = #tpu.core_type<tc>, window_params = [{transform_indices = @transform_0, window_bounds = array<i64: 392, 512>}, {transform_indices = @transform_1, window_bounds = array<i64: 392, 512>}]} {
    %c0 = arith.constant 0 : index
    %c0_0 = arith.constant 0 : index
    %0 = vector.load %arg1[%c0, %c0_0] : memref<392x512xf32, #tpu.memory_space<vmem>>, vector<392x512xf32>
    %cst = arith.constant 0.707106769 : f32
    %1 = vector.broadcast %cst : f32 to vector<392x512xf32>
    %2 = arith.mulf %0, %1 : vector<392x512xf32>
    %3 = math.absf %2 : vector<392x512xf32>
    %cst_1 = arith.constant 0.327591091 : f32
    %4 = vector.broadcast %cst_1 : f32 to vector<392x512xf32>
    %5 = arith.mulf %4, %3 : vector<392x512xf32>
    %cst_2 = arith.constant 1.000000e+00 : f32
    %6 = vector.broadcast %cst_2 : f32 to vector<392x512xf32>
    %7 = arith.addf %6, %5 : vector<392x512xf32>
    %8 = tpu.reciprocal %7 : vector<392x512xf32> -> vector<392x512xf32>
    %cst_3 = arith.constant 1.06140542 : f32
    %9 = vector.broadcast %cst_3 : f32 to vector<392x512xf32>
    %10 = arith.mulf %9, %8 : vector<392x512xf32>
    %cst_4 = arith.constant -1.45315206 : f32
    %11 = vector.broadcast %cst_4 : f32 to vector<392x512xf32>
    %12 = arith.addf %10, %11 : vector<392x512xf32>
    %13 = arith.mulf %12, %8 : vector<392x512xf32>
    %cst_5 = arith.constant 1.42141378 : f32
    %14 = vector.broadcast %cst_5 : f32 to vector<392x512xf32>
    %15 = arith.addf %13, %14 : vector<392x512xf32>
    %16 = arith.mulf %15, %8 : vector<392x512xf32>
    %cst_6 = arith.constant -0.284496725 : f32
    %17 = vector.broadcast %cst_6 : f32 to vector<392x512xf32>
    %18 = arith.addf %16, %17 : vector<392x512xf32>
    %19 = arith.mulf %18, %8 : vector<392x512xf32>
    %cst_7 = arith.constant 0.254829586 : f32
    %20 = vector.broadcast %cst_7 : f32 to vector<392x512xf32>
    %21 = arith.addf %19, %20 : vector<392x512xf32>
    %22 = arith.mulf %21, %8 : vector<392x512xf32>
    %cst_8 = arith.constant 0.000000e+00 : f32
    %23 = vector.broadcast %cst_8 : f32 to vector<392x512xf32>
    %24 = arith.subf %23, %3 : vector<392x512xf32>
    %25 = arith.mulf %24, %3 : vector<392x512xf32>
    %26 = math.exp %25 : vector<392x512xf32>
    %27 = arith.mulf %22, %26 : vector<392x512xf32>
    %cst_9 = arith.constant 0.000000e+00 : f32
    %28 = vector.broadcast %cst_9 : f32 to vector<392x512xf32>
    %29 = arith.cmpf oge, %2, %28 : vector<392x512xf32>
    %cst_10 = arith.constant 5.000000e-01 : f32
    %30 = vector.broadcast %cst_10 : f32 to vector<392x512xf32>
    %31 = arith.mulf %30, %27 : vector<392x512xf32>
    %cst_11 = arith.constant 1.000000e+00 : f32
    %32 = vector.broadcast %cst_11 : f32 to vector<392x512xf32>
    %33 = arith.subf %32, %31 : vector<392x512xf32>
    %cst_12 = arith.constant 5.000000e-01 : f32
    %34 = vector.broadcast %cst_12 : f32 to vector<392x512xf32>
    %35 = arith.mulf %34, %27 : vector<392x512xf32>
    %36 = arith.select %29, %33, %35 : vector<392x512xi1>, vector<392x512xf32>
    %37 = arith.mulf %0, %36 : vector<392x512xf32>
    %c0_13 = arith.constant 0 : index
    %c0_14 = arith.constant 0 : index
    %38 = vector.load %arg2[%c0_13, %c0_14] : memref<392x512xf32, #tpu.memory_space<vmem>>, vector<392x512xf32>
    tpu.vector_store %arg2[%c0_13, %c0_14], %37 {strides = array<i32>} : memref<392x512xf32, #tpu.memory_space<vmem>>, vector<392x512xf32>,
    return
  }
  func.func @transform_0(%arg0: i32) -> (i32, i32) {
    %c0_i32 = arith.constant 0 : i32
    %c0_i32_0 = arith.constant 0 : i32
    return %arg0, %c0_i32 : i32, i32
  }
  func.func @transform_1(%arg0: i32) -> (i32, i32) {
    %c0_i32 = arith.constant 0 : i32
    %c0_i32_0 = arith.constant 0 : i32
    return %arg0, %c0_i32 : i32, i32
  }
}

</mosaic_0001>

<llo_original>
// kernel: tpu_custom_call.1
$region0: #{tpu_custom_call.1}
  #allocation0 [shape = 'u32[]', space=smem, size = 0x4, offset = 0x4, fixed_abs, tag = 'smem constant byte address 0x4 - core index']
  #allocation1 [shape = 'u32[144,128]{1,0:T(1,128)}', space=vmem, size = 0x12000, scoped, tag = 'internal scratch']
  %s0 = inlined_call_operand.hbm [shape: f32[1568,512], index: 0, kind: input, shape index: {}, may-alias: {0,1}]
  %s1 = inlined_call_operand.hbm [shape: f32[1568,512], index: 1, kind: output, shape index: {}, may-alias: {0,1}]
  %s2 = sld [smem:[#allocation0]]
  $region41: #{tpu_custom_call.1} parent=0
    _
  %s4 = ssub.s32 1, %s2
  %s5 = scalar_select 0, %s4, %s2
  $region1: #{tpu_custom_call.1} parent=0
    #allocation2 [shape = 'u8[1605632]{0}', space=vmem, size = 0x188000, scoped, tag = 'input window, operand 0']
    #allocation3 [shape = 's32[2]{0}', space=sflag, size = 0x8, scoped, tag = 'scoped memory for tpu_custom_call.1']
    #allocation4 [shape = 's32[2]{0}', space=sflag, size = 0x8, scoped, tag = 'scoped memory for tpu_custom_call.1']
    #allocation5 [shape = 'u8[1605632]{0}', space=vmem, size = 0x188000, scoped, tag = 'output window, operand 0']
    %6 = vsyncpa [#allocation3], 0
    %s7 = scalar_lea.sflag [#allocation3], 1
    %8 = vsyncpa %s7, 0
    %9 = vsyncpa [#allocation4], 0
    %s10 = scalar_lea.sflag [#allocation4], 1
    %11 = vsyncpa %s10, 0
    loop: start=0, step=1, limit=6
    $region2: #{tpu_custom_call.1} parent=1 // loop_pre_header
      _
    $region3: #{tpu_custom_call.1} parent=1 // loop_header
      %s13 = sphi 0, %s17
      %p14 = scmp.ge.s32.totalorder %s13, 6
      %s23 = sphi 0, %s25
      %s26 = sphi 0, %s23
      %s27 = sphi 0, %s26
      %s43 = sphi 0, %s27
      %s49 = sphi 0, %s51
      %s52 = sphi 0, %s49
      %s53 = sphi 0, %s52
      %s69 = sphi 0, %s53
    $region4: #{tpu_custom_call.1} parent=1 // loop_header_branch
      %16 = sbr.rel (%p14) target = $region8
    $region5: #{tpu_custom_call.1} parent=1 // loop_body
      %s18 = ssub.s32 %s13, 1
      %s19 = ssub.s32 %s13, 2
      %s20 = sadd.s32 %s13, 1
      %s21 = ssub.s32 %s13, %s20
      %p22 = scmp.eq.s32.totalorder %s21, 0
      %s24 = sadd.s32 %s23, 1
      %s25 = scalar_select %p22, %s23, %s24
      %p28 = pneg %p22
      %p29 = scmp.eq.s32.totalorder %s13, 3
      %p30 = por %p28, %p29
      %p31 = scmp.ne.s32.totalorder %s23, %s26
      %p32 = scmp.eq.s32.totalorder %s13, 0
      %p33 = por %p31, %p32
      %p34 = scmp.ne.s32.totalorder %s23, %s26
      %p35 = scmp.eq.s32.totalorder %s18, 3
      %p36 = por %p34, %p35
      %p37 = scmp.ne.s32.totalorder %s26, %s27
      %p38 = scmp.eq.s32.totalorder %s18, 0
      %p39 = por %p37, %p38
      %p40 = scmp.ne.s32.totalorder %s26, %s27
      %p41 = scmp.eq.s32.totalorder %s19, 3
      %p42 = por %p40, %p41
      %p44 = scmp.ne.s32.totalorder %s27, %s43
      %p45 = scmp.eq.s32.totalorder %s19, 0
      %p46 = por %p44, %p45
      %s47 = ssub.s32 %s13, %s20
      %p48 = scmp.eq.s32.totalorder %s47, 0
      %s50 = sadd.s32 %s49, 1
      %s51 = scalar_select %p48, %s49, %s50
      %p54 = pneg %p48
      %p55 = scmp.eq.s32.totalorder %s13, 3
      %p56 = por %p54, %p55
      %p57 = scmp.ne.s32.totalorder %s49, %s52
      %p58 = scmp.eq.s32.totalorder %s13, 0
      %p59 = por %p57, %p58
      %p60 = scmp.ne.s32.totalorder %s49, %s52
      %p61 = scmp.eq.s32.totalorder %s18, 3
      %p62 = por %p60, %p61
      %p63 = scmp.ne.s32.totalorder %s52, %s53
      %p64 = scmp.eq.s32.totalorder %s18, 0
      %p65 = por %p63, %p64
      %p66 = scmp.ne.s32.totalorder %s52, %s53
      %p67 = scmp.eq.s32.totalorder %s19, 3
      %p68 = por %p66, %p67
      %p70 = scmp.ne.s32.totalorder %s53, %s69
      %p71 = scmp.eq.s32.totalorder %s19, 0
      %p72 = por %p70, %p71
      %p73 = scmp.le.s32.totalorder 1, %s13
      %p74 = scmp.lt.s32.totalorder %s13, 5
      %p75 = pnand %p73, %p74
      %p76 = pneg %p75
      // Predicated region
      $region9: #{tpu_custom_call.1} parent=5 // pred_check
        _
      $region10: #{tpu_custom_call.1} parent=5 // pred_check_branch
        %78 = sbr.rel (%p75) target = $region12
      $region11: #{tpu_custom_call.1} parent=5 // pred_region
        %s79 = ssub.s32 %s13, 1
      $region12: #{tpu_custom_call.1} parent=5 // pred_fallthru
        _
      %p80 = scmp.lt.s32.totalorder %s13, 4
      // Predicated region
      $region13: #{tpu_custom_call.1} parent=5 // pred_check
        %p81 = pneg %p80
      $region14: #{tpu_custom_call.1} parent=5 // pred_check_branch
        %83 = sbr.rel (%p81) target = $region16
      $region15: #{tpu_custom_call.1} parent=5 // pred_region
        // Predicated region
        $region17: #{tpu_custom_call.1} parent=15 // pred_check
          %p84 = pneg %p33
        $region18: #{tpu_custom_call.1} parent=15 // pred_check_branch
          %86 = sbr.rel (%p84) target = $region20
        $region19: #{tpu_custom_call.1} parent=15 // pred_region
          %s87 = sand.u32 %s23, 1
          %s88 = scalar_lea.sflag [#allocation3], %s87
          %s89 = sand.u32 %s23, 1
          %s90 = smul.addr %s89, 1568
          %s91 = scalar_lea.vmem [#allocation2], %s90
          %s92 = smul.u32 49, %s13
          %s94 = ssub.s32 25088, 25088
          %95 = vsyncadd %s88, %s94
          %s96 = smul.addr %s92, 4
          %s97 = smul.addr %s96, 128
          %s98 = scalar_lea.hbm %s0, %s97
          %s99 = sshll.u32 %s91, 4
          %s100 = int_to_ptr.vmem [resolvable:$true] %s99
          %105 = dma.hbm_to_vmem [thread:$0]  %s98, 25088, %s100, %s88, 512, 512, 32
        $region20: #{tpu_custom_call.1} parent=15 // pred_fallthru
          _
      $region16: #{tpu_custom_call.1} parent=5 // pred_fallthru
        _
      %p106 = scmp.le.s32.totalorder 1, %s13
      %p107 = scmp.lt.s32.totalorder %s13, 5
      %p108 = pnand %p106, %p107
      %p109 = pneg %p108
      // Predicated region
      $region21: #{tpu_custom_call.1} parent=5 // pred_check
        _
      $region22: #{tpu_custom_call.1} parent=5 // pred_check_branch
        %111 = sbr.rel (%p108) target = $region24
      $region23: #{tpu_custom_call.1} parent=5 // pred_region
        %s112 = ssub.s32 %s13, 1
        %s113 = sand.u32 %s26, 1
        %s114 = scalar_lea.sflag [#allocation3], %s113
        %s115 = sand.u32 %s26, 1
        %s116 = smul.addr %s115, 1568
        %s117 = scalar_lea.vmem [#allocation2], %s116
        // Predicated region
        $region25: #{tpu_custom_call.1} parent=23 // pred_check
          %p118 = pneg %p39
        $region26: #{tpu_custom_call.1} parent=23 // pred_check_branch
          %120 = sbr.rel (%p118) target = $region28
        $region27: #{tpu_custom_call.1} parent=23 // pred_region
          %121 = dma.done %s114, 25088
        $region28: #{tpu_custom_call.1} parent=23 // pred_fallthru
          _
        %s122 = sand.u32 %s26, 1
        %s123 = scalar_lea.sflag [#allocation3], %s122
        %s124 = sand.u32 %s26, 1
        %s125 = smul.addr %s124, 1568
        %s126 = scalar_lea.vmem [#allocation2], %s125
        %p127 = pneg %p39
        %p128 = pneg %p36
        %p129 = pneg %p65
        %p130 = pneg %p62
        %s131 = sand.u32 %s52, 1
        %s132 = scalar_lea.sflag [#allocation4], %s131
        %s133 = sand.u32 %s52, 1
        %s134 = smul.addr %s133, 1568
        %s135 = scalar_lea.vmem [#allocation5], %s134
        %s136 = smul.u32 49, %s18
        %s137 = smul.u32 49, %s18
        %v138 = vld [vmem:[%s117] sm:$0xff]
        %v139 = vld [vmem:[%s117 + $0x8] sm:$0xff]
        %v140 = vld [vmem:[%s117 + $0x10] sm:$0xff]
        %v141 = vld [vmem:[%s117 + $0x18] sm:$0xff]
        %v142 = vld [vmem:[%s117 + $0x20] sm:$0xff]
        %v143 = vld [vmem:[%s117 + $0x28] sm:$0xff]
        %v144 = vld [vmem:[%s117 + $0x30] sm:$0xff]
        %v145 = vld [vmem:[%s117 + $0x38] sm:$0xff]
        %v146 = vld [vmem:[%s117 + $0x40] sm:$0xff]
        %v147 = vld [vmem:[%s117 + $0x48] sm:$0xff]
        %v148 = vld [vmem:[%s117 + $0x50] sm:$0xff]
        %v149 = vld [vmem:[%s117 + $0x58] sm:$0xff]
        %v150 = vld [vmem:[%s117 + $0x60] sm:$0xff]
        %v151 = vld [vmem:[%s117 + $0x68] sm:$0xff]
        %v152 = vld [vmem:[%s117 + $0x70] sm:$0xff]
        %v153 = vld [vmem:[%s117 + $0x78] sm:$0xff]
        %v154 = vld [vmem:[%s117 + $0x80] sm:$0xff]
        %v155 = vld [vmem:[%s117 + $0x88] sm:$0xff]
        %v156 = vld [vmem:[%s117 + $0x90] sm:$0xff]
        %v157 = vld [vmem:[%s117 + $0x98] sm:$0xff]
        %v158 = vld [vmem:[%s117 + $0xa0] sm:$0xff]
        %v159 = vld [vmem:[%s117 + $0xa8] sm:$0xff]
        %v160 = vld [vmem:[%s117 + $0xb0] sm:$0xff]
        %v161 = vld [vmem:[%s117 + $0xb8] sm:$0xff]
        %v162 = vld [vmem:[%s117 + $0xc0] sm:$0xff]
        %v163 = vld [vmem:[%s117 + $0xc8] sm:$0xff]
        %v164 = vld [vmem:[%s117 + $0xd0] sm:$0xff]
        %v165 = vld [vmem:[%s117 + $0xd8] sm:$0xff]
        %v166 = vld [vmem:[%s117 + $0xe0] sm:$0xff]
        %v167 = vld [vmem:[%s117 + $0xe8] sm:$0xff]
        %v168 = vld [vmem:[%s117 + $0xf0] sm:$0xff]
        %v169 = vld [vmem:[%s117 + $0xf8] sm:$0xff]
        %v170 = vld [vmem:[%s117 + $0x100] sm:$0xff]
        %v171 = vld [vmem:[%s117 + $0x108] sm:$0xff]
        %v172 = vld [vmem:[%s117 + $0x110] sm:$0xff]
        %v173 = vld [vmem:[%s117 + $0x118] sm:$0xff]
        %v174 = vld [vmem:[%s117 + $0x120] sm:$0xff]
        %v175 = vld [vmem:[%s117 + $0x128] sm:$0xff]
        %v176 = vld [vmem:[%s117 + $0x130] sm:$0xff]
        %v177 = vld [vmem:[%s117 + $0x138] sm:$0xff]
        %v178 = vld [vmem:[%s117 + $0x140] sm:$0xff]
        %v179 = vld [vmem:[%s117 + $0x148] sm:$0xff]
        %v180 = vld [vmem:[%s117 + $0x150] sm:$0xff]
        %v181 = vld [vmem:[%s117 + $0x158] sm:$0xff]
        %v182 = vld [vmem:[%s117 + $0x160] sm:$0xff]
        %v183 = vld [vmem:[%s117 + $0x168] sm:$0xff]
        %v184 = vld [vmem:[%s117 + $0x170] sm:$0xff]
        %v185 = vld [vmem:[%s117 + $0x178] sm:$0xff]
        %v186 = vld [vmem:[%s117 + $0x180] sm:$0xff]
        %v187 = vld [vmem:[%s117 + $0x188] sm:$0xff]
        %v188 = vld [vmem:[%s117 + $0x190] sm:$0xff]
        %v189 = vld [vmem:[%s117 + $0x198] sm:$0xff]
        %v190 = vld [vmem:[%s117 + $0x1a0] sm:$0xff]
        %v191 = vld [vmem:[%s117 + $0x1a8] sm:$0xff]
        %v192 = vld [vmem:[%s117 + $0x1b0] sm:$0xff]
        %v193 = vld [vmem:[%s117 + $0x1b8] sm:$0xff]
        %v194 = vld [vmem:[%s117 + $0x1c0] sm:$0xff]
        %v195 = vld [vmem:[%s117 + $0x1c8] sm:$0xff]
        %v196 = vld [vmem:[%s117 + $0x1d0] sm:$0xff]
        %v197 = vld [vmem:[%s117 + $0x1d8] sm:$0xff]
        %v198 = vld [vmem:[%s117 + $0x1e0] sm:$0xff]
        %v199 = vld [vmem:[%s117 + $0x1e8] sm:$0xff]
        %v200 = vld [vmem:[%s117 + $0x1f0] sm:$0xff]
        %v201 = vld [vmem:[%s117 + $0x1f8] sm:$0xff]
        %v202 = vld [vmem:[%s117 + $0x200] sm:$0xff]
        %v203 = vld [vmem:[%s117 + $0x208] sm:$0xff]
        %v204 = vld [vmem:[%s117 + $0x210] sm:$0xff]
        %v205 = vld [vmem:[%s117 + $0x218] sm:$0xff]
        %v206 = vld [vmem:[%s117 + $0x220] sm:$0xff]
        %v207 = vld [vmem:[%s117 + $0x228] sm:$0xff]
        %v208 = vld [vmem:[%s117 + $0x230] sm:$0xff]
        %v209 = vld [vmem:[%s117 + $0x238] sm:$0xff]
        %v210 = vld [vmem:[%s117 + $0x240] sm:$0xff]
        %v211 = vld [vmem:[%s117 + $0x248] sm:$0xff]
        %v212 = vld [vmem:[%s117 + $0x250] sm:$0xff]
        %v213 = vld [vmem:[%s117 + $0x258] sm:$0xff]
        %v214 = vld [vmem:[%s117 + $0x260] sm:$0xff]
        %v215 = vld [vmem:[%s117 + $0x268] sm:$0xff]
        %v216 = vld [vmem:[%s117 + $0x270] sm:$0xff]
        %v217 = vld [vmem:[%s117 + $0x278] sm:$0xff]
        %v218 = vld [vmem:[%s117 + $0x280] sm:$0xff]
        %v219 = vld [vmem:[%s117 + $0x288] sm:$0xff]
        %v220 = vld [vmem:[%s117 + $0x290] sm:$0xff]
        %v221 = vld [vmem:[%s117 + $0x298] sm:$0xff]
        %v222 = vld [vmem:[%s117 + $0x2a0] sm:$0xff]
        %v223 = vld [vmem:[%s117 + $0x2a8] sm:$0xff]
        %v224 = vld [vmem:[%s117 + $0x2b0] sm:$0xff]
        %v225 = vld [vmem:[%s117 + $0x2b8] sm:$0xff]
        %v226 = vld [vmem:[%s117 + $0x2c0] sm:$0xff]
        %v227 = vld [vmem:[%s117 + $0x2c8] sm:$0xff]
        %v228 = vld [vmem:[%s117 + $0x2d0] sm:$0xff]
        %v229 = vld [vmem:[%s117 + $0x2d8] sm:$0xff]
        %v230 = vld [vmem:[%s117 + $0x2e0] sm:$0xff]
        %v231 = vld [vmem:[%s117 + $0x2e8] sm:$0xff]
        %v232 = vld [vmem:[%s117 + $0x2f0] sm:$0xff]
        %v233 = vld [vmem:[%s117 + $0x2f8] sm:$0xff]
        %v234 = vld [vmem:[%s117 + $0x300] sm:$0xff]
        %v235 = vld [vmem:[%s117 + $0x308] sm:$0xff]
        %v236 = vld [vmem:[%s117 + $0x310] sm:$0xff]
        %v237 = vld [vmem:[%s117 + $0x318] sm:$0xff]
        %v238 = vld [vmem:[%s117 + $0x320] sm:$0xff]
        %v239 = vld [vmem:[%s117 + $0x328] sm:$0xff]
        %v240 = vld [vmem:[%s117 + $0x330] sm:$0xff]
        %v241 = vld [vmem:[%s117 + $0x338] sm:$0xff]
        %v242 = vld [vmem:[%s117 + $0x340] sm:$0xff]
        %v243 = vld [vmem:[%s117 + $0x348] sm:$0xff]
        %v244 = vld [vmem:[%s117 + $0x350] sm:$0xff]
        %v245 = vld [vmem:[%s117 + $0x358] sm:$0xff]
        %v246 = vld [vmem:[%s117 + $0x360] sm:$0xff]
        %v247 = vld [vmem:[%s117 + $0x368] sm:$0xff]
        %v248 = vld [vmem:[%s117 + $0x370] sm:$0xff]
        %v249 = vld [vmem:[%s117 + $0x378] sm:$0xff]
        %v250 = vld [vmem:[%s117 + $0x380] sm:$0xff]
        %v251 = vld [vmem:[%s117 + $0x388] sm:$0xff]
        %v252 = vld [vmem:[%s117 + $0x390] sm:$0xff]
        %v253 = vld [vmem:[%s117 + $0x398] sm:$0xff]
        %v254 = vld [vmem:[%s117 + $0x3a0] sm:$0xff]
        %v255 = vld [vmem:[%s117 + $0x3a8] sm:$0xff]
        %v256 = vld [vmem:[%s117 + $0x3b0] sm:$0xff]
        %v257 = vld [vmem:[%s117 + $0x3b8] sm:$0xff]
        %v258 = vld [vmem:[%s117 + $0x3c0] sm:$0xff]
        %v259 = vld [vmem:[%s117 + $0x3c8] sm:$0xff]
        %v260 = vld [vmem:[%s117 + $0x3d0] sm:$0xff]
        %v261 = vld [vmem:[%s117 + $0x3d8] sm:$0xff]
        %v262 = vld [vmem:[%s117 + $0x3e0] sm:$0xff]
        %v263 = vld [vmem:[%s117 + $0x3e8] sm:$0xff]
        %v264 = vld [vmem:[%s117 + $0x3f0] sm:$0xff]
        %v265 = vld [vmem:[%s117 + $0x3f8] sm:$0xff]
        %v266 = vld [vmem:[%s117 + $0x400] sm:$0xff]
        %v267 = vld [vmem:[%s117 + $0x408] sm:$0xff]
        %v268 = vld [vmem:[%s117 + $0x410] sm:$0xff]
        %v269 = vld [vmem:[%s117 + $0x418] sm:$0xff]
        %v270 = vld [vmem:[%s117 + $0x420] sm:$0xff]
        %v271 = vld [vmem:[%s117 + $0x428] sm:$0xff]
        %v272 = vld [vmem:[%s117 + $0x430] sm:$0xff]
        %v273 = vld [vmem:[%s117 + $0x438] sm:$0xff]
        %v274 = vld [vmem:[%s117 + $0x440] sm:$0xff]
        %v275 = vld [vmem:[%s117 + $0x448] sm:$0xff]
        %v276 = vld [vmem:[%s117 + $0x450] sm:$0xff]
        %v277 = vld [vmem:[%s117 + $0x458] sm:$0xff]
        %v278 = vld [vmem:[%s117 + $0x460] sm:$0xff]
        %v279 = vld [vmem:[%s117 + $0x468] sm:$0xff]
        %v280 = vld [vmem:[%s117 + $0x470] sm:$0xff]
        %v281 = vld [vmem:[%s117 + $0x478] sm:$0xff]
        %v282 = vld [vmem:[%s117 + $0x480] sm:$0xff]
        %v283 = vld [vmem:[%s117 + $0x488] sm:$0xff]
        %v284 = vld [vmem:[%s117 + $0x490] sm:$0xff]
        %v285 = vld [vmem:[%s117 + $0x498] sm:$0xff]
        %v286 = vld [vmem:[%s117 + $0x4a0] sm:$0xff]
        %v287 = vld [vmem:[%s117 + $0x4a8] sm:$0xff]
        %v288 = vld [vmem:[%s117 + $0x4b0] sm:$0xff]
        %v289 = vld [vmem:[%s117 + $0x4b8] sm:$0xff]
        %v290 = vld [vmem:[%s117 + $0x4c0] sm:$0xff]
        %v291 = vld [vmem:[%s117 + $0x4c8] sm:$0xff]
        %v292 = vld [vmem:[%s117 + $0x4d0] sm:$0xff]
        %v293 = vld [vmem:[%s117 + $0x4d8] sm:$0xff]
        %v294 = vld [vmem:[%s117 + $0x4e0] sm:$0xff]
        %v295 = vld [vmem:[%s117 + $0x4e8] sm:$0xff]
        %v296 = vld [vmem:[%s117 + $0x4f0] sm:$0xff]
        %v297 = vld [vmem:[%s117 + $0x4f8] sm:$0xff]
        %v298 = vld [vmem:[%s117 + $0x500] sm:$0xff]
        %v299 = vld [vmem:[%s117 + $0x508] sm:$0xff]
        %v300 = vld [vmem:[%s117 + $0x510] sm:$0xff]
        %v301 = vld [vmem:[%s117 + $0x518] sm:$0xff]
        %v302 = vld [vmem:[%s117 + $0x520] sm:$0xff]
        %v303 = vld [vmem:[%s117 + $0x528] sm:$0xff]
        %v304 = vld [vmem:[%s117 + $0x530] sm:$0xff]
        %v305 = vld [vmem:[%s117 + $0x538] sm:$0xff]
        %v306 = vld [vmem:[%s117 + $0x540] sm:$0xff]
        %v307 = vld [vmem:[%s117 + $0x548] sm:$0xff]
        %v308 = vld [vmem:[%s117 + $0x550] sm:$0xff]
        %v309 = vld [vmem:[%s117 + $0x558] sm:$0xff]
        %v310 = vld [vmem:[%s117 + $0x560] sm:$0xff]
        %v311 = vld [vmem:[%s117 + $0x568] sm:$0xff]
        %v312 = vld [vmem:[%s117 + $0x570] sm:$0xff]
        %v313 = vld [vmem:[%s117 + $0x578] sm:$0xff]
        %v314 = vld [vmem:[%s117 + $0x580] sm:$0xff]
        %v315 = vld [vmem:[%s117 + $0x588] sm:$0xff]
        %v316 = vld [vmem:[%s117 + $0x590] sm:$0xff]
        %v317 = vld [vmem:[%s117 + $0x598] sm:$0xff]
        %v318 = vld [vmem:[%s117 + $0x5a0] sm:$0xff]
        %v319 = vld [vmem:[%s117 + $0x5a8] sm:$0xff]
        %v320 = vld [vmem:[%s117 + $0x5b0] sm:$0xff]
        %v321 = vld [vmem:[%s117 + $0x5b8] sm:$0xff]
        %v322 = vld [vmem:[%s117 + $0x5c0] sm:$0xff]
        %v323 = vld [vmem:[%s117 + $0x5c8] sm:$0xff]
        %v324 = vld [vmem:[%s117 + $0x5d0] sm:$0xff]
        %v325 = vld [vmem:[%s117 + $0x5d8] sm:$0xff]
        %v326 = vld [vmem:[%s117 + $0x5e0] sm:$0xff]
        %v327 = vld [vmem:[%s117 + $0x5e8] sm:$0xff]
        %v328 = vld [vmem:[%s117 + $0x5f0] sm:$0xff]
        %v329 = vld [vmem:[%s117 + $0x5f8] sm:$0xff]
        %v330 = vld [vmem:[%s117 + $0x600] sm:$0xff]
        %v331 = vld [vmem:[%s117 + $0x608] sm:$0xff]
        %v332 = vld [vmem:[%s117 + $0x610] sm:$0xff]
        %v333 = vld [vmem:[%s117 + $0x618] sm:$0xff]
        %v334 = vmul.f32 %v138, 0.70710677
        %v335 = vmul.f32 %v139, 0.70710677
        %v336 = vmul.f32 %v140, 0.70710677
        %v337 = vmul.f32 %v141, 0.70710677
        %v338 = vmul.f32 %v142, 0.70710677
        %v339 = vmul.f32 %v143, 0.70710677
        %v340 = vmul.f32 %v144, 0.70710677
        %v341 = vmul.f32 %v145, 0.70710677
        %v342 = vmul.f32 %v146, 0.70710677
        %v343 = vmul.f32 %v147, 0.70710677
        %v344 = vmul.f32 %v148, 0.70710677
        %v345 = vmul.f32 %v149, 0.70710677
        %v346 = vmul.f32 %v150, 0.70710677
        %v347 = vmul.f32 %v151, 0.70710677
        %v348 = vmul.f32 %v152, 0.70710677
        %v349 = vmul.f32 %v153, 0.70710677
        %v350 = vmul.f32 %v154, 0.70710677
        %v351 = vmul.f32 %v155, 0.70710677
        %v352 = vmul.f32 %v156, 0.70710677
        %v353 = vmul.f32 %v157, 0.70710677
        %v354 = vmul.f32 %v158, 0.70710677
        %v355 = vmul.f32 %v159, 0.70710677
        %v356 = vmul.f32 %v160, 0.70710677
        %v357 = vmul.f32 %v161, 0.70710677
        %v358 = vmul.f32 %v162, 0.70710677
        %v359 = vmul.f32 %v163, 0.70710677
        %v360 = vmul.f32 %v164, 0.70710677
        %v361 = vmul.f32 %v165, 0.70710677
        %v362 = vmul.f32 %v166, 0.70710677
        %v363 = vmul.f32 %v167, 0.70710677
        %v364 = vmul.f32 %v168, 0.70710677
        %v365 = vmul.f32 %v169, 0.70710677
        %v366 = vmul.f32 %v170, 0.70710677
        %v367 = vmul.f32 %v171, 0.70710677
        %v368 = vmul.f32 %v172, 0.70710677
        %v369 = vmul.f32 %v173, 0.70710677
        %v370 = vmul.f32 %v174, 0.70710677
        %v371 = vmul.f32 %v175, 0.70710677
        %v372 = vmul.f32 %v176, 0.70710677
        %v373 = vmul.f32 %v177, 0.70710677
        %v374 = vmul.f32 %v178, 0.70710677
        %v375 = vmul.f32 %v179, 0.70710677
        %v376 = vmul.f32 %v180, 0.70710677
        %v377 = vmul.f32 %v181, 0.70710677
        %v378 = vmul.f32 %v182, 0.70710677
        %v379 = vmul.f32 %v183, 0.70710677
        %v380 = vmul.f32 %v184, 0.70710677
        %v381 = vmul.f32 %v185, 0.70710677
        %v382 = vmul.f32 %v186, 0.70710677
        %v383 = vmul.f32 %v187, 0.70710677
        %v384 = vmul.f32 %v188, 0.70710677
        %v385 = vmul.f32 %v189, 0.70710677
        %v386 = vmul.f32 %v190, 0.70710677
        %v387 = vmul.f32 %v191, 0.70710677
        %v388 = vmul.f32 %v192, 0.70710677
        %v389 = vmul.f32 %v193, 0.70710677
        %v390 = vmul.f32 %v194, 0.70710677
        %v391 = vmul.f32 %v195, 0.70710677
        %v392 = vmul.f32 %v196, 0.70710677
        %v393 = vmul.f32 %v197, 0.70710677
        %v394 = vmul.f32 %v198, 0.70710677
        %v395 = vmul.f32 %v199, 0.70710677
        %v396 = vmul.f32 %v200, 0.70710677
        %v397 = vmul.f32 %v201, 0.70710677
        %v398 = vmul.f32 %v202, 0.70710677
        %v399 = vmul.f32 %v203, 0.70710677
        %v400 = vmul.f32 %v204, 0.70710677
        %v401 = vmul.f32 %v205, 0.70710677
        %v402 = vmul.f32 %v206, 0.70710677
        %v403 = vmul.f32 %v207, 0.70710677
        %v404 = vmul.f32 %v208, 0.70710677
        %v405 = vmul.f32 %v209, 0.70710677
        %v406 = vmul.f32 %v210, 0.70710677
        %v407 = vmul.f32 %v211, 0.70710677
        %v408 = vmul.f32 %v212, 0.70710677
        %v409 = vmul.f32 %v213, 0.70710677
        %v410 = vmul.f32 %v214, 0.70710677
        %v411 = vmul.f32 %v215, 0.70710677
        %v412 = vmul.f32 %v216, 0.70710677
        %v413 = vmul.f32 %v217, 0.70710677
        %v414 = vmul.f32 %v218, 0.70710677
        %v415 = vmul.f32 %v219, 0.70710677
        %v416 = vmul.f32 %v220, 0.70710677
        %v417 = vmul.f32 %v221, 0.70710677
        %v418 = vmul.f32 %v222, 0.70710677
        %v419 = vmul.f32 %v223, 0.70710677
        %v420 = vmul.f32 %v224, 0.70710677
        %v421 = vmul.f32 %v225, 0.70710677
        %v422 = vmul.f32 %v226, 0.70710677
        %v423 = vmul.f32 %v227, 0.70710677
        %v424 = vmul.f32 %v228, 0.70710677
        %v425 = vmul.f32 %v229, 0.70710677
        %v426 = vmul.f32 %v230, 0.70710677
        %v427 = vmul.f32 %v231, 0.70710677
        %v428 = vmul.f32 %v232, 0.70710677
        %v429 = vmul.f32 %v233, 0.70710677
        %v430 = vmul.f32 %v234, 0.70710677
        %v431 = vmul.f32 %v235, 0.70710677
        %v432 = vmul.f32 %v236, 0.70710677
        %v433 = vmul.f32 %v237, 0.70710677
        %v434 = vmul.f32 %v238, 0.70710677
        %v435 = vmul.f32 %v239, 0.70710677
        %v436 = vmul.f32 %v240, 0.70710677
        %v437 = vmul.f32 %v241, 0.70710677
        %v438 = vmul.f32 %v242, 0.70710677
        %v439 = vmul.f32 %v243, 0.70710677
        %v440 = vmul.f32 %v244, 0.70710677
        %v441 = vmul.f32 %v245, 0.70710677
        %v442 = vmul.f32 %v246, 0.70710677
        %v443 = vmul.f32 %v247, 0.70710677
        %v444 = vmul.f32 %v248, 0.70710677
        %v445 = vmul.f32 %v249, 0.70710677
        %v446 = vmul.f32 %v250, 0.70710677
        %v447 = vmul.f32 %v251, 0.70710677
        %v448 = vmul.f32 %v252, 0.70710677
        %v449 = vmul.f32 %v253, 0.70710677
        %v450 = vmul.f32 %v254, 0.70710677
        %v451 = vmul.f32 %v255, 0.70710677
        %v452 = vmul.f32 %v256, 0.70710677
        %v453 = vmul.f32 %v257, 0.70710677
        %v454 = vmul.f32 %v258, 0.70710677
        %v455 = vmul.f32 %v259, 0.70710677
        %v456 = vmul.f32 %v260, 0.70710677
        %v457 = vmul.f32 %v261, 0.70710677
        %v458 = vmul.f32 %v262, 0.70710677
        %v459 = vmul.f32 %v263, 0.70710677
        %v460 = vmul.f32 %v264, 0.70710677
        %v461 = vmul.f32 %v265, 0.70710677
        %v462 = vmul.f32 %v266, 0.70710677
        %v463 = vmul.f32 %v267, 0.70710677
        %v464 = vmul.f32 %v268, 0.70710677
        %v465 = vmul.f32 %v269, 0.70710677
        %v466 = vmul.f32 %v270, 0.70710677
        %v467 = vmul.f32 %v271, 0.70710677
        %v468 = vmul.f32 %v272, 0.70710677
        %v469 = vmul.f32 %v273, 0.70710677
        %v470 = vmul.f32 %v274, 0.70710677
        %v471 = vmul.f32 %v275, 0.70710677
        %v472 = vmul.f32 %v276, 0.70710677
        %v473 = vmul.f32 %v277, 0.70710677
        %v474 = vmul.f32 %v278, 0.70710677
        %v475 = vmul.f32 %v279, 0.70710677
        %v476 = vmul.f32 %v280, 0.70710677
        %v477 = vmul.f32 %v281, 0.70710677
        %v478 = vmul.f32 %v282, 0.70710677
        %v479 = vmul.f32 %v283, 0.70710677
        %v480 = vmul.f32 %v284, 0.70710677
        %v481 = vmul.f32 %v285, 0.70710677
        %v482 = vmul.f32 %v286, 0.70710677
        %v483 = vmul.f32 %v287, 0.70710677
        %v484 = vmul.f32 %v288, 0.70710677
        %v485 = vmul.f32 %v289, 0.70710677
        %v486 = vmul.f32 %v290, 0.70710677
        %v487 = vmul.f32 %v291, 0.70710677
        %v488 = vmul.f32 %v292, 0.70710677
        %v489 = vmul.f32 %v293, 0.70710677
        %v490 = vmul.f32 %v294, 0.70710677
        %v491 = vmul.f32 %v295, 0.70710677
        %v492 = vmul.f32 %v296, 0.70710677
        %v493 = vmul.f32 %v297, 0.70710677
        %v494 = vmul.f32 %v298, 0.70710677
        %v495 = vmul.f32 %v299, 0.70710677
        %v496 = vmul.f32 %v300, 0.70710677
        %v497 = vmul.f32 %v301, 0.70710677
        %v498 = vmul.f32 %v302, 0.70710677
        %v499 = vmul.f32 %v303, 0.70710677
        %v500 = vmul.f32 %v304, 0.70710677
        %v501 = vmul.f32 %v305, 0.70710677
        %v502 = vmul.f32 %v306, 0.70710677
        %v503 = vmul.f32 %v307, 0.70710677
        %v504 = vmul.f32 %v308, 0.70710677
        %v505 = vmul.f32 %v309, 0.70710677
        %v506 = vmul.f32 %v310, 0.70710677
        %v507 = vmul.f32 %v311, 0.70710677
        %v508 = vmul.f32 %v312, 0.70710677
        %v509 = vmul.f32 %v313, 0.70710677
        %v510 = vmul.f32 %v314, 0.70710677
        %v511 = vmul.f32 %v315, 0.70710677
        %v512 = vmul.f32 %v316, 0.70710677
        %v513 = vmul.f32 %v317, 0.70710677
        %v514 = vmul.f32 %v318, 0.70710677
        %v515 = vmul.f32 %v319, 0.70710677
        %v516 = vmul.f32 %v320, 0.70710677
        %v517 = vmul.f32 %v321, 0.70710677
        %v518 = vmul.f32 %v322, 0.70710677
        %v519 = vmul.f32 %v323, 0.70710677
        %v520 = vmul.f32 %v324, 0.70710677
        %v521 = vmul.f32 %v325, 0.70710677
        %v522 = vmul.f32 %v326, 0.70710677
        %v523 = vmul.f32 %v327, 0.70710677
        %v524 = vmul.f32 %v328, 0.70710677
        %v525 = vmul.f32 %v329, 0.70710677
        %v526 = vmul.f32 %v330, 0.70710677
        %v527 = vmul.f32 %v331, 0.70710677
        %v528 = vmul.f32 %v332, 0.70710677
        %v529 = vmul.f32 %v333, 0.70710677
        %v530 = vand.u32 2147483647, %v334
        %v531 = vand.u32 2147483647, %v335
        %v532 = vand.u32 2147483647, %v336
        %v533 = vand.u32 2147483647, %v337
        %v534 = vand.u32 2147483647, %v338
        %v535 = vand.u32 2147483647, %v339
        %v536 = vand.u32 2147483647, %v340
        %v537 = vand.u32 2147483647, %v341
        %v538 = vand.u32 2147483647, %v342
        %v539 = vand.u32 2147483647, %v343
        %v540 = vand.u32 2147483647, %v344
        %v541 = vand.u32 2147483647, %v345
        %v542 = vand.u32 2147483647, %v346
        %v543 = vand.u32 2147483647, %v347
        %v544 = vand.u32 2147483647, %v348
        %v545 = vand.u32 2147483647, %v349
        %v546 = vand.u32 2147483647, %v350
        %v547 = vand.u32 2147483647, %v351
        %v548 = vand.u32 2147483647, %v352
        %v549 = vand.u32 2147483647, %v353
        %v550 = vand.u32 2147483647, %v354
        %v551 = vand.u32 2147483647, %v355
        %v552 = vand.u32 2147483647, %v356
        %v553 = vand.u32 2147483647, %v357
        %v554 = vand.u32 2147483647, %v358
        %v555 = vand.u32 2147483647, %v359
        %v556 = vand.u32 2147483647, %v360
        %v557 = vand.u32 2147483647, %v361
        %v558 = vand.u32 2147483647, %v362
        %v559 = vand.u32 2147483647, %v363
        %v560 = vand.u32 2147483647, %v364
        %v561 = vand.u32 2147483647, %v365
        %v562 = vand.u32 2147483647, %v366
        %v563 = vand.u32 2147483647, %v367
        %v564 = vand.u32 2147483647, %v368
        %v565 = vand.u32 2147483647, %v369
        %v566 = vand.u32 2147483647, %v370
        %v567 = vand.u32 2147483647, %v371
        %v568 = vand.u32 2147483647, %v372
        %v569 = vand.u32 2147483647, %v373
        %v570 = vand.u32 2147483647, %v374
        %v571 = vand.u32 2147483647, %v375
        %v572 = vand.u32 2147483647, %v376
        %v573 = vand.u32 2147483647, %v377
        %v574 = vand.u32 2147483647, %v378
        %v575 = vand.u32 2147483647, %v379
        %v576 = vand.u32 2147483647, %v380
        %v577 = vand.u32 2147483647, %v381
        %v578 = vand.u32 2147483647, %v382
        %v579 = vand.u32 2147483647, %v383
        %v580 = vand.u32 2147483647, %v384
        %v581 = vand.u32 2147483647, %v385
        %v582 = vand.u32 2147483647, %v386
        %v583 = vand.u32 2147483647, %v387
        %v584 = vand.u32 2147483647, %v388
        %v585 = vand.u32 2147483647, %v389
        %v586 = vand.u32 2147483647, %v390
        %v587 = vand.u32 2147483647, %v391
        %v588 = vand.u32 2147483647, %v392
        %v589 = vand.u32 2147483647, %v393
        %v590 = vand.u32 2147483647, %v394
        %v591 = vand.u32 2147483647, %v395
        %v592 = vand.u32 2147483647, %v396
        %v593 = vand.u32 2147483647, %v397
        %v594 = vand.u32 2147483647, %v398
        %v595 = vand.u32 2147483647, %v399
        %v596 = vand.u32 2147483647, %v400
        %v597 = vand.u32 2147483647, %v401
        %v598 = vand.u32 2147483647, %v402
        %v599 = vand.u32 2147483647, %v403
        %v600 = vand.u32 2147483647, %v404
        %v601 = vand.u32 2147483647, %v405
        %v602 = vand.u32 2147483647, %v406
        %v603 = vand.u32 2147483647, %v407
        %v604 = vand.u32 2147483647, %v408
        %v605 = vand.u32 2147483647, %v409
        %v606 = vand.u32 2147483647, %v410
        %v607 = vand.u32 2147483647, %v411
        %v608 = vand.u32 2147483647, %v412
        %v609 = vand.u32 2147483647, %v413
        %v610 = vand.u32 2147483647, %v414
        %v611 = vand.u32 2147483647, %v415
        %v612 = vand.u32 2147483647, %v416
        %v613 = vand.u32 2147483647, %v417
        %v614 = vand.u32 2147483647, %v418
        %v615 = vand.u32 2147483647, %v419
        %v616 = vand.u32 2147483647, %v420
        %v617 = vand.u32 2147483647, %v421
        %v618 = vand.u32 2147483647, %v422
        %v619 = vand.u32 2147483647, %v423
        %v620 = vand.u32 2147483647, %v424
        %v621 = vand.u32 2147483647, %v425
        %v622 = vand.u32 2147483647, %v426
        %v623 = vand.u32 2147483647, %v427
        %v624 = vand.u32 2147483647, %v428
        %v625 = vand.u32 2147483647, %v429
        %v626 = vand.u32 2147483647, %v430
        %v627 = vand.u32 2147483647, %v431
        %v628 = vand.u32 2147483647, %v432
        %v629 = vand.u32 2147483647, %v433
        %v630 = vand.u32 2147483647, %v434
        %v631 = vand.u32 2147483647, %v435
        %v632 = vand.u32 2147483647, %v436
        %v633 = vand.u32 2147483647, %v437
        %v634 = vand.u32 2147483647, %v438
        %v635 = vand.u32 2147483647, %v439
        %v636 = vand.u32 2147483647, %v440
        %v637 = vand.u32 2147483647, %v441
        %v638 = vand.u32 2147483647, %v442
        %v639 = vand.u32 2147483647, %v443
        %v640 = vand.u32 2147483647, %v444
        %v641 = vand.u32 2147483647, %v445
        %v642 = vand.u32 2147483647, %v446
        %v643 = vand.u32 2147483647, %v447
        %v644 = vand.u32 2147483647, %v448
        %v645 = vand.u32 2147483647, %v449
        %v646 = vand.u32 2147483647, %v450
        %v647 = vand.u32 2147483647, %v451
        %v648 = vand.u32 2147483647, %v452
        %v649 = vand.u32 2147483647, %v453
        %v650 = vand.u32 2147483647, %v454
        %v651 = vand.u32 2147483647, %v455
        %v652 = vand.u32 2147483647, %v456
        %v653 = vand.u32 2147483647, %v457
        %v654 = vand.u32 2147483647, %v458
        %v655 = vand.u32 2147483647, %v459
        %v656 = vand.u32 2147483647, %v460
        %v657 = vand.u32 2147483647, %v461
        %v658 = vand.u32 2147483647, %v462
        %v659 = vand.u32 2147483647, %v463
        %v660 = vand.u32 2147483647, %v464
        %v661 = vand.u32 2147483647, %v465
        %v662 = vand.u32 2147483647, %v466
        %v663 = vand.u32 2147483647, %v467
        %v664 = vand.u32 2147483647, %v468
        %v665 = vand.u32 2147483647, %v469
        %v666 = vand.u32 2147483647, %v470
        %v667 = vand.u32 2147483647, %v471
        %v668 = vand.u32 2147483647, %v472
        %v669 = vand.u32 2147483647, %v473
        %v670 = vand.u32 2147483647, %v474
        %v671 = vand.u32 2147483647, %v475
        %v672 = vand.u32 2147483647, %v476
        %v673 = vand.u32 2147483647, %v477
        %v674 = vand.u32 2147483647, %v478
        %v675 = vand.u32 2147483647, %v479
        %v676 = vand.u32 2147483647, %v480
        %v677 = vand.u32 2147483647, %v481
        %v678 = vand.u32 2147483647, %v482
        %v679 = vand.u32 2147483647, %v483
        %v680 = vand.u32 2147483647, %v484
        %v681 = vand.u32 2147483647, %v485
        %v682 = vand.u32 2147483647, %v486
        %v683 = vand.u32 2147483647, %v487
        %v684 = vand.u32 2147483647, %v488
        %v685 = vand.u32 2147483647, %v489
        %v686 = vand.u32 2147483647, %v490
        %v687 = vand.u32 2147483647, %v491
        %v688 = vand.u32 2147483647, %v492
        %v689 = vand.u32 2147483647, %v493
        %v690 = vand.u32 2147483647, %v494
        %v691 = vand.u32 2147483647, %v495
        %v692 = vand.u32 2147483647, %v496
        %v693 = vand.u32 2147483647, %v497
        %v694 = vand.u32 2147483647, %v498
        %v695 = vand.u32 2147483647, %v499
        %v696 = vand.u32 2147483647, %v500
        %v697 = vand.u32 2147483647, %v501
        %v698 = vand.u32 2147483647, %v502
        %v699 = vand.u32 2147483647, %v503
        %v700 = vand.u32 2147483647, %v504
        %v701 = vand.u32 2147483647, %v505
        %v702 = vand.u32 2147483647, %v506
        %v703 = vand.u32 2147483647, %v507
        %v704 = vand.u32 2147483647, %v508
        %v705 = vand.u32 2147483647, %v509
        %v706 = vand.u32 2147483647, %v510
        %v707 = vand.u32 2147483647, %v511
        %v708 = vand.u32 2147483647, %v512
        %v709 = vand.u32 2147483647, %v513
        %v710 = vand.u32 2147483647, %v514
        %v711 = vand.u32 2147483647, %v515
        %v712 = vand.u32 2147483647, %v516
        %v713 = vand.u32 2147483647, %v517
        %v714 = vand.u32 2147483647, %v518
        %v715 = vand.u32 2147483647, %v519
        %v716 = vand.u32 2147483647, %v520
        %v717 = vand.u32 2147483647, %v521
        %v718 = vand.u32 2147483647, %v522
        %v719 = vand.u32 2147483647, %v523
        %v720 = vand.u32 2147483647, %v524
        %v721 = vand.u32 2147483647, %v525
        %v722 = vand.u32 2147483647, %v526
        %v723 = vand.u32 2147483647, %v527
        %v724 = vand.u32 2147483647, %v528
        %v725 = vand.u32 2147483647, %v529
        %v726 = vmul.f32 %v530, 0.3275911
        %v727 = vmul.f32 %v531, 0.3275911
        %v728 = vmul.f32 %v532, 0.3275911
        %v729 = vmul.f32 %v533, 0.3275911
        %v730 = vmul.f32 %v534, 0.3275911
        %v731 = vmul.f32 %v535, 0.3275911
        %v732 = vmul.f32 %v536, 0.3275911
        %v733 = vmul.f32 %v537, 0.3275911
        %v734 = vmul.f32 %v538, 0.3275911
        %v735 = vmul.f32 %v539, 0.3275911
        %v736 = vmul.f32 %v540, 0.3275911
        %v737 = vmul.f32 %v541, 0.3275911
        %v738 = vmul.f32 %v542, 0.3275911
        %v739 = vmul.f32 %v543, 0.3275911
        %v740 = vmul.f32 %v544, 0.3275911
        %v741 = vmul.f32 %v545, 0.3275911
        %v742 = vmul.f32 %v546, 0.3275911
        %v743 = vmul.f32 %v547, 0.3275911
        %v744 = vmul.f32 %v548, 0.3275911
        %v745 = vmul.f32 %v549, 0.3275911
        %v746 = vmul.f32 %v550, 0.3275911
        %v747 = vmul.f32 %v551, 0.3275911
        %v748 = vmul.f32 %v552, 0.3275911
        %v749 = vmul.f32 %v553, 0.3275911
        %v750 = vmul.f32 %v554, 0.3275911
        %v751 = vmul.f32 %v555, 0.3275911
        %v752 = vmul.f32 %v556, 0.3275911
        %v753 = vmul.f32 %v557, 0.3275911
        %v754 = vmul.f32 %v558, 0.3275911
        %v755 = vmul.f32 %v559, 0.3275911
        %v756 = vmul.f32 %v560, 0.3275911
        %v757 = vmul.f32 %v561, 0.3275911
        %v758 = vmul.f32 %v562, 0.3275911
        %v759 = vmul.f32 %v563, 0.3275911
        %v760 = vmul.f32 %v564, 0.3275911
        %v761 = vmul.f32 %v565, 0.3275911
        %v762 = vmul.f32 %v566, 0.3275911
        %v763 = vmul.f32 %v567, 0.3275911
        %v764 = vmul.f32 %v568, 0.3275911
        %v765 = vmul.f32 %v569, 0.3275911
        %v766 = vmul.f32 %v570, 0.3275911
        %v767 = vmul.f32 %v571, 0.3275911
        %v768 = vmul.f32 %v572, 0.3275911
        %v769 = vmul.f32 %v573, 0.3275911
        %v770 = vmul.f32 %v574, 0.3275911
        %v771 = vmul.f32 %v575, 0.3275911
        %v772 = vmul.f32 %v576, 0.3275911
        %v773 = vmul.f32 %v577, 0.3275911
        %v774 = vmul.f32 %v578, 0.3275911
        %v775 = vmul.f32 %v579, 0.3275911
        %v776 = vmul.f32 %v580, 0.3275911
        %v777 = vmul.f32 %v581, 0.3275911
        %v778 = vmul.f32 %v582, 0.3275911
        %v779 = vmul.f32 %v583, 0.3275911
        %v780 = vmul.f32 %v584, 0.3275911
        %v781 = vmul.f32 %v585, 0.3275911
        %v782 = vmul.f32 %v586, 0.3275911
        %v783 = vmul.f32 %v587, 0.3275911
        %v784 = vmul.f32 %v588, 0.3275911
        %v785 = vmul.f32 %v589, 0.3275911
        %v786 = vmul.f32 %v590, 0.3275911
        %v787 = vmul.f32 %v591, 0.3275911
        %v788 = vmul.f32 %v592, 0.3275911
        %v789 = vmul.f32 %v593, 0.3275911
        %v790 = vmul.f32 %v594, 0.3275911
        %v791 = vmul.f32 %v595, 0.3275911
        %v792 = vmul.f32 %v596, 0.3275911
        %v793 = vmul.f32 %v597, 0.3275911
        %v794 = vmul.f32 %v598, 0.3275911
        %v795 = vmul.f32 %v599, 0.3275911
        %v796 = vmul.f32 %v600, 0.3275911
        %v797 = vmul.f32 %v601, 0.3275911
        %v798 = vmul.f32 %v602, 0.3275911
        %v799 = vmul.f32 %v603, 0.3275911
        %v800 = vmul.f32 %v604, 0.3275911
        %v801 = vmul.f32 %v605, 0.3275911
        %v802 = vmul.f32 %v606, 0.3275911
        %v803 = vmul.f32 %v607, 0.3275911
        %v804 = vmul.f32 %v608, 0.3275911
        %v805 = vmul.f32 %v609, 0.3275911
        %v806 = vmul.f32 %v610, 0.3275911
        %v807 = vmul.f32 %v611, 0.3275911
        %v808 = vmul.f32 %v612, 0.3275911
        %v809 = vmul.f32 %v613, 0.3275911
        %v810 = vmul.f32 %v614, 0.3275911
        %v811 = vmul.f32 %v615, 0.3275911
        %v812 = vmul.f32 %v616, 0.3275911
        %v813 = vmul.f32 %v617, 0.3275911
        %v814 = vmul.f32 %v618, 0.3275911
        %v815 = vmul.f32 %v619, 0.3275911
        %v816 = vmul.f32 %v620, 0.3275911
        %v817 = vmul.f32 %v621, 0.3275911
        %v818 = vmul.f32 %v622, 0.3275911
        %v819 = vmul.f32 %v623, 0.3275911
        %v820 = vmul.f32 %v624, 0.3275911
        %v821 = vmul.f32 %v625, 0.3275911
        %v822 = vmul.f32 %v626, 0.3275911
        %v823 = vmul.f32 %v627, 0.3275911
        %v824 = vmul.f32 %v628, 0.3275911
        %v825 = vmul.f32 %v629, 0.3275911
        %v826 = vmul.f32 %v630, 0.3275911
        %v827 = vmul.f32 %v631, 0.3275911
        %v828 = vmul.f32 %v632, 0.3275911
        %v829 = vmul.f32 %v633, 0.3275911
        %v830 = vmul.f32 %v634, 0.3275911
        %v831 = vmul.f32 %v635, 0.3275911
        %v832 = vmul.f32 %v636, 0.3275911
        %v833 = vmul.f32 %v637, 0.3275911
        %v834 = vmul.f32 %v638, 0.3275911
        %v835 = vmul.f32 %v639, 0.3275911
        %v836 = vmul.f32 %v640, 0.3275911
        %v837 = vmul.f32 %v641, 0.3275911
        %v838 = vmul.f32 %v642, 0.3275911
        %v839 = vmul.f32 %v643, 0.3275911
        %v840 = vmul.f32 %v644, 0.3275911
        %v841 = vmul.f32 %v645, 0.3275911
        %v842 = vmul.f32 %v646, 0.3275911
        %v843 = vmul.f32 %v647, 0.3275911
        %v844 = vmul.f32 %v648, 0.3275911
        %v845 = vmul.f32 %v649, 0.3275911
        %v846 = vmul.f32 %v650, 0.3275911
        %v847 = vmul.f32 %v651, 0.3275911
        %v848 = vmul.f32 %v652, 0.3275911
        %v849 = vmul.f32 %v653, 0.3275911
        %v850 = vmul.f32 %v654, 0.3275911
        %v851 = vmul.f32 %v655, 0.3275911
        %v852 = vmul.f32 %v656, 0.3275911
        %v853 = vmul.f32 %v657, 0.3275911
        %v854 = vmul.f32 %v658, 0.3275911
        %v855 = vmul.f32 %v659, 0.3275911
        %v856 = vmul.f32 %v660, 0.3275911
        %v857 = vmul.f32 %v661, 0.3275911
        %v858 = vmul.f32 %v662, 0.3275911
        %v859 = vmul.f32 %v663, 0.3275911
        %v860 = vmul.f32 %v664, 0.3275911
        %v861 = vmul.f32 %v665, 0.3275911
        %v862 = vmul.f32 %v666, 0.3275911
        %v863 = vmul.f32 %v667, 0.3275911
        %v864 = vmul.f32 %v668, 0.3275911
        %v865 = vmul.f32 %v669, 0.3275911
        %v866 = vmul.f32 %v670, 0.3275911
        %v867 = vmul.f32 %v671, 0.3275911
        %v868 = vmul.f32 %v672, 0.3275911
        %v869 = vmul.f32 %v673, 0.3275911
        %v870 = vmul.f32 %v674, 0.3275911
        %v871 = vmul.f32 %v675, 0.3275911
        %v872 = vmul.f32 %v676, 0.3275911
        %v873 = vmul.f32 %v677, 0.3275911
        %v874 = vmul.f32 %v678, 0.3275911
        %v875 = vmul.f32 %v679, 0.3275911
        %v876 = vmul.f32 %v680, 0.3275911
        %v877 = vmul.f32 %v681, 0.3275911
        %v878 = vmul.f32 %v682, 0.3275911
        %v879 = vmul.f32 %v683, 0.3275911
        %v880 = vmul.f32 %v684, 0.3275911
        %v881 = vmul.f32 %v685, 0.3275911
        %v882 = vmul.f32 %v686, 0.3275911
        %v883 = vmul.f32 %v687, 0.3275911
        %v884 = vmul.f32 %v688, 0.3275911
        %v885 = vmul.f32 %v689, 0.3275911
        %v886 = vmul.f32 %v690, 0.3275911
        %v887 = vmul.f32 %v691, 0.3275911
        %v888 = vmul.f32 %v692, 0.3275911
        %v889 = vmul.f32 %v693, 0.3275911
        %v890 = vmul.f32 %v694, 0.3275911
        %v891 = vmul.f32 %v695, 0.3275911
        %v892 = vmul.f32 %v696, 0.3275911
        %v893 = vmul.f32 %v697, 0.3275911
        %v894 = vmul.f32 %v698, 0.3275911
        %v895 = vmul.f32 %v699, 0.3275911
        %v896 = vmul.f32 %v700, 0.3275911
        %v897 = vmul.f32 %v701, 0.3275911
        %v898 = vmul.f32 %v702, 0.3275911
        %v899 = vmul.f32 %v703, 0.3275911
        %v900 = vmul.f32 %v704, 0.3275911
        %v901 = vmul.f32 %v705, 0.3275911
        %v902 = vmul.f32 %v706, 0.3275911
        %v903 = vmul.f32 %v707, 0.3275911
        %v904 = vmul.f32 %v708, 0.3275911
        %v905 = vmul.f32 %v709, 0.3275911
        %v906 = vmul.f32 %v710, 0.3275911
        %v907 = vmul.f32 %v711, 0.3275911
        %v908 = vmul.f32 %v712, 0.3275911
        %v909 = vmul.f32 %v713, 0.3275911
        %v910 = vmul.f32 %v714, 0.3275911
        %v911 = vmul.f32 %v715, 0.3275911
        %v912 = vmul.f32 %v716, 0.3275911
        %v913 = vmul.f32 %v717, 0.3275911
        %v914 = vmul.f32 %v718, 0.3275911
        %v915 = vmul.f32 %v719, 0.3275911
        %v916 = vmul.f32 %v720, 0.3275911
        %v917 = vmul.f32 %v721, 0.3275911
        %v918 = vmul.f32 %v722, 0.3275911
        %v919 = vmul.f32 %v723, 0.3275911
        %v920 = vmul.f32 %v724, 0.3275911
        %v921 = vmul.f32 %v725, 0.3275911
        %v922 = vadd.f32 %v726, 1.0
        %v923 = vadd.f32 %v727, 1.0
        %v924 = vadd.f32 %v728, 1.0
        %v925 = vadd.f32 %v729, 1.0
        %v926 = vadd.f32 %v730, 1.0
        %v927 = vadd.f32 %v731, 1.0
        %v928 = vadd.f32 %v732, 1.0
        %v929 = vadd.f32 %v733, 1.0
        %v930 = vadd.f32 %v734, 1.0
        %v931 = vadd.f32 %v735, 1.0
        %v932 = vadd.f32 %v736, 1.0
        %v933 = vadd.f32 %v737, 1.0
        %v934 = vadd.f32 %v738, 1.0
        %v935 = vadd.f32 %v739, 1.0
        %v936 = vadd.f32 %v740, 1.0
        %v937 = vadd.f32 %v741, 1.0
        %v938 = vadd.f32 %v742, 1.0
        %v939 = vadd.f32 %v743, 1.0
        %v940 = vadd.f32 %v744, 1.0
        %v941 = vadd.f32 %v745, 1.0
        %v942 = vadd.f32 %v746, 1.0
        %v943 = vadd.f32 %v747, 1.0
        %v944 = vadd.f32 %v748, 1.0
        %v945 = vadd.f32 %v749, 1.0
        %v946 = vadd.f32 %v750, 1.0
        %v947 = vadd.f32 %v751, 1.0
        %v948 = vadd.f32 %v752, 1.0
        %v949 = vadd.f32 %v753, 1.0
        %v950 = vadd.f32 %v754, 1.0
        %v951 = vadd.f32 %v755, 1.0
        %v952 = vadd.f32 %v756, 1.0
        %v953 = vadd.f32 %v757, 1.0
        %v954 = vadd.f32 %v758, 1.0
        %v955 = vadd.f32 %v759, 1.0
        %v956 = vadd.f32 %v760, 1.0
        %v957 = vadd.f32 %v761, 1.0
        %v958 = vadd.f32 %v762, 1.0
        %v959 = vadd.f32 %v763, 1.0
        %v960 = vadd.f32 %v764, 1.0
        %v961 = vadd.f32 %v765, 1.0
        %v962 = vadd.f32 %v766, 1.0
        %v963 = vadd.f32 %v767, 1.0
        %v964 = vadd.f32 %v768, 1.0
        %v965 = vadd.f32 %v769, 1.0
        %v966 = vadd.f32 %v770, 1.0
        %v967 = vadd.f32 %v771, 1.0
        %v968 = vadd.f32 %v772, 1.0
        %v969 = vadd.f32 %v773, 1.0
        %v970 = vadd.f32 %v774, 1.0
        %v971 = vadd.f32 %v775, 1.0
        %v972 = vadd.f32 %v776, 1.0
        %v973 = vadd.f32 %v777, 1.0
        %v974 = vadd.f32 %v778, 1.0
        %v975 = vadd.f32 %v779, 1.0
        %v976 = vadd.f32 %v780, 1.0
        %v977 = vadd.f32 %v781, 1.0
        %v978 = vadd.f32 %v782, 1.0
        %v979 = vadd.f32 %v783, 1.0
        %v980 = vadd.f32 %v784, 1.0
        %v981 = vadd.f32 %v785, 1.0
        %v982 = vadd.f32 %v786, 1.0
        %v983 = vadd.f32 %v787, 1.0
        %v984 = vadd.f32 %v788, 1.0
        %v985 = vadd.f32 %v789, 1.0
        %v986 = vadd.f32 %v790, 1.0
        %v987 = vadd.f32 %v791, 1.0
        %v988 = vadd.f32 %v792, 1.0
        %v989 = vadd.f32 %v793, 1.0
        %v990 = vadd.f32 %v794, 1.0
        %v991 = vadd.f32 %v795, 1.0
        %v992 = vadd.f32 %v796, 1.0
        %v993 = vadd.f32 %v797, 1.0
        %v994 = vadd.f32 %v798, 1.0
        %v995 = vadd.f32 %v799, 1.0
        %v996 = vadd.f32 %v800, 1.0
        %v997 = vadd.f32 %v801, 1.0
        %v998 = vadd.f32 %v802, 1.0
        %v999 = vadd.f32 %v803, 1.0
        %v1000 = vadd.f32 %v804, 1.0
        %v1001 = vadd.f32 %v805, 1.0
        %v1002 = vadd.f32 %v806, 1.0
        %v1003 = vadd.f32 %v807, 1.0
        %v1004 = vadd.f32 %v808, 1.0
        %v1005 = vadd.f32 %v809, 1.0
        %v1006 = vadd.f32 %v810, 1.0
        %v1007 = vadd.f32 %v811, 1.0
        %v1008 = vadd.f32 %v812, 1.0
        %v1009 = vadd.f32 %v813, 1.0
        %v1010 = vadd.f32 %v814, 1.0
        %v1011 = vadd.f32 %v815, 1.0
        %v1012 = vadd.f32 %v816, 1.0
        %v1013 = vadd.f32 %v817, 1.0
        %v1014 = vadd.f32 %v818, 1.0
        %v1015 = vadd.f32 %v819, 1.0
        %v1016 = vadd.f32 %v820, 1.0
        %v1017 = vadd.f32 %v821, 1.0
        %v1018 = vadd.f32 %v822, 1.0
        %v1019 = vadd.f32 %v823, 1.0
        %v1020 = vadd.f32 %v824, 1.0
        %v1021 = vadd.f32 %v825, 1.0
        %v1022 = vadd.f32 %v826, 1.0
        %v1023 = vadd.f32 %v827, 1.0
        %v1024 = vadd.f32 %v828, 1.0
        %v1025 = vadd.f32 %v829, 1.0
        %v1026 = vadd.f32 %v830, 1.0
        %v1027 = vadd.f32 %v831, 1.0
        %v1028 = vadd.f32 %v832, 1.0
        %v1029 = vadd.f32 %v833, 1.0
        %v1030 = vadd.f32 %v834, 1.0
        %v1031 = vadd.f32 %v835, 1.0
        %v1032 = vadd.f32 %v836, 1.0
        %v1033 = vadd.f32 %v837, 1.0
        %v1034 = vadd.f32 %v838, 1.0
        %v1035 = vadd.f32 %v839, 1.0
        %v1036 = vadd.f32 %v840, 1.0
        %v1037 = vadd.f32 %v841, 1.0
        %v1038 = vadd.f32 %v842, 1.0
        %v1039 = vadd.f32 %v843, 1.0
        %v1040 = vadd.f32 %v844, 1.0
        %v1041 = vadd.f32 %v845, 1.0
        %v1042 = vadd.f32 %v846, 1.0
        %v1043 = vadd.f32 %v847, 1.0
        %v1044 = vadd.f32 %v848, 1.0
        %v1045 = vadd.f32 %v849, 1.0
        %v1046 = vadd.f32 %v850, 1.0
        %v1047 = vadd.f32 %v851, 1.0
        %v1048 = vadd.f32 %v852, 1.0
        %v1049 = vadd.f32 %v853, 1.0
        %v1050 = vadd.f32 %v854, 1.0
        %v1051 = vadd.f32 %v855, 1.0
        %v1052 = vadd.f32 %v856, 1.0
        %v1053 = vadd.f32 %v857, 1.0
        %v1054 = vadd.f32 %v858, 1.0
        %v1055 = vadd.f32 %v859, 1.0
        %v1056 = vadd.f32 %v860, 1.0
        %v1057 = vadd.f32 %v861, 1.0
        %v1058 = vadd.f32 %v862, 1.0
        %v1059 = vadd.f32 %v863, 1.0
        %v1060 = vadd.f32 %v864, 1.0
        %v1061 = vadd.f32 %v865, 1.0
        %v1062 = vadd.f32 %v866, 1.0
        %v1063 = vadd.f32 %v867, 1.0
        %v1064 = vadd.f32 %v868, 1.0
        %v1065 = vadd.f32 %v869, 1.0
        %v1066 = vadd.f32 %v870, 1.0
        %v1067 = vadd.f32 %v871, 1.0
        %v1068 = vadd.f32 %v872, 1.0
        %v1069 = vadd.f32 %v873, 1.0
        %v1070 = vadd.f32 %v874, 1.0
        %v1071 = vadd.f32 %v875, 1.0
        %v1072 = vadd.f32 %v876, 1.0
        %v1073 = vadd.f32 %v877, 1.0
        %v1074 = vadd.f32 %v878, 1.0
        %v1075 = vadd.f32 %v879, 1.0
        %v1076 = vadd.f32 %v880, 1.0
        %v1077 = vadd.f32 %v881, 1.0
        %v1078 = vadd.f32 %v882, 1.0
        %v1079 = vadd.f32 %v883, 1.0
        %v1080 = vadd.f32 %v884, 1.0
        %v1081 = vadd.f32 %v885, 1.0
        %v1082 = vadd.f32 %v886, 1.0
        %v1083 = vadd.f32 %v887, 1.0
        %v1084 = vadd.f32 %v888, 1.0
        %v1085 = vadd.f32 %v889, 1.0
        %v1086 = vadd.f32 %v890, 1.0
        %v1087 = vadd.f32 %v891, 1.0
        %v1088 = vadd.f32 %v892, 1.0
        %v1089 = vadd.f32 %v893, 1.0
        %v1090 = vadd.f32 %v894, 1.0
        %v1091 = vadd.f32 %v895, 1.0
        %v1092 = vadd.f32 %v896, 1.0
        %v1093 = vadd.f32 %v897, 1.0
        %v1094 = vadd.f32 %v898, 1.0
        %v1095 = vadd.f32 %v899, 1.0
        %v1096 = vadd.f32 %v900, 1.0
        %v1097 = vadd.f32 %v901, 1.0
        %v1098 = vadd.f32 %v902, 1.0
        %v1099 = vadd.f32 %v903, 1.0
        %v1100 = vadd.f32 %v904, 1.0
        %v1101 = vadd.f32 %v905, 1.0
        %v1102 = vadd.f32 %v906, 1.0
        %v1103 = vadd.f32 %v907, 1.0
        %v1104 = vadd.f32 %v908, 1.0
        %v1105 = vadd.f32 %v909, 1.0
        %v1106 = vadd.f32 %v910, 1.0
        %v1107 = vadd.f32 %v911, 1.0
        %v1108 = vadd.f32 %v912, 1.0
        %v1109 = vadd.f32 %v913, 1.0
        %v1110 = vadd.f32 %v914, 1.0
        %v1111 = vadd.f32 %v915, 1.0
        %v1112 = vadd.f32 %v916, 1.0
        %v1113 = vadd.f32 %v917, 1.0
        %v1114 = vadd.f32 %v918, 1.0
        %v1115 = vadd.f32 %v919, 1.0
        %v1116 = vadd.f32 %v920, 1.0
        %v1117 = vadd.f32 %v921, 1.0
        %v1118 = vrcp.pop %v922
        %v1119 = vrcp.pop %v923
        %v1120 = vrcp.pop %v924
        %v1121 = vrcp.pop %v925
        %v1122 = vrcp.pop %v926
        %v1123 = vrcp.pop %v927
        %v1124 = vrcp.pop %v928
        %v1125 = vrcp.pop %v929
        %v1126 = vrcp.pop %v930
        %v1127 = vrcp.pop %v931
        %v1128 = vrcp.pop %v932
        %v1129 = vrcp.pop %v933
        %v1130 = vrcp.pop %v934
        %v1131 = vrcp.pop %v935
        %v1132 = vrcp.pop %v936
        %v1133 = vrcp.pop %v937
        %v1134 = vrcp.pop %v938
        %v1135 = vrcp.pop %v939
        %v1136 = vrcp.pop %v940
        %v1137 = vrcp.pop %v941
        %v1138 = vrcp.pop %v942
        %v1139 = vrcp.pop %v943
        %v1140 = vrcp.pop %v944
        %v1141 = vrcp.pop %v945
        %v1142 = vrcp.pop %v946
        %v1143 = vrcp.pop %v947
        %v1144 = vrcp.pop %v948
        %v1145 = vrcp.pop %v949
        %v1146 = vrcp.pop %v950
        %v1147 = vrcp.pop %v951
        %v1148 = vrcp.pop %v952
        %v1149 = vrcp.pop %v953
        %v1150 = vrcp.pop %v954
        %v1151 = vrcp.pop %v955
        %v1152 = vrcp.pop %v956
        %v1153 = vrcp.pop %v957
        %v1154 = vrcp.pop %v958
        %v1155 = vrcp.pop %v959
        %v1156 = vrcp.pop %v960
        %v1157 = vrcp.pop %v961
        %v1158 = vrcp.pop %v962
        %v1159 = vrcp.pop %v963
        %v1160 = vrcp.pop %v964
        %v1161 = vrcp.pop %v965
        %v1162 = vrcp.pop %v966
        %v1163 = vrcp.pop %v967
        %v1164 = vrcp.pop %v968
        %v1165 = vrcp.pop %v969
        %v1166 = vrcp.pop %v970
        %v1167 = vrcp.pop %v971
        %v1168 = vrcp.pop %v972
        %v1169 = vrcp.pop %v973
        %v1170 = vrcp.pop %v974
        %v1171 = vrcp.pop %v975
        %v1172 = vrcp.pop %v976
        %v1173 = vrcp.pop %v977
        %v1174 = vrcp.pop %v978
        %v1175 = vrcp.pop %v979
        %v1176 = vrcp.pop %v980
        %v1177 = vrcp.pop %v981
        %v1178 = vrcp.pop %v982
        %v1179 = vrcp.pop %v983
        %v1180 = vrcp.pop %v984
        %v1181 = vrcp.pop %v985
        %v1182 = vrcp.pop %v986
        %v1183 = vrcp.pop %v987
        %v1184 = vrcp.pop %v988
        %v1185 = vrcp.pop %v989
        %v1186 = vrcp.pop %v990
        %v1187 = vrcp.pop %v991
        %v1188 = vrcp.pop %v992
        %v1189 = vrcp.pop %v993
        %v1190 = vrcp.pop %v994
        %v1191 = vrcp.pop %v995
        %v1192 = vrcp.pop %v996
        %v1193 = vrcp.pop %v997
        %v1194 = vrcp.pop %v998
        %v1195 = vrcp.pop %v999
        %v1196 = vrcp.pop %v1000
        %v1197 = vrcp.pop %v1001
        %v1198 = vrcp.pop %v1002
        %v1199 = vrcp.pop %v1003
        %v1200 = vrcp.pop %v1004
        %v1201 = vrcp.pop %v1005
        %v1202 = vrcp.pop %v1006
        %v1203 = vrcp.pop %v1007
        %v1204 = vrcp.pop %v1008
        %v1205 = vrcp.pop %v1009
        %v1206 = vrcp.pop %v1010
        %v1207 = vrcp.pop %v1011
        %v1208 = vrcp.pop %v1012
        %v1209 = vrcp.pop %v1013
        %v1210 = vrcp.pop %v1014
        %v1211 = vrcp.pop %v1015
        %v1212 = vrcp.pop %v1016
        %v1213 = vrcp.pop %v1017
        %v1214 = vrcp.pop %v1018
        %v1215 = vrcp.pop %v1019
        %v1216 = vrcp.pop %v1020
        %v1217 = vrcp.pop %v1021
        %v1218 = vrcp.pop %v1022
        %v1219 = vrcp.pop %v1023
        %v1220 = vrcp.pop %v1024
        %v1221 = vrcp.pop %v1025
        %v1222 = vrcp.pop %v1026
        %v1223 = vrcp.pop %v1027
        %v1224 = vrcp.pop %v1028
        %v1225 = vrcp.pop %v1029
        %v1226 = vrcp.pop %v1030
        %v1227 = vrcp.pop %v1031
        %v1228 = vrcp.pop %v1032
        %v1229 = vrcp.pop %v1033
        %v1230 = vrcp.pop %v1034
        %v1231 = vrcp.pop %v1035
        %v1232 = vrcp.pop %v1036
        %v1233 = vrcp.pop %v1037
        %v1234 = vrcp.pop %v1038
        %v1235 = vrcp.pop %v1039
        %v1236 = vrcp.pop %v1040
        %v1237 = vrcp.pop %v1041
        %v1238 = vrcp.pop %v1042
        %v1239 = vrcp.pop %v1043
        %v1240 = vrcp.pop %v1044
        %v1241 = vrcp.pop %v1045
        %v1242 = vrcp.pop %v1046
        %v1243 = vrcp.pop %v1047
        %v1244 = vrcp.pop %v1048
        %v1245 = vrcp.pop %v1049
        %v1246 = vrcp.pop %v1050
        %v1247 = vrcp.pop %v1051
        %v1248 = vrcp.pop %v1052
        %v1249 = vrcp.pop %v1053
        %v1250 = vrcp.pop %v1054
        %v1251 = vrcp.pop %v1055
        %v1252 = vrcp.pop %v1056
        %v1253 = vrcp.pop %v1057
        %v1254 = vrcp.pop %v1058
        %v1255 = vrcp.pop %v1059
        %v1256 = vrcp.pop %v1060
        %v1257 = vrcp.pop %v1061
        %v1258 = vrcp.pop %v1062
        %v1259 = vrcp.pop %v1063
        %v1260 = vrcp.pop %v1064
        %v1261 = vrcp.pop %v1065
        %v1262 = vrcp.pop %v1066
        %v1263 = vrcp.pop %v1067
        %v1264 = vrcp.pop %v1068
        %v1265 = vrcp.pop %v1069
        %v1266 = vrcp.pop %v1070
        %v1267 = vrcp.pop %v1071
        %v1268 = vrcp.pop %v1072
        %v1269 = vrcp.pop %v1073
        %v1270 = vrcp.pop %v1074
        %v1271 = vrcp.pop %v1075
        %v1272 = vrcp.pop %v1076
        %v1273 = vrcp.pop %v1077
        %v1274 = vrcp.pop %v1078
        %v1275 = vrcp.pop %v1079
        %v1276 = vrcp.pop %v1080
        %v1277 = vrcp.pop %v1081
        %v1278 = vrcp.pop %v1082
        %v1279 = vrcp.pop %v1083
        %v1280 = vrcp.pop %v1084
        %v1281 = vrcp.pop %v1085
        %v1282 = vrcp.pop %v1086
        %v1283 = vrcp.pop %v1087
        %v1284 = vrcp.pop %v1088
        %v1285 = vrcp.pop %v1089
        %v1286 = vrcp.pop %v1090
        %v1287 = vrcp.pop %v1091
        %v1288 = vrcp.pop %v1092
        %v1289 = vrcp.pop %v1093
        %v1290 = vrcp.pop %v1094
        %v1291 = vrcp.pop %v1095
        %v1292 = vrcp.pop %v1096
        %v1293 = vrcp.pop %v1097
        %v1294 = vrcp.pop %v1098
        %v1295 = vrcp.pop %v1099
        %v1296 = vrcp.pop %v1100
        %v1297 = vrcp.pop %v1101
        %v1298 = vrcp.pop %v1102
        %v1299 = vrcp.pop %v1103
        %v1300 = vrcp.pop %v1104
        %v1301 = vrcp.pop %v1105
        %v1302 = vrcp.pop %v1106
        %v1303 = vrcp.pop %v1107
        %v1304 = vrcp.pop %v1108
        %v1305 = vrcp.pop %v1109
        %v1306 = vrcp.pop %v1110
        %v1307 = vrcp.pop %v1111
        %v1308 = vrcp.pop %v1112
        %v1309 = vrcp.pop %v1113
        %v1310 = vrcp.pop %v1114
        %v1311 = vrcp.pop %v1115
        %v1312 = vrcp.pop %v1116
        %v1313 = vrcp.pop %v1117
        %v1314 = vmul.f32 %v1118, 1.0614054
        %v1315 = vmul.f32 %v1119, 1.0614054
        %v1316 = vmul.f32 %v1120, 1.0614054
        %v1317 = vmul.f32 %v1121, 1.0614054
        %v1318 = vmul.f32 %v1122, 1.0614054
        %v1319 = vmul.f32 %v1123, 1.0614054
        %v1320 = vmul.f32 %v1124, 1.0614054
        %v1321 = vmul.f32 %v1125, 1.0614054
        %v1322 = vmul.f32 %v1126, 1.0614054
        %v1323 = vmul.f32 %v1127, 1.0614054
        %v1324 = vmul.f32 %v1128, 1.0614054
        %v1325 = vmul.f32 %v1129, 1.0614054
        %v1326 = vmul.f32 %v1130, 1.0614054
        %v1327 = vmul.f32 %v1131, 1.0614054
        %v1328 = vmul.f32 %v1132, 1.0614054
        %v1329 = vmul.f32 %v1133, 1.0614054
        %v1330 = vmul.f32 %v1134, 1.0614054
        %v1331 = vmul.f32 %v1135, 1.0614054
        %v1332 = vmul.f32 %v1136, 1.0614054
        %v1333 = vmul.f32 %v1137, 1.0614054
        %v1334 = vmul.f32 %v1138, 1.0614054
        %v1335 = vmul.f32 %v1139, 1.0614054
        %v1336 = vmul.f32 %v1140, 1.0614054
        %v1337 = vmul.f32 %v1141, 1.0614054
        %v1338 = vmul.f32 %v1142, 1.0614054
        %v1339 = vmul.f32 %v1143, 1.0614054
        %v1340 = vmul.f32 %v1144, 1.0614054
        %v1341 = vmul.f32 %v1145, 1.0614054
        %v1342 = vmul.f32 %v1146, 1.0614054
        %v1343 = vmul.f32 %v1147, 1.0614054
        %v1344 = vmul.f32 %v1148, 1.0614054
        %v1345 = vmul.f32 %v1149, 1.0614054
        %v1346 = vmul.f32 %v1150, 1.0614054
        %v1347 = vmul.f32 %v1151, 1.0614054
        %v1348 = vmul.f32 %v1152, 1.0614054
        %v1349 = vmul.f32 %v1153, 1.0614054
        %v1350 = vmul.f32 %v1154, 1.0614054
        %v1351 = vmul.f32 %v1155, 1.0614054
        %v1352 = vmul.f32 %v1156, 1.0614054
        %v1353 = vmul.f32 %v1157, 1.0614054
        %v1354 = vmul.f32 %v1158, 1.0614054
        %v1355 = vmul.f32 %v1159, 1.0614054
        %v1356 = vmul.f32 %v1160, 1.0614054
        %v1357 = vmul.f32 %v1161, 1.0614054
        %v1358 = vmul.f32 %v1162, 1.0614054
        %v1359 = vmul.f32 %v1163, 1.0614054
        %v1360 = vmul.f32 %v1164, 1.0614054
        %v1361 = vmul.f32 %v1165, 1.0614054
        %v1362 = vmul.f32 %v1166, 1.0614054
        %v1363 = vmul.f32 %v1167, 1.0614054
        %v1364 = vmul.f32 %v1168, 1.0614054
        %v1365 = vmul.f32 %v1169, 1.0614054
        %v1366 = vmul.f32 %v1170, 1.0614054
        %v1367 = vmul.f32 %v1171, 1.0614054
        %v1368 = vmul.f32 %v1172, 1.0614054
        %v1369 = vmul.f32 %v1173, 1.0614054
        %v1370 = vmul.f32 %v1174, 1.0614054
        %v1371 = vmul.f32 %v1175, 1.0614054
        %v1372 = vmul.f32 %v1176, 1.0614054
        %v1373 = vmul.f32 %v1177, 1.0614054
        %v1374 = vmul.f32 %v1178, 1.0614054
        %v1375 = vmul.f32 %v1179, 1.0614054
        %v1376 = vmul.f32 %v1180, 1.0614054
        %v1377 = vmul.f32 %v1181, 1.0614054
        %v1378 = vmul.f32 %v1182, 1.0614054
        %v1379 = vmul.f32 %v1183, 1.0614054
        %v1380 = vmul.f32 %v1184, 1.0614054
        %v1381 = vmul.f32 %v1185, 1.0614054
        %v1382 = vmul.f32 %v1186, 1.0614054
        %v1383 = vmul.f32 %v1187, 1.0614054
        %v1384 = vmul.f32 %v1188, 1.0614054
        %v1385 = vmul.f32 %v1189, 1.0614054
        %v1386 = vmul.f32 %v1190, 1.0614054
        %v1387 = vmul.f32 %v1191, 1.0614054
        %v1388 = vmul.f32 %v1192, 1.0614054
        %v1389 = vmul.f32 %v1193, 1.0614054
        %v1390 = vmul.f32 %v1194, 1.0614054
        %v1391 = vmul.f32 %v1195, 1.0614054
        %v1392 = vmul.f32 %v1196, 1.0614054
        %v1393 = vmul.f32 %v1197, 1.0614054
        %v1394 = vmul.f32 %v1198, 1.0614054
        %v1395 = vmul.f32 %v1199, 1.0614054
        %v1396 = vmul.f32 %v1200, 1.0614054
        %v1397 = vmul.f32 %v1201, 1.0614054
        %v1398 = vmul.f32 %v1202, 1.0614054
        %v1399 = vmul.f32 %v1203, 1.0614054
        %v1400 = vmul.f32 %v1204, 1.0614054
        %v1401 = vmul.f32 %v1205, 1.0614054
        %v1402 = vmul.f32 %v1206, 1.0614054
        %v1403 = vmul.f32 %v1207, 1.0614054
        %v1404 = vmul.f32 %v1208, 1.0614054
        %v1405 = vmul.f32 %v1209, 1.0614054
        %v1406 = vmul.f32 %v1210, 1.0614054
        %v1407 = vmul.f32 %v1211, 1.0614054
        %v1408 = vmul.f32 %v1212, 1.0614054
        %v1409 = vmul.f32 %v1213, 1.0614054
        %v1410 = vmul.f32 %v1214, 1.0614054
        %v1411 = vmul.f32 %v1215, 1.0614054
        %v1412 = vmul.f32 %v1216, 1.0614054
        %v1413 = vmul.f32 %v1217, 1.0614054
        %v1414 = vmul.f32 %v1218, 1.0614054
        %v1415 = vmul.f32 %v1219, 1.0614054
        %v1416 = vmul.f32 %v1220, 1.0614054
        %v1417 = vmul.f32 %v1221, 1.0614054
        %v1418 = vmul.f32 %v1222, 1.0614054
        %v1419 = vmul.f32 %v1223, 1.0614054
        %v1420 = vmul.f32 %v1224, 1.0614054
        %v1421 = vmul.f32 %v1225, 1.0614054
        %v1422 = vmul.f32 %v1226, 1.0614054
        %v1423 = vmul.f32 %v1227, 1.0614054
        %v1424 = vmul.f32 %v1228, 1.0614054
        %v1425 = vmul.f32 %v1229, 1.0614054
        %v1426 = vmul.f32 %v1230, 1.0614054
        %v1427 = vmul.f32 %v1231, 1.0614054
        %v1428 = vmul.f32 %v1232, 1.0614054
        %v1429 = vmul.f32 %v1233, 1.0614054
        %v1430 = vmul.f32 %v1234, 1.0614054
        %v1431 = vmul.f32 %v1235, 1.0614054
        %v1432 = vmul.f32 %v1236, 1.0614054
        %v1433 = vmul.f32 %v1237, 1.0614054
        %v1434 = vmul.f32 %v1238, 1.0614054
        %v1435 = vmul.f32 %v1239, 1.0614054
        %v1436 = vmul.f32 %v1240, 1.0614054
        %v1437 = vmul.f32 %v1241, 1.0614054
        %v1438 = vmul.f32 %v1242, 1.0614054
        %v1439 = vmul.f32 %v1243, 1.0614054
        %v1440 = vmul.f32 %v1244, 1.0614054
        %v1441 = vmul.f32 %v1245, 1.0614054
        %v1442 = vmul.f32 %v1246, 1.0614054
        %v1443 = vmul.f32 %v1247, 1.0614054
        %v1444 = vmul.f32 %v1248, 1.0614054
        %v1445 = vmul.f32 %v1249, 1.0614054
        %v1446 = vmul.f32 %v1250, 1.0614054
        %v1447 = vmul.f32 %v1251, 1.0614054
        %v1448 = vmul.f32 %v1252, 1.0614054
        %v1449 = vmul.f32 %v1253, 1.0614054
        %v1450 = vmul.f32 %v1254, 1.0614054
        %v1451 = vmul.f32 %v1255, 1.0614054
        %v1452 = vmul.f32 %v1256, 1.0614054
        %v1453 = vmul.f32 %v1257, 1.0614054
        %v1454 = vmul.f32 %v1258, 1.0614054
        %v1455 = vmul.f32 %v1259, 1.0614054
        %v1456 = vmul.f32 %v1260, 1.0614054
        %v1457 = vmul.f32 %v1261, 1.0614054
        %v1458 = vmul.f32 %v1262, 1.0614054
        %v1459 = vmul.f32 %v1263, 1.0614054
        %v1460 = vmul.f32 %v1264, 1.0614054
        %v1461 = vmul.f32 %v1265, 1.0614054
        %v1462 = vmul.f32 %v1266, 1.0614054
        %v1463 = vmul.f32 %v1267, 1.0614054
        %v1464 = vmul.f32 %v1268, 1.0614054
        %v1465 = vmul.f32 %v1269, 1.0614054
        %v1466 = vmul.f32 %v1270, 1.0614054
        %v1467 = vmul.f32 %v1271, 1.0614054
        %v1468 = vmul.f32 %v1272, 1.0614054
        %v1469 = vmul.f32 %v1273, 1.0614054
        %v1470 = vmul.f32 %v1274, 1.0614054
        %v1471 = vmul.f32 %v1275, 1.0614054
        %v1472 = vmul.f32 %v1276, 1.0614054
        %v1473 = vmul.f32 %v1277, 1.0614054
        %v1474 = vmul.f32 %v1278, 1.0614054
        %v1475 = vmul.f32 %v1279, 1.0614054
        %v1476 = vmul.f32 %v1280, 1.0614054
        %v1477 = vmul.f32 %v1281, 1.0614054
        %v1478 = vmul.f32 %v1282, 1.0614054
        %v1479 = vmul.f32 %v1283, 1.0614054
        %v1480 = vmul.f32 %v1284, 1.0614054
        %v1481 = vmul.f32 %v1285, 1.0614054
        %v1482 = vmul.f32 %v1286, 1.0614054
        %v1483 = vmul.f32 %v1287, 1.0614054
        %v1484 = vmul.f32 %v1288, 1.0614054
        %v1485 = vmul.f32 %v1289, 1.0614054
        %v1486 = vmul.f32 %v1290, 1.0614054
        %v1487 = vmul.f32 %v1291, 1.0614054
        %v1488 = vmul.f32 %v1292, 1.0614054
        %v1489 = vmul.f32 %v1293, 1.0614054
        %v1490 = vmul.f32 %v1294, 1.0614054
        %v1491 = vmul.f32 %v1295, 1.0614054
        %v1492 = vmul.f32 %v1296, 1.0614054
        %v1493 = vmul.f32 %v1297, 1.0614054
        %v1494 = vmul.f32 %v1298, 1.0614054
        %v1495 = vmul.f32 %v1299, 1.0614054
        %v1496 = vmul.f32 %v1300, 1.0614054
        %v1497 = vmul.f32 %v1301, 1.0614054
        %v1498 = vmul.f32 %v1302, 1.0614054
        %v1499 = vmul.f32 %v1303, 1.0614054
        %v1500 = vmul.f32 %v1304, 1.0614054
        %v1501 = vmul.f32 %v1305, 1.0614054
        %v1502 = vmul.f32 %v1306, 1.0614054
        %v1503 = vmul.f32 %v1307, 1.0614054
        %v1504 = vmul.f32 %v1308, 1.0614054
        %v1505 = vmul.f32 %v1309, 1.0614054
        %v1506 = vmul.f32 %v1310, 1.0614054
        %v1507 = vmul.f32 %v1311, 1.0614054
        %v1508 = vmul.f32 %v1312, 1.0614054
        %v1509 = vmul.f32 %v1313, 1.0614054
        %v1510 = vadd.f32 %v1314, -1.4531521
        %v1511 = vadd.f32 %v1315, -1.4531521
        %v1512 = vadd.f32 %v1316, -1.4531521
        %v1513 = vadd.f32 %v1317, -1.4531521
        %v1514 = vadd.f32 %v1318, -1.4531521
        %v1515 = vadd.f32 %v1319, -1.4531521
        %v1516 = vadd.f32 %v1320, -1.4531521
        %v1517 = vadd.f32 %v1321, -1.4531521
        %v1518 = vadd.f32 %v1322, -1.4531521
        %v1519 = vadd.f32 %v1323, -1.4531521
        %v1520 = vadd.f32 %v1324, -1.4531521
        %v1521 = vadd.f32 %v1325, -1.4531521
        %v1522 = vadd.f32 %v1326, -1.4531521
        %v1523 = vadd.f32 %v1327, -1.4531521
        %v1524 = vadd.f32 %v1328, -1.4531521
        %v1525 = vadd.f32 %v1329, -1.4531521
        %v1526 = vadd.f32 %v1330, -1.4531521
        %v1527 = vadd.f32 %v1331, -1.4531521
        %v1528 = vadd.f32 %v1332, -1.4531521
        %v1529 = vadd.f32 %v1333, -1.4531521
        %v1530 = vadd.f32 %v1334, -1.4531521
        %v1531 = vadd.f32 %v1335, -1.4531521
        %v1532 = vadd.f32 %v1336, -1.4531521
        %v1533 = vadd.f32 %v1337, -1.4531521
        %v1534 = vadd.f32 %v1338, -1.4531521
        %v1535 = vadd.f32 %v1339, -1.4531521
        %v1536 = vadd.f32 %v1340, -1.4531521
        %v1537 = vadd.f32 %v1341, -1.4531521
        %v1538 = vadd.f32 %v1342, -1.4531521
        %v1539 = vadd.f32 %v1343, -1.4531521
        %v1540 = vadd.f32 %v1344, -1.4531521
        %v1541 = vadd.f32 %v1345, -1.4531521
        %v1542 = vadd.f32 %v1346, -1.4531521
        %v1543 = vadd.f32 %v1347, -1.4531521
        %v1544 = vadd.f32 %v1348, -1.4531521
        %v1545 = vadd.f32 %v1349, -1.4531521
        %v1546 = vadd.f32 %v1350, -1.4531521
        %v1547 = vadd.f32 %v1351, -1.4531521
        %v1548 = vadd.f32 %v1352, -1.4531521
        %v1549 = vadd.f32 %v1353, -1.4531521
        %v1550 = vadd.f32 %v1354, -1.4531521
        %v1551 = vadd.f32 %v1355, -1.4531521
        %v1552 = vadd.f32 %v1356, -1.4531521
        %v1553 = vadd.f32 %v1357, -1.4531521
        %v1554 = vadd.f32 %v1358, -1.4531521
        %v1555 = vadd.f32 %v1359, -1.4531521
        %v1556 = vadd.f32 %v1360, -1.4531521
        %v1557 = vadd.f32 %v1361, -1.4531521
        %v1558 = vadd.f32 %v1362, -1.4531521
        %v1559 = vadd.f32 %v1363, -1.4531521
        %v1560 = vadd.f32 %v1364, -1.4531521
        %v1561 = vadd.f32 %v1365, -1.4531521
        %v1562 = vadd.f32 %v1366, -1.4531521
        %v1563 = vadd.f32 %v1367, -1.4531521
        %v1564 = vadd.f32 %v1368, -1.4531521
        %v1565 = vadd.f32 %v1369, -1.4531521
        %v1566 = vadd.f32 %v1370, -1.4531521
        %v1567 = vadd.f32 %v1371, -1.4531521
        %v1568 = vadd.f32 %v1372, -1.4531521
        %v1569 = vadd.f32 %v1373, -1.4531521
        %v1570 = vadd.f32 %v1374, -1.4531521
        %v1571 = vadd.f32 %v1375, -1.4531521
        %v1572 = vadd.f32 %v1376, -1.4531521
        %v1573 = vadd.f32 %v1377, -1.4531521
        %v1574 = vadd.f32 %v1378, -1.4531521
        %v1575 = vadd.f32 %v1379, -1.4531521
        %v1576 = vadd.f32 %v1380, -1.4531521
        %v1577 = vadd.f32 %v1381, -1.4531521
        %v1578 = vadd.f32 %v1382, -1.4531521
        %v1579 = vadd.f32 %v1383, -1.4531521
        %v1580 = vadd.f32 %v1384, -1.4531521
        %v1581 = vadd.f32 %v1385, -1.4531521
        %v1582 = vadd.f32 %v1386, -1.4531521
        %v1583 = vadd.f32 %v1387, -1.4531521
        %v1584 = vadd.f32 %v1388, -1.4531521
        %v1585 = vadd.f32 %v1389, -1.4531521
        %v1586 = vadd.f32 %v1390, -1.4531521
        %v1587 = vadd.f32 %v1391, -1.4531521
        %v1588 = vadd.f32 %v1392, -1.4531521
        %v1589 = vadd.f32 %v1393, -1.4531521
        %v1590 = vadd.f32 %v1394, -1.4531521
        %v1591 = vadd.f32 %v1395, -1.4531521
        %v1592 = vadd.f32 %v1396, -1.4531521
        %v1593 = vadd.f32 %v1397, -1.4531521
        %v1594 = vadd.f32 %v1398, -1.4531521
        %v1595 = vadd.f32 %v1399, -1.4531521
        %v1596 = vadd.f32 %v1400, -1.4531521
        %v1597 = vadd.f32 %v1401, -1.4531521
        %v1598 = vadd.f32 %v1402, -1.4531521
        %v1599 = vadd.f32 %v1403, -1.4531521
        %v1600 = vadd.f32 %v1404, -1.4531521
        %v1601 = vadd.f32 %v1405, -1.4531521
        %v1602 = vadd.f32 %v1406, -1.4531521
        %v1603 = vadd.f32 %v1407, -1.4531521
        %v1604 = vadd.f32 %v1408, -1.4531521
        %v1605 = vadd.f32 %v1409, -1.4531521
        %v1606 = vadd.f32 %v1410, -1.4531521
        %v1607 = vadd.f32 %v1411, -1.4531521
        %v1608 = vadd.f32 %v1412, -1.4531521
        %v1609 = vadd.f32 %v1413, -1.4531521
        %v1610 = vadd.f32 %v1414, -1.4531521
        %v1611 = vadd.f32 %v1415, -1.4531521
        %v1612 = vadd.f32 %v1416, -1.4531521
        %v1613 = vadd.f32 %v1417, -1.4531521
        %v1614 = vadd.f32 %v1418, -1.4531521
        %v1615 = vadd.f32 %v1419, -1.4531521
        %v1616 = vadd.f32 %v1420, -1.4531521
        %v1617 = vadd.f32 %v1421, -1.4531521
        %v1618 = vadd.f32 %v1422, -1.4531521
        %v1619 = vadd.f32 %v1423, -1.4531521
        %v1620 = vadd.f32 %v1424, -1.4531521
        %v1621 = vadd.f32 %v1425, -1.4531521
        %v1622 = vadd.f32 %v1426, -1.4531521
        %v1623 = vadd.f32 %v1427, -1.4531521
        %v1624 = vadd.f32 %v1428, -1.4531521
        %v1625 = vadd.f32 %v1429, -1.4531521
        %v1626 = vadd.f32 %v1430, -1.4531521
        %v1627 = vadd.f32 %v1431, -1.4531521
        %v1628 = vadd.f32 %v1432, -1.4531521
        %v1629 = vadd.f32 %v1433, -1.4531521
        %v1630 = vadd.f32 %v1434, -1.4531521
        %v1631 = vadd.f32 %v1435, -1.4531521
        %v1632 = vadd.f32 %v1436, -1.4531521
        %v1633 = vadd.f32 %v1437, -1.4531521
        %v1634 = vadd.f32 %v1438, -1.4531521
        %v1635 = vadd.f32 %v1439, -1.4531521
        %v1636 = vadd.f32 %v1440, -1.4531521
        %v1637 = vadd.f32 %v1441, -1.4531521
        %v1638 = vadd.f32 %v1442, -1.4531521
        %v1639 = vadd.f32 %v1443, -1.4531521
        %v1640 = vadd.f32 %v1444, -1.4531521
        %v1641 = vadd.f32 %v1445, -1.4531521
        %v1642 = vadd.f32 %v1446, -1.4531521
        %v1643 = vadd.f32 %v1447, -1.4531521
        %v1644 = vadd.f32 %v1448, -1.4531521
        %v1645 = vadd.f32 %v1449, -1.4531521
        %v1646 = vadd.f32 %v1450, -1.4531521
        %v1647 = vadd.f32 %v1451, -1.4531521
        %v1648 = vadd.f32 %v1452, -1.4531521
        %v1649 = vadd.f32 %v1453, -1.4531521
        %v1650 = vadd.f32 %v1454, -1.4531521
        %v1651 = vadd.f32 %v1455, -1.4531521
        %v1652 = vadd.f32 %v1456, -1.4531521
        %v1653 = vadd.f32 %v1457, -1.4531521
        %v1654 = vadd.f32 %v1458, -1.4531521
        %v1655 = vadd.f32 %v1459, -1.4531521
        %v1656 = vadd.f32 %v1460, -1.4531521
        %v1657 = vadd.f32 %v1461, -1.4531521
        %v1658 = vadd.f32 %v1462, -1.4531521
        %v1659 = vadd.f32 %v1463, -1.4531521
        %v1660 = vadd.f32 %v1464, -1.4531521
        %v1661 = vadd.f32 %v1465, -1.4531521
        %v1662 = vadd.f32 %v1466, -1.4531521
        %v1663 = vadd.f32 %v1467, -1.4531521
        %v1664 = vadd.f32 %v1468, -1.4531521
        %v1665 = vadd.f32 %v1469, -1.4531521
        %v1666 = vadd.f32 %v1470, -1.4531521
        %v1667 = vadd.f32 %v1471, -1.4531521
        %v1668 = vadd.f32 %v1472, -1.4531521
        %v1669 = vadd.f32 %v1473, -1.4531521
        %v1670 = vadd.f32 %v1474, -1.4531521
        %v1671 = vadd.f32 %v1475, -1.4531521
        %v1672 = vadd.f32 %v1476, -1.4531521
        %v1673 = vadd.f32 %v1477, -1.4531521
        %v1674 = vadd.f32 %v1478, -1.4531521
        %v1675 = vadd.f32 %v1479, -1.4531521
        %v1676 = vadd.f32 %v1480, -1.4531521
        %v1677 = vadd.f32 %v1481, -1.4531521
        %v1678 = vadd.f32 %v1482, -1.4531521
        %v1679 = vadd.f32 %v1483, -1.4531521
        %v1680 = vadd.f32 %v1484, -1.4531521
        %v1681 = vadd.f32 %v1485, -1.4531521
        %v1682 = vadd.f32 %v1486, -1.4531521
        %v1683 = vadd.f32 %v1487, -1.4531521
        %v1684 = vadd.f32 %v1488, -1.4531521
        %v1685 = vadd.f32 %v1489, -1.4531521
        %v1686 = vadd.f32 %v1490, -1.4531521
        %v1687 = vadd.f32 %v1491, -1.4531521
        %v1688 = vadd.f32 %v1492, -1.4531521
        %v1689 = vadd.f32 %v1493, -1.4531521
        %v1690 = vadd.f32 %v1494, -1.4531521
        %v1691 = vadd.f32 %v1495, -1.4531521
        %v1692 = vadd.f32 %v1496, -1.4531521
        %v1693 = vadd.f32 %v1497, -1.4531521
        %v1694 = vadd.f32 %v1498, -1.4531521
        %v1695 = vadd.f32 %v1499, -1.4531521
        %v1696 = vadd.f32 %v1500, -1.4531521
        %v1697 = vadd.f32 %v1501, -1.4531521
        %v1698 = vadd.f32 %v1502, -1.4531521
        %v1699 = vadd.f32 %v1503, -1.4531521
        %v1700 = vadd.f32 %v1504, -1.4531521
        %v1701 = vadd.f32 %v1505, -1.4531521
        %v1702 = vadd.f32 %v1506, -1.4531521
        %v1703 = vadd.f32 %v1507, -1.4531521
        %v1704 = vadd.f32 %v1508, -1.4531521
        %v1705 = vadd.f32 %v1509, -1.4531521
        %v1706 = vmul.f32 %v1510, %v1118
        %v1707 = vmul.f32 %v1511, %v1119
        %v1708 = vmul.f32 %v1512, %v1120
        %v1709 = vmul.f32 %v1513, %v1121
        %v1710 = vmul.f32 %v1514, %v1122
        %v1711 = vmul.f32 %v1515, %v1123
        %v1712 = vmul.f32 %v1516, %v1124
        %v1713 = vmul.f32 %v1517, %v1125
        %v1714 = vmul.f32 %v1518, %v1126
        %v1715 = vmul.f32 %v1519, %v1127
        %v1716 = vmul.f32 %v1520, %v1128
        %v1717 = vmul.f32 %v1521, %v1129
        %v1718 = vmul.f32 %v1522, %v1130
        %v1719 = vmul.f32 %v1523, %v1131
        %v1720 = vmul.f32 %v1524, %v1132
        %v1721 = vmul.f32 %v1525, %v1133
        %v1722 = vmul.f32 %v1526, %v1134
        %v1723 = vmul.f32 %v1527, %v1135
        %v1724 = vmul.f32 %v1528, %v1136
        %v1725 = vmul.f32 %v1529, %v1137
        %v1726 = vmul.f32 %v1530, %v1138
        %v1727 = vmul.f32 %v1531, %v1139
        %v1728 = vmul.f32 %v1532, %v1140
        %v1729 = vmul.f32 %v1533, %v1141
        %v1730 = vmul.f32 %v1534, %v1142
        %v1731 = vmul.f32 %v1535, %v1143
        %v1732 = vmul.f32 %v1536, %v1144
        %v1733 = vmul.f32 %v1537, %v1145
        %v1734 = vmul.f32 %v1538, %v1146
        %v1735 = vmul.f32 %v1539, %v1147
        %v1736 = vmul.f32 %v1540, %v1148
        %v1737 = vmul.f32 %v1541, %v1149
        %v1738 = vmul.f32 %v1542, %v1150
        %v1739 = vmul.f32 %v1543, %v1151
        %v1740 = vmul.f32 %v1544, %v1152
        %v1741 = vmul.f32 %v1545, %v1153
        %v1742 = vmul.f32 %v1546, %v1154
        %v1743 = vmul.f32 %v1547, %v1155
        %v1744 = vmul.f32 %v1548, %v1156
        %v1745 = vmul.f32 %v1549, %v1157
        %v1746 = vmul.f32 %v1550, %v1158
        %v1747 = vmul.f32 %v1551, %v1159
        %v1748 = vmul.f32 %v1552, %v1160
        %v1749 = vmul.f32 %v1553, %v1161
        %v1750 = vmul.f32 %v1554, %v1162
        %v1751 = vmul.f32 %v1555, %v1163
        %v1752 = vmul.f32 %v1556, %v1164
        %v1753 = vmul.f32 %v1557, %v1165
        %v1754 = vmul.f32 %v1558, %v1166
        %v1755 = vmul.f32 %v1559, %v1167
        %v1756 = vmul.f32 %v1560, %v1168
        %v1757 = vmul.f32 %v1561, %v1169
        %v1758 = vmul.f32 %v1562, %v1170
        %v1759 = vmul.f32 %v1563, %v1171
        %v1760 = vmul.f32 %v1564, %v1172
        %v1761 = vmul.f32 %v1565, %v1173
        %v1762 = vmul.f32 %v1566, %v1174
        %v1763 = vmul.f32 %v1567, %v1175
        %v1764 = vmul.f32 %v1568, %v1176
        %v1765 = vmul.f32 %v1569, %v1177
        %v1766 = vmul.f32 %v1570, %v1178
        %v1767 = vmul.f32 %v1571, %v1179
        %v1768 = vmul.f32 %v1572, %v1180
        %v1769 = vmul.f32 %v1573, %v1181
        %v1770 = vmul.f32 %v1574, %v1182
        %v1771 = vmul.f32 %v1575, %v1183
        %v1772 = vmul.f32 %v1576, %v1184
        %v1773 = vmul.f32 %v1577, %v1185
        %v1774 = vmul.f32 %v1578, %v1186
        %v1775 = vmul.f32 %v1579, %v1187
        %v1776 = vmul.f32 %v1580, %v1188
        %v1777 = vmul.f32 %v1581, %v1189
        %v1778 = vmul.f32 %v1582, %v1190
        %v1779 = vmul.f32 %v1583, %v1191
        %v1780 = vmul.f32 %v1584, %v1192
        %v1781 = vmul.f32 %v1585, %v1193
        %v1782 = vmul.f32 %v1586, %v1194
        %v1783 = vmul.f32 %v1587, %v1195
        %v1784 = vmul.f32 %v1588, %v1196
        %v1785 = vmul.f32 %v1589, %v1197
        %v1786 = vmul.f32 %v1590, %v1198
        %v1787 = vmul.f32 %v1591, %v1199
        %v1788 = vmul.f32 %v1592, %v1200
        %v1789 = vmul.f32 %v1593, %v1201
        %v1790 = vmul.f32 %v1594, %v1202
        %v1791 = vmul.f32 %v1595, %v1203
        %v1792 = vmul.f32 %v1596, %v1204
        %v1793 = vmul.f32 %v1597, %v1205
        %v1794 = vmul.f32 %v1598, %v1206
        %v1795 = vmul.f32 %v1599, %v1207
        %v1796 = vmul.f32 %v1600, %v1208
        %v1797 = vmul.f32 %v1601, %v1209
        %v1798 = vmul.f32 %v1602, %v1210
        %v1799 = vmul.f32 %v1603, %v1211
        %v1800 = vmul.f32 %v1604, %v1212
        %v1801 = vmul.f32 %v1605, %v1213
        %v1802 = vmul.f32 %v1606, %v1214
        %v1803 = vmul.f32 %v1607, %v1215
        %v1804 = vmul.f32 %v1608, %v1216
        %v1805 = vmul.f32 %v1609, %v1217
        %v1806 = vmul.f32 %v1610, %v1218
        %v1807 = vmul.f32 %v1611, %v1219
        %v1808 = vmul.f32 %v1612, %v1220
        %v1809 = vmul.f32 %v1613, %v1221
        %v1810 = vmul.f32 %v1614, %v1222
        %v1811 = vmul.f32 %v1615, %v1223
        %v1812 = vmul.f32 %v1616, %v1224
        %v1813 = vmul.f32 %v1617, %v1225
        %v1814 = vmul.f32 %v1618, %v1226
        %v1815 = vmul.f32 %v1619, %v1227
        %v1816 = vmul.f32 %v1620, %v1228
        %v1817 = vmul.f32 %v1621, %v1229
        %v1818 = vmul.f32 %v1622, %v1230
        %v1819 = vmul.f32 %v1623, %v1231
        %v1820 = vmul.f32 %v1624, %v1232
        %v1821 = vmul.f32 %v1625, %v1233
        %v1822 = vmul.f32 %v1626, %v1234
        %v1823 = vmul.f32 %v1627, %v1235
        %v1824 = vmul.f32 %v1628, %v1236
        %v1825 = vmul.f32 %v1629, %v1237
        %v1826 = vmul.f32 %v1630, %v1238
        %v1827 = vmul.f32 %v1631, %v1239
        %v1828 = vmul.f32 %v1632, %v1240
        %v1829 = vmul.f32 %v1633, %v1241
        %v1830 = vmul.f32 %v1634, %v1242
        %v1831 = vmul.f32 %v1635, %v1243
        %v1832 = vmul.f32 %v1636, %v1244
        %v1833 = vmul.f32 %v1637, %v1245
        %v1834 = vmul.f32 %v1638, %v1246
        %v1835 = vmul.f32 %v1639, %v1247
        %v1836 = vmul.f32 %v1640, %v1248
        %v1837 = vmul.f32 %v1641, %v1249
        %v1838 = vmul.f32 %v1642, %v1250
        %v1839 = vmul.f32 %v1643, %v1251
        %v1840 = vmul.f32 %v1644, %v1252
        %v1841 = vmul.f32 %v1645, %v1253
        %v1842 = vmul.f32 %v1646, %v1254
        %v1843 = vmul.f32 %v1647, %v1255
        %v1844 = vmul.f32 %v1648, %v1256
        %v1845 = vmul.f32 %v1649, %v1257
        %v1846 = vmul.f32 %v1650, %v1258
        %v1847 = vmul.f32 %v1651, %v1259
        %v1848 = vmul.f32 %v1652, %v1260
        %v1849 = vmul.f32 %v1653, %v1261
        %v1850 = vmul.f32 %v1654, %v1262
        %v1851 = vmul.f32 %v1655, %v1263
        %v1852 = vmul.f32 %v1656, %v1264
        %v1853 = vmul.f32 %v1657, %v1265
        %v1854 = vmul.f32 %v1658, %v1266
        %v1855 = vmul.f32 %v1659, %v1267
        %v1856 = vmul.f32 %v1660, %v1268
        %v1857 = vmul.f32 %v1661, %v1269
        %v1858 = vmul.f32 %v1662, %v1270
        %v1859 = vmul.f32 %v1663, %v1271
        %v1860 = vmul.f32 %v1664, %v1272
        %v1861 = vmul.f32 %v1665, %v1273
        %v1862 = vmul.f32 %v1666, %v1274
        %v1863 = vmul.f32 %v1667, %v1275
        %v1864 = vmul.f32 %v1668, %v1276
        %v1865 = vmul.f32 %v1669, %v1277
        %v1866 = vmul.f32 %v1670, %v1278
        %v1867 = vmul.f32 %v1671, %v1279
        %v1868 = vmul.f32 %v1672, %v1280
        %v1869 = vmul.f32 %v1673, %v1281
        %v1870 = vmul.f32 %v1674, %v1282
        %v1871 = vmul.f32 %v1675, %v1283
        %v1872 = vmul.f32 %v1676, %v1284
        %v1873 = vmul.f32 %v1677, %v1285
        %v1874 = vmul.f32 %v1678, %v1286
        %v1875 = vmul.f32 %v1679, %v1287
        %v1876 = vmul.f32 %v1680, %v1288
        %v1877 = vmul.f32 %v1681, %v1289
        %v1878 = vmul.f32 %v1682, %v1290
        %v1879 = vmul.f32 %v1683, %v1291
        %v1880 = vmul.f32 %v1684, %v1292
        %v1881 = vmul.f32 %v1685, %v1293
        %v1882 = vmul.f32 %v1686, %v1294
        %v1883 = vmul.f32 %v1687, %v1295
        %v1884 = vmul.f32 %v1688, %v1296
        %v1885 = vmul.f32 %v1689, %v1297
        %v1886 = vmul.f32 %v1690, %v1298
        %v1887 = vmul.f32 %v1691, %v1299
        %v1888 = vmul.f32 %v1692, %v1300
        %v1889 = vmul.f32 %v1693, %v1301
        %v1890 = vmul.f32 %v1694, %v1302
        %v1891 = vmul.f32 %v1695, %v1303
        %v1892 = vmul.f32 %v1696, %v1304
        %v1893 = vmul.f32 %v1697, %v1305
        %v1894 = vmul.f32 %v1698, %v1306
        %v1895 = vmul.f32 %v1699, %v1307
        %v1896 = vmul.f32 %v1700, %v1308
        %v1897 = vmul.f32 %v1701, %v1309
        %v1898 = vmul.f32 %v1702, %v1310
        %v1899 = vmul.f32 %v1703, %v1311
        %v1900 = vmul.f32 %v1704, %v1312
        %v1901 = vmul.f32 %v1705, %v1313
        %v1902 = vadd.f32 %v1706, 1.4214138
        %v1903 = vadd.f32 %v1707, 1.4214138
        %v1904 = vadd.f32 %v1708, 1.4214138
        %v1905 = vadd.f32 %v1709, 1.4214138
        %v1906 = vadd.f32 %v1710, 1.4214138
        %v1907 = vadd.f32 %v1711, 1.4214138
        %v1908 = vadd.f32 %v1712, 1.4214138
        %v1909 = vadd.f32 %v1713, 1.4214138
        %v1910 = vadd.f32 %v1714, 1.4214138
        %v1911 = vadd.f32 %v1715, 1.4214138
        %v1912 = vadd.f32 %v1716, 1.4214138
        %v1913 = vadd.f32 %v1717, 1.4214138
        %v1914 = vadd.f32 %v1718, 1.4214138
        %v1915 = vadd.f32 %v1719, 1.4214138
        %v1916 = vadd.f32 %v1720, 1.4214138
        %v1917 = vadd.f32 %v1721, 1.4214138
        %v1918 = vadd.f32 %v1722, 1.4214138
        %v1919 = vadd.f32 %v1723, 1.4214138
        %v1920 = vadd.f32 %v1724, 1.4214138
        %v1921 = vadd.f32 %v1725, 1.4214138
        %v1922 = vadd.f32 %v1726, 1.4214138
        %v1923 = vadd.f32 %v1727, 1.4214138
        %v1924 = vadd.f32 %v1728, 1.4214138
        %v1925 = vadd.f32 %v1729, 1.4214138
        %v1926 = vadd.f32 %v1730, 1.4214138
        %v1927 = vadd.f32 %v1731, 1.4214138
        %v1928 = vadd.f32 %v1732, 1.4214138
        %v1929 = vadd.f32 %v1733, 1.4214138
        %v1930 = vadd.f32 %v1734, 1.4214138
        %v1931 = vadd.f32 %v1735, 1.4214138
        %v1932 = vadd.f32 %v1736, 1.4214138
        %v1933 = vadd.f32 %v1737, 1.4214138
        %v1934 = vadd.f32 %v1738, 1.4214138
        %v1935 = vadd.f32 %v1739, 1.4214138
        %v1936 = vadd.f32 %v1740, 1.4214138
        %v1937 = vadd.f32 %v1741, 1.4214138
        %v1938 = vadd.f32 %v1742, 1.4214138
        %v1939 = vadd.f32 %v1743, 1.4214138
        %v1940 = vadd.f32 %v1744, 1.4214138
        %v1941 = vadd.f32 %v1745, 1.4214138
        %v1942 = vadd.f32 %v1746, 1.4214138
        %v1943 = vadd.f32 %v1747, 1.4214138
        %v1944 = vadd.f32 %v1748, 1.4214138
        %v1945 = vadd.f32 %v1749, 1.4214138
        %v1946 = vadd.f32 %v1750, 1.4214138
        %v1947 = vadd.f32 %v1751, 1.4214138
        %v1948 = vadd.f32 %v1752, 1.4214138
        %v1949 = vadd.f32 %v1753, 1.4214138
        %v1950 = vadd.f32 %v1754, 1.4214138
        %v1951 = vadd.f32 %v1755, 1.4214138
        %v1952 = vadd.f32 %v1756, 1.4214138
        %v1953 = vadd.f32 %v1757, 1.4214138
        %v1954 = vadd.f32 %v1758, 1.4214138
        %v1955 = vadd.f32 %v1759, 1.4214138
        %v1956 = vadd.f32 %v1760, 1.4214138
        %v1957 = vadd.f32 %v1761, 1.4214138
        %v1958 = vadd.f32 %v1762, 1.4214138
        %v1959 = vadd.f32 %v1763, 1.4214138
        %v1960 = vadd.f32 %v1764, 1.4214138
        %v1961 = vadd.f32 %v1765, 1.4214138
        %v1962 = vadd.f32 %v1766, 1.4214138
        %v1963 = vadd.f32 %v1767, 1.4214138
        %v1964 = vadd.f32 %v1768, 1.4214138
        %v1965 = vadd.f32 %v1769, 1.4214138
        %v1966 = vadd.f32 %v1770, 1.4214138
        %v1967 = vadd.f32 %v1771, 1.4214138
        %v1968 = vadd.f32 %v1772, 1.4214138
        %v1969 = vadd.f32 %v1773, 1.4214138
        %v1970 = vadd.f32 %v1774, 1.4214138
        %v1971 = vadd.f32 %v1775, 1.4214138
        %v1972 = vadd.f32 %v1776, 1.4214138
        %v1973 = vadd.f32 %v1777, 1.4214138
        %v1974 = vadd.f32 %v1778, 1.4214138
        %v1975 = vadd.f32 %v1779, 1.4214138
        %v1976 = vadd.f32 %v1780, 1.4214138
        %v1977 = vadd.f32 %v1781, 1.4214138
        %v1978 = vadd.f32 %v1782, 1.4214138
        %v1979 = vadd.f32 %v1783, 1.4214138
        %v1980 = vadd.f32 %v1784, 1.4214138
        %v1981 = vadd.f32 %v1785, 1.4214138
        %v1982 = vadd.f32 %v1786, 1.4214138
        %v1983 = vadd.f32 %v1787, 1.4214138
        %v1984 = vadd.f32 %v1788, 1.4214138
        %v1985 = vadd.f32 %v1789, 1.4214138
        %v1986 = vadd.f32 %v1790, 1.4214138
        %v1987 = vadd.f32 %v1791, 1.4214138
        %v1988 = vadd.f32 %v1792, 1.4214138
        %v1989 = vadd.f32 %v1793, 1.4214138
        %v1990 = vadd.f32 %v1794, 1.4214138
        %v1991 = vadd.f32 %v1795, 1.4214138
        %v1992 = vadd.f32 %v1796, 1.4214138
        %v1993 = vadd.f32 %v1797, 1.4214138
        %v1994 = vadd.f32 %v1798, 1.4214138
        %v1995 = vadd.f32 %v1799, 1.4214138
        %v1996 = vadd.f32 %v1800, 1.4214138
        %v1997 = vadd.f32 %v1801, 1.4214138
        %v1998 = vadd.f32 %v1802, 1.4214138
        %v1999 = vadd.f32 %v1803, 1.4214138
        %v2000 = vadd.f32 %v1804, 1.4214138
        %v2001 = vadd.f32 %v1805, 1.4214138
        %v2002 = vadd.f32 %v1806, 1.4214138
        %v2003 = vadd.f32 %v1807, 1.4214138
        %v2004 = vadd.f32 %v1808, 1.4214138
        %v2005 = vadd.f32 %v1809, 1.4214138
        %v2006 = vadd.f32 %v1810, 1.4214138
        %v2007 = vadd.f32 %v1811, 1.4214138
        %v2008 = vadd.f32 %v1812, 1.4214138
        %v2009 = vadd.f32 %v1813, 1.4214138
        %v2010 = vadd.f32 %v1814, 1.4214138
        %v2011 = vadd.f32 %v1815, 1.4214138
        %v2012 = vadd.f32 %v1816, 1.4214138
        %v2013 = vadd.f32 %v1817, 1.4214138
        %v2014 = vadd.f32 %v1818, 1.4214138
        %v2015 = vadd.f32 %v1819, 1.4214138
        %v2016 = vadd.f32 %v1820, 1.4214138
        %v2017 = vadd.f32 %v1821, 1.4214138
        %v2018 = vadd.f32 %v1822, 1.4214138
        %v2019 = vadd.f32 %v1823, 1.4214138
        %v2020 = vadd.f32 %v1824, 1.4214138
        %v2021 = vadd.f32 %v1825, 1.4214138
        %v2022 = vadd.f32 %v1826, 1.4214138
        %v2023 = vadd.f32 %v1827, 1.4214138
        %v2024 = vadd.f32 %v1828, 1.4214138
        %v2025 = vadd.f32 %v1829, 1.4214138
        %v2026 = vadd.f32 %v1830, 1.4214138
        %v2027 = vadd.f32 %v1831, 1.4214138
        %v2028 = vadd.f32 %v1832, 1.4214138
        %v2029 = vadd.f32 %v1833, 1.4214138
        %v2030 = vadd.f32 %v1834, 1.4214138
        %v2031 = vadd.f32 %v1835, 1.4214138
        %v2032 = vadd.f32 %v1836, 1.4214138
        %v2033 = vadd.f32 %v1837, 1.4214138
        %v2034 = vadd.f32 %v1838, 1.4214138
        %v2035 = vadd.f32 %v1839, 1.4214138
        %v2036 = vadd.f32 %v1840, 1.4214138
        %v2037 = vadd.f32 %v1841, 1.4214138
        %v2038 = vadd.f32 %v1842, 1.4214138
        %v2039 = vadd.f32 %v1843, 1.4214138
        %v2040 = vadd.f32 %v1844, 1.4214138
        %v2041 = vadd.f32 %v1845, 1.4214138
        %v2042 = vadd.f32 %v1846, 1.4214138
        %v2043 = vadd.f32 %v1847, 1.4214138
        %v2044 = vadd.f32 %v1848, 1.4214138
        %v2045 = vadd.f32 %v1849, 1.4214138
        %v2046 = vadd.f32 %v1850, 1.4214138
        %v2047 = vadd.f32 %v1851, 1.4214138
        %v2048 = vadd.f32 %v1852, 1.4214138
        %v2049 = vadd.f32 %v1853, 1.4214138
        %v2050 = vadd.f32 %v1854, 1.4214138
        %v2051 = vadd.f32 %v1855, 1.4214138
        %v2052 = vadd.f32 %v1856, 1.4214138
        %v2053 = vadd.f32 %v1857, 1.4214138
        %v2054 = vadd.f32 %v1858, 1.4214138
        %v2055 = vadd.f32 %v1859, 1.4214138
        %v2056 = vadd.f32 %v1860, 1.4214138
        %v2057 = vadd.f32 %v1861, 1.4214138
        %v2058 = vadd.f32 %v1862, 1.4214138
        %v2059 = vadd.f32 %v1863, 1.4214138
        %v2060 = vadd.f32 %v1864, 1.4214138
        %v2061 = vadd.f32 %v1865, 1.4214138
        %v2062 = vadd.f32 %v1866, 1.4214138
        %v2063 = vadd.f32 %v1867, 1.4214138
        %v2064 = vadd.f32 %v1868, 1.4214138
        %v2065 = vadd.f32 %v1869, 1.4214138
        %v2066 = vadd.f32 %v1870, 1.4214138
        %v2067 = vadd.f32 %v1871, 1.4214138
        %v2068 = vadd.f32 %v1872, 1.4214138
        %v2069 = vadd.f32 %v1873, 1.4214138
        %v2070 = vadd.f32 %v1874, 1.4214138
        %v2071 = vadd.f32 %v1875, 1.4214138
        %v2072 = vadd.f32 %v1876, 1.4214138
        %v2073 = vadd.f32 %v1877, 1.4214138
        %v2074 = vadd.f32 %v1878, 1.4214138
        %v2075 = vadd.f32 %v1879, 1.4214138
        %v2076 = vadd.f32 %v1880, 1.4214138
        %v2077 = vadd.f32 %v1881, 1.4214138
        %v2078 = vadd.f32 %v1882, 1.4214138
        %v2079 = vadd.f32 %v1883, 1.4214138
        %v2080 = vadd.f32 %v1884, 1.4214138
        %v2081 = vadd.f32 %v1885, 1.4214138
        %v2082 = vadd.f32 %v1886, 1.4214138
        %v2083 = vadd.f32 %v1887, 1.4214138
        %v2084 = vadd.f32 %v1888, 1.4214138
        %v2085 = vadd.f32 %v1889, 1.4214138
        %v2086 = vadd.f32 %v1890, 1.4214138
        %v2087 = vadd.f32 %v1891, 1.4214138
        %v2088 = vadd.f32 %v1892, 1.4214138
        %v2089 = vadd.f32 %v1893, 1.4214138
        %v2090 = vadd.f32 %v1894, 1.4214138
        %v2091 = vadd.f32 %v1895, 1.4214138
        %v2092 = vadd.f32 %v1896, 1.4214138
        %v2093 = vadd.f32 %v1897, 1.4214138
        %v2094 = vadd.f32 %v1898, 1.4214138
        %v2095 = vadd.f32 %v1899, 1.4214138
        %v2096 = vadd.f32 %v1900, 1.4214138
        %v2097 = vadd.f32 %v1901, 1.4214138
        %v2098 = vmul.f32 %v1902, %v1118
        %v2099 = vmul.f32 %v1903, %v1119
        %v2100 = vmul.f32 %v1904, %v1120
        %v2101 = vmul.f32 %v1905, %v1121
        %v2102 = vmul.f32 %v1906, %v1122
        %v2103 = vmul.f32 %v1907, %v1123
        %v2104 = vmul.f32 %v1908, %v1124
        %v2105 = vmul.f32 %v1909, %v1125
        %v2106 = vmul.f32 %v1910, %v1126
        %v2107 = vmul.f32 %v1911, %v1127
        %v2108 = vmul.f32 %v1912, %v1128
        %v2109 = vmul.f32 %v1913, %v1129
        %v2110 = vmul.f32 %v1914, %v1130
        %v2111 = vmul.f32 %v1915, %v1131
        %v2112 = vmul.f32 %v1916, %v1132
        %v2113 = vmul.f32 %v1917, %v1133
        %v2114 = vmul.f32 %v1918, %v1134
        %v2115 = vmul.f32 %v1919, %v1135
        %v2116 = vmul.f32 %v1920, %v1136
        %v2117 = vmul.f32 %v1921, %v1137
        %v2118 = vmul.f32 %v1922, %v1138
        %v2119 = vmul.f32 %v1923, %v1139
        %v2120 = vmul.f32 %v1924, %v1140
        %v2121 = vmul.f32 %v1925, %v1141
        %v2122 = vmul.f32 %v1926, %v1142
        %v2123 = vmul.f32 %v1927, %v1143
        %v2124 = vmul.f32 %v1928, %v1144
        %v2125 = vmul.f32 %v1929, %v1145
        %v2126 = vmul.f32 %v1930, %v1146
        %v2127 = vmul.f32 %v1931, %v1147
        %v2128 = vmul.f32 %v1932, %v1148
        %v2129 = vmul.f32 %v1933, %v1149
        %v2130 = vmul.f32 %v1934, %v1150
        %v2131 = vmul.f32 %v1935, %v1151
        %v2132 = vmul.f32 %v1936, %v1152
        %v2133 = vmul.f32 %v1937, %v1153
        %v2134 = vmul.f32 %v1938, %v1154
        %v2135 = vmul.f32 %v1939, %v1155
        %v2136 = vmul.f32 %v1940, %v1156
        %v2137 = vmul.f32 %v1941, %v1157
        %v2138 = vmul.f32 %v1942, %v1158
        %v2139 = vmul.f32 %v1943, %v1159
        %v2140 = vmul.f32 %v1944, %v1160
        %v2141 = vmul.f32 %v1945, %v1161
        %v2142 = vmul.f32 %v1946, %v1162
        %v2143 = vmul.f32 %v1947, %v1163
        %v2144 = vmul.f32 %v1948, %v1164
        %v2145 = vmul.f32 %v1949, %v1165
        %v2146 = vmul.f32 %v1950, %v1166
        %v2147 = vmul.f32 %v1951, %v1167
        %v2148 = vmul.f32 %v1952, %v1168
        %v2149 = vmul.f32 %v1953, %v1169
        %v2150 = vmul.f32 %v1954, %v1170
        %v2151 = vmul.f32 %v1955, %v1171
        %v2152 = vmul.f32 %v1956, %v1172
        %v2153 = vmul.f32 %v1957, %v1173
        %v2154 = vmul.f32 %v1958, %v1174
        %v2155 = vmul.f32 %v1959, %v1175
        %v2156 = vmul.f32 %v1960, %v1176
        %v2157 = vmul.f32 %v1961, %v1177
        %v2158 = vmul.f32 %v1962, %v1178
        %v2159 = vmul.f32 %v1963, %v1179
        %v2160 = vmul.f32 %v1964, %v1180
        %v2161 = vmul.f32 %v1965, %v1181
        %v2162 = vmul.f32 %v1966, %v1182
        %v2163 = vmul.f32 %v1967, %v1183
        %v2164 = vmul.f32 %v1968, %v1184
        %v2165 = vmul.f32 %v1969, %v1185
        %v2166 = vmul.f32 %v1970, %v1186
        %v2167 = vmul.f32 %v1971, %v1187
        %v2168 = vmul.f32 %v1972, %v1188
        %v2169 = vmul.f32 %v1973, %v1189
        %v2170 = vmul.f32 %v1974, %v1190
        %v2171 = vmul.f32 %v1975, %v1191
        %v2172 = vmul.f32 %v1976, %v1192
        %v2173 = vmul.f32 %v1977, %v1193
        %v2174 = vmul.f32 %v1978, %v1194
        %v2175 = vmul.f32 %v1979, %v1195
        %v2176 = vmul.f32 %v1980, %v1196
        %v2177 = vmul.f32 %v1981, %v1197
        %v2178 = vmul.f32 %v1982, %v1198
        %v2179 = vmul.f32 %v1983, %v1199
        %v2180 = vmul.f32 %v1984, %v1200
        %v2181 = vmul.f32 %v1985, %v1201
        %v2182 = vmul.f32 %v1986, %v1202
        %v2183 = vmul.f32 %v1987, %v1203
        %v2184 = vmul.f32 %v1988, %v1204
        %v2185 = vmul.f32 %v1989, %v1205
        %v2186 = vmul.f32 %v1990, %v1206
        %v2187 = vmul.f32 %v1991, %v1207
        %v2188 = vmul.f32 %v1992, %v1208
        %v2189 = vmul.f32 %v1993, %v1209
        %v2190 = vmul.f32 %v1994, %v1210
        %v2191 = vmul.f32 %v1995, %v1211
        %v2192 = vmul.f32 %v1996, %v1212
        %v2193 = vmul.f32 %v1997, %v1213
        %v2194 = vmul.f32 %v1998, %v1214
        %v2195 = vmul.f32 %v1999, %v1215
        %v2196 = vmul.f32 %v2000, %v1216
        %v2197 = vmul.f32 %v2001, %v1217
        %v2198 = vmul.f32 %v2002, %v1218
        %v2199 = vmul.f32 %v2003, %v1219
        %v2200 = vmul.f32 %v2004, %v1220
        %v2201 = vmul.f32 %v2005, %v1221
        %v2202 = vmul.f32 %v2006, %v1222
        %v2203 = vmul.f32 %v2007, %v1223
        %v2204 = vmul.f32 %v2008, %v1224
        %v2205 = vmul.f32 %v2009, %v1225
        %v2206 = vmul.f32 %v2010, %v1226
        %v2207 = vmul.f32 %v2011, %v1227
        %v2208 = vmul.f32 %v2012, %v1228
        %v2209 = vmul.f32 %v2013, %v1229
        %v2210 = vmul.f32 %v2014, %v1230
        %v2211 = vmul.f32 %v2015, %v1231
        %v2212 = vmul.f32 %v2016, %v1232
        %v2213 = vmul.f32 %v2017, %v1233
        %v2214 = vmul.f32 %v2018, %v1234
        %v2215 = vmul.f32 %v2019, %v1235
        %v2216 = vmul.f32 %v2020, %v1236
        %v2217 = vmul.f32 %v2021, %v1237
        %v2218 = vmul.f32 %v2022, %v1238
        %v2219 = vmul.f32 %v2023, %v1239
        %v2220 = vmul.f32 %v2024, %v1240
        %v2221 = vmul.f32 %v2025, %v1241
        %v2222 = vmul.f32 %v2026, %v1242
        %v2223 = vmul.f32 %v2027, %v1243
        %v2224 = vmul.f32 %v2028, %v1244
        %v2225 = vmul.f32 %v2029, %v1245
        %v2226 = vmul.f32 %v2030, %v1246
        %v2227 = vmul.f32 %v2031, %v1247
        %v2228 = vmul.f32 %v2032, %v1248
        %v2229 = vmul.f32 %v2033, %v1249
        %v2230 = vmul.f32 %v2034, %v1250
        %v2231 = vmul.f32 %v2035, %v1251
        %v2232 = vmul.f32 %v2036, %v1252
        %v2233 = vmul.f32 %v2037, %v1253
        %v2234 = vmul.f32 %v2038, %v1254
        %v2235 = vmul.f32 %v2039, %v1255
        %v2236 = vmul.f32 %v2040, %v1256
        %v2237 = vmul.f32 %v2041, %v1257
        %v2238 = vmul.f32 %v2042, %v1258
        %v2239 = vmul.f32 %v2043, %v1259
        %v2240 = vmul.f32 %v2044, %v1260
        %v2241 = vmul.f32 %v2045, %v1261
        %v2242 = vmul.f32 %v2046, %v1262
        %v2243 = vmul.f32 %v2047, %v1263
        %v2244 = vmul.f32 %v2048, %v1264
        %v2245 = vmul.f32 %v2049, %v1265
        %v2246 = vmul.f32 %v2050, %v1266
        %v2247 = vmul.f32 %v2051, %v1267
        %v2248 = vmul.f32 %v2052, %v1268
        %v2249 = vmul.f32 %v2053, %v1269
        %v2250 = vmul.f32 %v2054, %v1270
        %v2251 = vmul.f32 %v2055, %v1271
        %v2252 = vmul.f32 %v2056, %v1272
        %v2253 = vmul.f32 %v2057, %v1273
        %v2254 = vmul.f32 %v2058, %v1274
        %v2255 = vmul.f32 %v2059, %v1275
        %v2256 = vmul.f32 %v2060, %v1276
        %v2257 = vmul.f32 %v2061, %v1277
        %v2258 = vmul.f32 %v2062, %v1278
        %v2259 = vmul.f32 %v2063, %v1279
        %v2260 = vmul.f32 %v2064, %v1280
        %v2261 = vmul.f32 %v2065, %v1281
        %v2262 = vmul.f32 %v2066, %v1282
        %v2263 = vmul.f32 %v2067, %v1283
        %v2264 = vmul.f32 %v2068, %v1284
        %v2265 = vmul.f32 %v2069, %v1285
        %v2266 = vmul.f32 %v2070, %v1286
        %v2267 = vmul.f32 %v2071, %v1287
        %v2268 = vmul.f32 %v2072, %v1288
        %v2269 = vmul.f32 %v2073, %v1289
        %v2270 = vmul.f32 %v2074, %v1290
        %v2271 = vmul.f32 %v2075, %v1291
        %v2272 = vmul.f32 %v2076, %v1292
        %v2273 = vmul.f32 %v2077, %v1293
        %v2274 = vmul.f32 %v2078, %v1294
        %v2275 = vmul.f32 %v2079, %v1295
        %v2276 = vmul.f32 %v2080, %v1296
        %v2277 = vmul.f32 %v2081, %v1297
        %v2278 = vmul.f32 %v2082, %v1298
        %v2279 = vmul.f32 %v2083, %v1299
        %v2280 = vmul.f32 %v2084, %v1300
        %v2281 = vmul.f32 %v2085, %v1301
        %v2282 = vmul.f32 %v2086, %v1302
        %v2283 = vmul.f32 %v2087, %v1303
        %v2284 = vmul.f32 %v2088, %v1304
        %v2285 = vmul.f32 %v2089, %v1305
        %v2286 = vmul.f32 %v2090, %v1306
        %v2287 = vmul.f32 %v2091, %v1307
        %v2288 = vmul.f32 %v2092, %v1308
        %v2289 = vmul.f32 %v2093, %v1309
        %v2290 = vmul.f32 %v2094, %v1310
        %v2291 = vmul.f32 %v2095, %v1311
        %v2292 = vmul.f32 %v2096, %v1312
        %v2293 = vmul.f32 %v2097, %v1313
        %v2294 = vadd.f32 %v2098, -0.28449672
        %v2295 = vadd.f32 %v2099, -0.28449672
        %v2296 = vadd.f32 %v2100, -0.28449672
        %v2297 = vadd.f32 %v2101, -0.28449672
        %v2298 = vadd.f32 %v2102, -0.28449672
        %v2299 = vadd.f32 %v2103, -0.28449672
        %v2300 = vadd.f32 %v2104, -0.28449672
        %v2301 = vadd.f32 %v2105, -0.28449672
        %v2302 = vadd.f32 %v2106, -0.28449672
        %v2303 = vadd.f32 %v2107, -0.28449672
        %v2304 = vadd.f32 %v2108, -0.28449672
        %v2305 = vadd.f32 %v2109, -0.28449672
        %v2306 = vadd.f32 %v2110, -0.28449672
        %v2307 = vadd.f32 %v2111, -0.28449672
        %v2308 = vadd.f32 %v2112, -0.28449672
        %v2309 = vadd.f32 %v2113, -0.28449672
        %v2310 = vadd.f32 %v2114, -0.28449672
        %v2311 = vadd.f32 %v2115, -0.28449672
        %v2312 = vadd.f32 %v2116, -0.28449672
        %v2313 = vadd.f32 %v2117, -0.28449672
        %v2314 = vadd.f32 %v2118, -0.28449672
        %v2315 = vadd.f32 %v2119, -0.28449672
        %v2316 = vadd.f32 %v2120, -0.28449672
        %v2317 = vadd.f32 %v2121, -0.28449672
        %v2318 = vadd.f32 %v2122, -0.28449672
        %v2319 = vadd.f32 %v2123, -0.28449672
        %v2320 = vadd.f32 %v2124, -0.28449672
        %v2321 = vadd.f32 %v2125, -0.28449672
        %v2322 = vadd.f32 %v2126, -0.28449672
        %v2323 = vadd.f32 %v2127, -0.28449672
        %v2324 = vadd.f32 %v2128, -0.28449672
        %v2325 = vadd.f32 %v2129, -0.28449672
        %v2326 = vadd.f32 %v2130, -0.28449672
        %v2327 = vadd.f32 %v2131, -0.28449672
        %v2328 = vadd.f32 %v2132, -0.28449672
        %v2329 = vadd.f32 %v2133, -0.28449672
        %v2330 = vadd.f32 %v2134, -0.28449672
        %v2331 = vadd.f32 %v2135, -0.28449672
        %v2332 = vadd.f32 %v2136, -0.28449672
        %v2333 = vadd.f32 %v2137, -0.28449672
        %v2334 = vadd.f32 %v2138, -0.28449672
        %v2335 = vadd.f32 %v2139, -0.28449672
        %v2336 = vadd.f32 %v2140, -0.28449672
        %v2337 = vadd.f32 %v2141, -0.28449672
        %v2338 = vadd.f32 %v2142, -0.28449672
        %v2339 = vadd.f32 %v2143, -0.28449672
        %v2340 = vadd.f32 %v2144, -0.28449672
        %v2341 = vadd.f32 %v2145, -0.28449672
        %v2342 = vadd.f32 %v2146, -0.28449672
        %v2343 = vadd.f32 %v2147, -0.28449672
        %v2344 = vadd.f32 %v2148, -0.28449672
        %v2345 = vadd.f32 %v2149, -0.28449672
        %v2346 = vadd.f32 %v2150, -0.28449672
        %v2347 = vadd.f32 %v2151, -0.28449672
        %v2348 = vadd.f32 %v2152, -0.28449672
        %v2349 = vadd.f32 %v2153, -0.28449672
        %v2350 = vadd.f32 %v2154, -0.28449672
        %v2351 = vadd.f32 %v2155, -0.28449672
        %v2352 = vadd.f32 %v2156, -0.28449672
        %v2353 = vadd.f32 %v2157, -0.28449672
        %v2354 = vadd.f32 %v2158, -0.28449672
        %v2355 = vadd.f32 %v2159, -0.28449672
        %v2356 = vadd.f32 %v2160, -0.28449672
        %v2357 = vadd.f32 %v2161, -0.28449672
        %v2358 = vadd.f32 %v2162, -0.28449672
        %v2359 = vadd.f32 %v2163, -0.28449672
        %v2360 = vadd.f32 %v2164, -0.28449672
        %v2361 = vadd.f32 %v2165, -0.28449672
        %v2362 = vadd.f32 %v2166, -0.28449672
        %v2363 = vadd.f32 %v2167, -0.28449672
        %v2364 = vadd.f32 %v2168, -0.28449672
        %v2365 = vadd.f32 %v2169, -0.28449672
        %v2366 = vadd.f32 %v2170, -0.28449672
        %v2367 = vadd.f32 %v2171, -0.28449672
        %v2368 = vadd.f32 %v2172, -0.28449672
        %v2369 = vadd.f32 %v2173, -0.28449672
        %v2370 = vadd.f32 %v2174, -0.28449672
        %v2371 = vadd.f32 %v2175, -0.28449672
        %v2372 = vadd.f32 %v2176, -0.28449672
        %v2373 = vadd.f32 %v2177, -0.28449672
        %v2374 = vadd.f32 %v2178, -0.28449672
        %v2375 = vadd.f32 %v2179, -0.28449672
        %v2376 = vadd.f32 %v2180, -0.28449672
        %v2377 = vadd.f32 %v2181, -0.28449672
        %v2378 = vadd.f32 %v2182, -0.28449672
        %v2379 = vadd.f32 %v2183, -0.28449672
        %v2380 = vadd.f32 %v2184, -0.28449672
        %v2381 = vadd.f32 %v2185, -0.28449672
        %v2382 = vadd.f32 %v2186, -0.28449672
        %v2383 = vadd.f32 %v2187, -0.28449672
        %v2384 = vadd.f32 %v2188, -0.28449672
        %v2385 = vadd.f32 %v2189, -0.28449672
        %v2386 = vadd.f32 %v2190, -0.28449672
        %v2387 = vadd.f32 %v2191, -0.28449672
        %v2388 = vadd.f32 %v2192, -0.28449672
        %v2389 = vadd.f32 %v2193, -0.28449672
        %v2390 = vadd.f32 %v2194, -0.28449672
        %v2391 = vadd.f32 %v2195, -0.28449672
        %v2392 = vadd.f32 %v2196, -0.28449672
        %v2393 = vadd.f32 %v2197, -0.28449672
        %v2394 = vadd.f32 %v2198, -0.28449672
        %v2395 = vadd.f32 %v2199, -0.28449672
        %v2396 = vadd.f32 %v2200, -0.28449672
        %v2397 = vadd.f32 %v2201, -0.28449672
        %v2398 = vadd.f32 %v2202, -0.28449672
        %v2399 = vadd.f32 %v2203, -0.28449672
        %v2400 = vadd.f32 %v2204, -0.28449672
        %v2401 = vadd.f32 %v2205, -0.28449672
        %v2402 = vadd.f32 %v2206, -0.28449672
        %v2403 = vadd.f32 %v2207, -0.28449672
        %v2404 = vadd.f32 %v2208, -0.28449672
        %v2405 = vadd.f32 %v2209, -0.28449672
        %v2406 = vadd.f32 %v2210, -0.28449672
        %v2407 = vadd.f32 %v2211, -0.28449672
        %v2408 = vadd.f32 %v2212, -0.28449672
        %v2409 = vadd.f32 %v2213, -0.28449672
        %v2410 = vadd.f32 %v2214, -0.28449672
        %v2411 = vadd.f32 %v2215, -0.28449672
        %v2412 = vadd.f32 %v2216, -0.28449672
        %v2413 = vadd.f32 %v2217, -0.28449672
        %v2414 = vadd.f32 %v2218, -0.28449672
        %v2415 = vadd.f32 %v2219, -0.28449672
        %v2416 = vadd.f32 %v2220, -0.28449672
        %v2417 = vadd.f32 %v2221, -0.28449672
        %v2418 = vadd.f32 %v2222, -0.28449672
        %v2419 = vadd.f32 %v2223, -0.28449672
        %v2420 = vadd.f32 %v2224, -0.28449672
        %v2421 = vadd.f32 %v2225, -0.28449672
        %v2422 = vadd.f32 %v2226, -0.28449672
        %v2423 = vadd.f32 %v2227, -0.28449672
        %v2424 = vadd.f32 %v2228, -0.28449672
        %v2425 = vadd.f32 %v2229, -0.28449672
        %v2426 = vadd.f32 %v2230, -0.28449672
        %v2427 = vadd.f32 %v2231, -0.28449672
        %v2428 = vadd.f32 %v2232, -0.28449672
        %v2429 = vadd.f32 %v2233, -0.28449672
        %v2430 = vadd.f32 %v2234, -0.28449672
        %v2431 = vadd.f32 %v2235, -0.28449672
        %v2432 = vadd.f32 %v2236, -0.28449672
        %v2433 = vadd.f32 %v2237, -0.28449672
        %v2434 = vadd.f32 %v2238, -0.28449672
        %v2435 = vadd.f32 %v2239, -0.28449672
        %v2436 = vadd.f32 %v2240, -0.28449672
        %v2437 = vadd.f32 %v2241, -0.28449672
        %v2438 = vadd.f32 %v2242, -0.28449672
        %v2439 = vadd.f32 %v2243, -0.28449672
        %v2440 = vadd.f32 %v2244, -0.28449672
        %v2441 = vadd.f32 %v2245, -0.28449672
        %v2442 = vadd.f32 %v2246, -0.28449672
        %v2443 = vadd.f32 %v2247, -0.28449672
        %v2444 = vadd.f32 %v2248, -0.28449672
        %v2445 = vadd.f32 %v2249, -0.28449672
        %v2446 = vadd.f32 %v2250, -0.28449672
        %v2447 = vadd.f32 %v2251, -0.28449672
        %v2448 = vadd.f32 %v2252, -0.28449672
        %v2449 = vadd.f32 %v2253, -0.28449672
        %v2450 = vadd.f32 %v2254, -0.28449672
        %v2451 = vadd.f32 %v2255, -0.28449672
        %v2452 = vadd.f32 %v2256, -0.28449672
        %v2453 = vadd.f32 %v2257, -0.28449672
        %v2454 = vadd.f32 %v2258, -0.28449672
        %v2455 = vadd.f32 %v2259, -0.28449672
        %v2456 = vadd.f32 %v2260, -0.28449672
        %v2457 = vadd.f32 %v2261, -0.28449672
        %v2458 = vadd.f32 %v2262, -0.28449672
        %v2459 = vadd.f32 %v2263, -0.28449672
        %v2460 = vadd.f32 %v2264, -0.28449672
        %v2461 = vadd.f32 %v2265, -0.28449672
        %v2462 = vadd.f32 %v2266, -0.28449672
        %v2463 = vadd.f32 %v2267, -0.28449672
        %v2464 = vadd.f32 %v2268, -0.28449672
        %v2465 = vadd.f32 %v2269, -0.28449672
        %v2466 = vadd.f32 %v2270, -0.28449672
        %v2467 = vadd.f32 %v2271, -0.28449672
        %v2468 = vadd.f32 %v2272, -0.28449672
        %v2469 = vadd.f32 %v2273, -0.28449672
        %v2470 = vadd.f32 %v2274, -0.28449672
        %v2471 = vadd.f32 %v2275, -0.28449672
        %v2472 = vadd.f32 %v2276, -0.28449672
        %v2473 = vadd.f32 %v2277, -0.28449672
        %v2474 = vadd.f32 %v2278, -0.28449672
        %v2475 = vadd.f32 %v2279, -0.28449672
        %v2476 = vadd.f32 %v2280, -0.28449672
        %v2477 = vadd.f32 %v2281, -0.28449672
        %v2478 = vadd.f32 %v2282, -0.28449672
        %v2479 = vadd.f32 %v2283, -0.28449672
        %v2480 = vadd.f32 %v2284, -0.28449672
        %v2481 = vadd.f32 %v2285, -0.28449672
        %v2482 = vadd.f32 %v2286, -0.28449672
        %v2483 = vadd.f32 %v2287, -0.28449672
        %v2484 = vadd.f32 %v2288, -0.28449672
        %v2485 = vadd.f32 %v2289, -0.28449672
        %v2486 = vadd.f32 %v2290, -0.28449672
        %v2487 = vadd.f32 %v2291, -0.28449672
        %v2488 = vadd.f32 %v2292, -0.28449672
        %v2489 = vadd.f32 %v2293, -0.28449672
        %v2490 = vmul.f32 %v2294, %v1118
        %v2491 = vmul.f32 %v2295, %v1119
        %v2492 = vmul.f32 %v2296, %v1120
        %v2493 = vmul.f32 %v2297, %v1121
        %v2494 = vmul.f32 %v2298, %v1122
        %v2495 = vmul.f32 %v2299, %v1123
        %v2496 = vmul.f32 %v2300, %v1124
        %v2497 = vmul.f32 %v2301, %v1125
        %v2498 = vmul.f32 %v2302, %v1126
        %v2499 = vmul.f32 %v2303, %v1127
        %v2500 = vmul.f32 %v2304, %v1128
        %v2501 = vmul.f32 %v2305, %v1129
        %v2502 = vmul.f32 %v2306, %v1130
        %v2503 = vmul.f32 %v2307, %v1131
        %v2504 = vmul.f32 %v2308, %v1132
        %v2505 = vmul.f32 %v2309, %v1133
        %v2506 = vmul.f32 %v2310, %v1134
        %v2507 = vmul.f32 %v2311, %v1135
        %v2508 = vmul.f32 %v2312, %v1136
        %v2509 = vmul.f32 %v2313, %v1137
        %v2510 = vmul.f32 %v2314, %v1138
        %v2511 = vmul.f32 %v2315, %v1139
        %v2512 = vmul.f32 %v2316, %v1140
        %v2513 = vmul.f32 %v2317, %v1141
        %v2514 = vmul.f32 %v2318, %v1142
        %v2515 = vmul.f32 %v2319, %v1143
        %v2516 = vmul.f32 %v2320, %v1144
        %v2517 = vmul.f32 %v2321, %v1145
        %v2518 = vmul.f32 %v2322, %v1146
        %v2519 = vmul.f32 %v2323, %v1147
        %v2520 = vmul.f32 %v2324, %v1148
        %v2521 = vmul.f32 %v2325, %v1149
        %v2522 = vmul.f32 %v2326, %v1150
        %v2523 = vmul.f32 %v2327, %v1151
        %v2524 = vmul.f32 %v2328, %v1152
        %v2525 = vmul.f32 %v2329, %v1153
        %v2526 = vmul.f32 %v2330, %v1154
        %v2527 = vmul.f32 %v2331, %v1155
        %v2528 = vmul.f32 %v2332, %v1156
        %v2529 = vmul.f32 %v2333, %v1157
        %v2530 = vmul.f32 %v2334, %v1158
        %v2531 = vmul.f32 %v2335, %v1159
        %v2532 = vmul.f32 %v2336, %v1160
        %v2533 = vmul.f32 %v2337, %v1161
        %v2534 = vmul.f32 %v2338, %v1162
        %v2535 = vmul.f32 %v2339, %v1163
        %v2536 = vmul.f32 %v2340, %v1164
        %v2537 = vmul.f32 %v2341, %v1165
        %v2538 = vmul.f32 %v2342, %v1166
        %v2539 = vmul.f32 %v2343, %v1167
        %v2540 = vmul.f32 %v2344, %v1168
        %v2541 = vmul.f32 %v2345, %v1169
        %v2542 = vmul.f32 %v2346, %v1170
        %v2543 = vmul.f32 %v2347, %v1171
        %v2544 = vmul.f32 %v2348, %v1172
        %v2545 = vmul.f32 %v2349, %v1173
        %v2546 = vmul.f32 %v2350, %v1174
        %v2547 = vmul.f32 %v2351, %v1175
        %v2548 = vmul.f32 %v2352, %v1176
        %v2549 = vmul.f32 %v2353, %v1177
        %v2550 = vmul.f32 %v2354, %v1178
        %v2551 = vmul.f32 %v2355, %v1179
        %v2552 = vmul.f32 %v2356, %v1180
        %v2553 = vmul.f32 %v2357, %v1181
        %v2554 = vmul.f32 %v2358, %v1182
        %v2555 = vmul.f32 %v2359, %v1183
        %v2556 = vmul.f32 %v2360, %v1184
        %v2557 = vmul.f32 %v2361, %v1185
        %v2558 = vmul.f32 %v2362, %v1186
        %v2559 = vmul.f32 %v2363, %v1187
        %v2560 = vmul.f32 %v2364, %v1188
        %v2561 = vmul.f32 %v2365, %v1189
        %v2562 = vmul.f32 %v2366, %v1190
        %v2563 = vmul.f32 %v2367, %v1191
        %v2564 = vmul.f32 %v2368, %v1192
        %v2565 = vmul.f32 %v2369, %v1193
        %v2566 = vmul.f32 %v2370, %v1194
        %v2567 = vmul.f32 %v2371, %v1195
        %v2568 = vmul.f32 %v2372, %v1196
        %v2569 = vmul.f32 %v2373, %v1197
        %v2570 = vmul.f32 %v2374, %v1198
        %v2571 = vmul.f32 %v2375, %v1199
        %v2572 = vmul.f32 %v2376, %v1200
        %v2573 = vmul.f32 %v2377, %v1201
        %v2574 = vmul.f32 %v2378, %v1202
        %v2575 = vmul.f32 %v2379, %v1203
        %v2576 = vmul.f32 %v2380, %v1204
        %v2577 = vmul.f32 %v2381, %v1205
        %v2578 = vmul.f32 %v2382, %v1206
        %v2579 = vmul.f32 %v2383, %v1207
        %v2580 = vmul.f32 %v2384, %v1208
        %v2581 = vmul.f32 %v2385, %v1209
        %v2582 = vmul.f32 %v2386, %v1210
        %v2583 = vmul.f32 %v2387, %v1211
        %v2584 = vmul.f32 %v2388, %v1212
        %v2585 = vmul.f32 %v2389, %v1213
        %v2586 = vmul.f32 %v2390, %v1214
        %v2587 = vmul.f32 %v2391, %v1215
        %v2588 = vmul.f32 %v2392, %v1216
        %v2589 = vmul.f32 %v2393, %v1217
        %v2590 = vmul.f32 %v2394, %v1218
        %v2591 = vmul.f32 %v2395, %v1219
        %v2592 = vmul.f32 %v2396, %v1220
        %v2593 = vmul.f32 %v2397, %v1221
        %v2594 = vmul.f32 %v2398, %v1222
        %v2595 = vmul.f32 %v2399, %v1223
        %v2596 = vmul.f32 %v2400, %v1224
        %v2597 = vmul.f32 %v2401, %v1225
        %v2598 = vmul.f32 %v2402, %v1226
        %v2599 = vmul.f32 %v2403, %v1227
        %v2600 = vmul.f32 %v2404, %v1228
        %v2601 = vmul.f32 %v2405, %v1229
        %v2602 = vmul.f32 %v2406, %v1230
        %v2603 = vmul.f32 %v2407, %v1231
        %v2604 = vmul.f32 %v2408, %v1232
        %v2605 = vmul.f32 %v2409, %v1233
        %v2606 = vmul.f32 %v2410, %v1234
        %v2607 = vmul.f32 %v2411, %v1235
        %v2608 = vmul.f32 %v2412, %v1236
        %v2609 = vmul.f32 %v2413, %v1237
        %v2610 = vmul.f32 %v2414, %v1238
        %v2611 = vmul.f32 %v2415, %v1239
        %v2612 = vmul.f32 %v2416, %v1240
        %v2613 = vmul.f32 %v2417, %v1241
        %v2614 = vmul.f32 %v2418, %v1242
        %v2615 = vmul.f32 %v2419, %v1243
        %v2616 = vmul.f32 %v2420, %v1244
        %v2617 = vmul.f32 %v2421, %v1245
        %v2618 = vmul.f32 %v2422, %v1246
        %v2619 = vmul.f32 %v2423, %v1247
        %v2620 = vmul.f32 %v2424, %v1248
        %v2621 = vmul.f32 %v2425, %v1249
        %v2622 = vmul.f32 %v2426, %v1250
        %v2623 = vmul.f32 %v2427, %v1251
        %v2624 = vmul.f32 %v2428, %v1252
        %v2625 = vmul.f32 %v2429, %v1253
        %v2626 = vmul.f32 %v2430, %v1254
        %v2627 = vmul.f32 %v2431, %v1255
        %v2628 = vmul.f32 %v2432, %v1256
        %v2629 = vmul.f32 %v2433, %v1257
        %v2630 = vmul.f32 %v2434, %v1258
        %v2631 = vmul.f32 %v2435, %v1259
        %v2632 = vmul.f32 %v2436, %v1260
        %v2633 = vmul.f32 %v2437, %v1261
        %v2634 = vmul.f32 %v2438, %v1262
        %v2635 = vmul.f32 %v2439, %v1263
        %v2636 = vmul.f32 %v2440, %v1264
        %v2637 = vmul.f32 %v2441, %v1265
        %v2638 = vmul.f32 %v2442, %v1266
        %v2639 = vmul.f32 %v2443, %v1267
        %v2640 = vmul.f32 %v2444, %v1268
        %v2641 = vmul.f32 %v2445, %v1269
        %v2642 = vmul.f32 %v2446, %v1270
        %v2643 = vmul.f32 %v2447, %v1271
        %v2644 = vmul.f32 %v2448, %v1272
        %v2645 = vmul.f32 %v2449, %v1273
        %v2646 = vmul.f32 %v2450, %v1274
        %v2647 = vmul.f32 %v2451, %v1275
        %v2648 = vmul.f32 %v2452, %v1276
        %v2649 = vmul.f32 %v2453, %v1277
        %v2650 = vmul.f32 %v2454, %v1278
        %v2651 = vmul.f32 %v2455, %v1279
        %v2652 = vmul.f32 %v2456, %v1280
        %v2653 = vmul.f32 %v2457, %v1281
        %v2654 = vmul.f32 %v2458, %v1282
        %v2655 = vmul.f32 %v2459, %v1283
        %v2656 = vmul.f32 %v2460, %v1284
        %v2657 = vmul.f32 %v2461, %v1285
        %v2658 = vmul.f32 %v2462, %v1286
        %v2659 = vmul.f32 %v2463, %v1287
        %v2660 = vmul.f32 %v2464, %v1288
        %v2661 = vmul.f32 %v2465, %v1289
        %v2662 = vmul.f32 %v2466, %v1290
        %v2663 = vmul.f32 %v2467, %v1291
        %v2664 = vmul.f32 %v2468, %v1292
        %v2665 = vmul.f32 %v2469, %v1293
        %v2666 = vmul.f32 %v2470, %v1294
        %v2667 = vmul.f32 %v2471, %v1295
        %v2668 = vmul.f32 %v2472, %v1296
        %v2669 = vmul.f32 %v2473, %v1297
        %v2670 = vmul.f32 %v2474, %v1298
        %v2671 = vmul.f32 %v2475, %v1299
        %v2672 = vmul.f32 %v2476, %v1300
        %v2673 = vmul.f32 %v2477, %v1301
        %v2674 = vmul.f32 %v2478, %v1302
        %v2675 = vmul.f32 %v2479, %v1303
        %v2676 = vmul.f32 %v2480, %v1304
        %v2677 = vmul.f32 %v2481, %v1305
        %v2678 = vmul.f32 %v2482, %v1306
        %v2679 = vmul.f32 %v2483, %v1307
        %v2680 = vmul.f32 %v2484, %v1308
        %v2681 = vmul.f32 %v2485, %v1309
        %v2682 = vmul.f32 %v2486, %v1310
        %v2683 = vmul.f32 %v2487, %v1311
        %v2684 = vmul.f32 %v2488, %v1312
        %v2685 = vmul.f32 %v2489, %v1313
        %v2686 = vadd.f32 %v2490, 0.2548296
        %v2687 = vadd.f32 %v2491, 0.2548296
        %v2688 = vadd.f32 %v2492, 0.2548296
        %v2689 = vadd.f32 %v2493, 0.2548296
        %v2690 = vadd.f32 %v2494, 0.2548296
        %v2691 = vadd.f32 %v2495, 0.2548296
        %v2692 = vadd.f32 %v2496, 0.2548296
        %v2693 = vadd.f32 %v2497, 0.2548296
        %v2694 = vadd.f32 %v2498, 0.2548296
        %v2695 = vadd.f32 %v2499, 0.2548296
        %v2696 = vadd.f32 %v2500, 0.2548296
        %v2697 = vadd.f32 %v2501, 0.2548296
        %v2698 = vadd.f32 %v2502, 0.2548296
        %v2699 = vadd.f32 %v2503, 0.2548296
        %v2700 = vadd.f32 %v2504, 0.2548296
        %v2701 = vadd.f32 %v2505, 0.2548296
        %v2702 = vadd.f32 %v2506, 0.2548296
        %v2703 = vadd.f32 %v2507, 0.2548296
        %v2704 = vadd.f32 %v2508, 0.2548296
        %v2705 = vadd.f32 %v2509, 0.2548296
        %v2706 = vadd.f32 %v2510, 0.2548296
        %v2707 = vadd.f32 %v2511, 0.2548296
        %v2708 = vadd.f32 %v2512, 0.2548296
        %v2709 = vadd.f32 %v2513, 0.2548296
        %v2710 = vadd.f32 %v2514, 0.2548296
        %v2711 = vadd.f32 %v2515, 0.2548296
        %v2712 = vadd.f32 %v2516, 0.2548296
        %v2713 = vadd.f32 %v2517, 0.2548296
        %v2714 = vadd.f32 %v2518, 0.2548296
        %v2715 = vadd.f32 %v2519, 0.2548296
        %v2716 = vadd.f32 %v2520, 0.2548296
        %v2717 = vadd.f32 %v2521, 0.2548296
        %v2718 = vadd.f32 %v2522, 0.2548296
        %v2719 = vadd.f32 %v2523, 0.2548296
        %v2720 = vadd.f32 %v2524, 0.2548296
        %v2721 = vadd.f32 %v2525, 0.2548296
        %v2722 = vadd.f32 %v2526, 0.2548296
        %v2723 = vadd.f32 %v2527, 0.2548296
        %v2724 = vadd.f32 %v2528, 0.2548296
        %v2725 = vadd.f32 %v2529, 0.2548296
        %v2726 = vadd.f32 %v2530, 0.2548296
        %v2727 = vadd.f32 %v2531, 0.2548296
        %v2728 = vadd.f32 %v2532, 0.2548296
        %v2729 = vadd.f32 %v2533, 0.2548296
        %v2730 = vadd.f32 %v2534, 0.2548296
        %v2731 = vadd.f32 %v2535, 0.2548296
        %v2732 = vadd.f32 %v2536, 0.2548296
        %v2733 = vadd.f32 %v2537, 0.2548296
        %v2734 = vadd.f32 %v2538, 0.2548296
        %v2735 = vadd.f32 %v2539, 0.2548296
        %v2736 = vadd.f32 %v2540, 0.2548296
        %v2737 = vadd.f32 %v2541, 0.2548296
        %v2738 = vadd.f32 %v2542, 0.2548296
        %v2739 = vadd.f32 %v2543, 0.2548296
        %v2740 = vadd.f32 %v2544, 0.2548296
        %v2741 = vadd.f32 %v2545, 0.2548296
        %v2742 = vadd.f32 %v2546, 0.2548296
        %v2743 = vadd.f32 %v2547, 0.2548296
        %v2744 = vadd.f32 %v2548, 0.2548296
        %v2745 = vadd.f32 %v2549, 0.2548296
        %v2746 = vadd.f32 %v2550, 0.2548296
        %v2747 = vadd.f32 %v2551, 0.2548296
        %v2748 = vadd.f32 %v2552, 0.2548296
        %v2749 = vadd.f32 %v2553, 0.2548296
        %v2750 = vadd.f32 %v2554, 0.2548296
        %v2751 = vadd.f32 %v2555, 0.2548296
        %v2752 = vadd.f32 %v2556, 0.2548296
        %v2753 = vadd.f32 %v2557, 0.2548296
        %v2754 = vadd.f32 %v2558, 0.2548296
        %v2755 = vadd.f32 %v2559, 0.2548296
        %v2756 = vadd.f32 %v2560, 0.2548296
        %v2757 = vadd.f32 %v2561, 0.2548296
        %v2758 = vadd.f32 %v2562, 0.2548296
        %v2759 = vadd.f32 %v2563, 0.2548296
        %v2760 = vadd.f32 %v2564, 0.2548296
        %v2761 = vadd.f32 %v2565, 0.2548296
        %v2762 = vadd.f32 %v2566, 0.2548296
        %v2763 = vadd.f32 %v2567, 0.2548296
        %v2764 = vadd.f32 %v2568, 0.2548296
        %v2765 = vadd.f32 %v2569, 0.2548296
        %v2766 = vadd.f32 %v2570, 0.2548296
        %v2767 = vadd.f32 %v2571, 0.2548296
        %v2768 = vadd.f32 %v2572, 0.2548296
        %v2769 = vadd.f32 %v2573, 0.2548296
        %v2770 = vadd.f32 %v2574, 0.2548296
        %v2771 = vadd.f32 %v2575, 0.2548296
        %v2772 = vadd.f32 %v2576, 0.2548296
        %v2773 = vadd.f32 %v2577, 0.2548296
        %v2774 = vadd.f32 %v2578, 0.2548296
        %v2775 = vadd.f32 %v2579, 0.2548296
        %v2776 = vadd.f32 %v2580, 0.2548296
        %v2777 = vadd.f32 %v2581, 0.2548296
        %v2778 = vadd.f32 %v2582, 0.2548296
        %v2779 = vadd.f32 %v2583, 0.2548296
        %v2780 = vadd.f32 %v2584, 0.2548296
        %v2781 = vadd.f32 %v2585, 0.2548296
        %v2782 = vadd.f32 %v2586, 0.2548296
        %v2783 = vadd.f32 %v2587, 0.2548296
        %v2784 = vadd.f32 %v2588, 0.2548296
        %v2785 = vadd.f32 %v2589, 0.2548296
        %v2786 = vadd.f32 %v2590, 0.2548296
        %v2787 = vadd.f32 %v2591, 0.2548296
        %v2788 = vadd.f32 %v2592, 0.2548296
        %v2789 = vadd.f32 %v2593, 0.2548296
        %v2790 = vadd.f32 %v2594, 0.2548296
        %v2791 = vadd.f32 %v2595, 0.2548296
        %v2792 = vadd.f32 %v2596, 0.2548296
        %v2793 = vadd.f32 %v2597, 0.2548296
        %v2794 = vadd.f32 %v2598, 0.2548296
        %v2795 = vadd.f32 %v2599, 0.2548296
        %v2796 = vadd.f32 %v2600, 0.2548296
        %v2797 = vadd.f32 %v2601, 0.2548296
        %v2798 = vadd.f32 %v2602, 0.2548296
        %v2799 = vadd.f32 %v2603, 0.2548296
        %v2800 = vadd.f32 %v2604, 0.2548296
        %v2801 = vadd.f32 %v2605, 0.2548296
        %v2802 = vadd.f32 %v2606, 0.2548296
        %v2803 = vadd.f32 %v2607, 0.2548296
        %v2804 = vadd.f32 %v2608, 0.2548296
        %v2805 = vadd.f32 %v2609, 0.2548296
        %v2806 = vadd.f32 %v2610, 0.2548296
        %v2807 = vadd.f32 %v2611, 0.2548296
        %v2808 = vadd.f32 %v2612, 0.2548296
        %v2809 = vadd.f32 %v2613, 0.2548296
        %v2810 = vadd.f32 %v2614, 0.2548296
        %v2811 = vadd.f32 %v2615, 0.2548296
        %v2812 = vadd.f32 %v2616, 0.2548296
        %v2813 = vadd.f32 %v2617, 0.2548296
        %v2814 = vadd.f32 %v2618, 0.2548296
        %v2815 = vadd.f32 %v2619, 0.2548296
        %v2816 = vadd.f32 %v2620, 0.2548296
        %v2817 = vadd.f32 %v2621, 0.2548296
        %v2818 = vadd.f32 %v2622, 0.2548296
        %v2819 = vadd.f32 %v2623, 0.2548296
        %v2820 = vadd.f32 %v2624, 0.2548296
        %v2821 = vadd.f32 %v2625, 0.2548296
        %v2822 = vadd.f32 %v2626, 0.2548296
        %v2823 = vadd.f32 %v2627, 0.2548296
        %v2824 = vadd.f32 %v2628, 0.2548296
        %v2825 = vadd.f32 %v2629, 0.2548296
        %v2826 = vadd.f32 %v2630, 0.2548296
        %v2827 = vadd.f32 %v2631, 0.2548296
        %v2828 = vadd.f32 %v2632, 0.2548296
        %v2829 = vadd.f32 %v2633, 0.2548296
        %v2830 = vadd.f32 %v2634, 0.2548296
        %v2831 = vadd.f32 %v2635, 0.2548296
        %v2832 = vadd.f32 %v2636, 0.2548296
        %v2833 = vadd.f32 %v2637, 0.2548296
        %v2834 = vadd.f32 %v2638, 0.2548296
        %v2835 = vadd.f32 %v2639, 0.2548296
        %v2836 = vadd.f32 %v2640, 0.2548296
        %v2837 = vadd.f32 %v2641, 0.2548296
        %v2838 = vadd.f32 %v2642, 0.2548296
        %v2839 = vadd.f32 %v2643, 0.2548296
        %v2840 = vadd.f32 %v2644, 0.2548296
        %v2841 = vadd.f32 %v2645, 0.2548296
        %v2842 = vadd.f32 %v2646, 0.2548296
        %v2843 = vadd.f32 %v2647, 0.2548296
        %v2844 = vadd.f32 %v2648, 0.2548296
        %v2845 = vadd.f32 %v2649, 0.2548296
        %v2846 = vadd.f32 %v2650, 0.2548296
        %v2847 = vadd.f32 %v2651, 0.2548296
        %v2848 = vadd.f32 %v2652, 0.2548296
        %v2849 = vadd.f32 %v2653, 0.2548296
        %v2850 = vadd.f32 %v2654, 0.2548296
        %v2851 = vadd.f32 %v2655, 0.2548296
        %v2852 = vadd.f32 %v2656, 0.2548296
        %v2853 = vadd.f32 %v2657, 0.2548296
        %v2854 = vadd.f32 %v2658, 0.2548296
        %v2855 = vadd.f32 %v2659, 0.2548296
        %v2856 = vadd.f32 %v2660, 0.2548296
        %v2857 = vadd.f32 %v2661, 0.2548296
        %v2858 = vadd.f32 %v2662, 0.2548296
        %v2859 = vadd.f32 %v2663, 0.2548296
        %v2860 = vadd.f32 %v2664, 0.2548296
        %v2861 = vadd.f32 %v2665, 0.2548296
        %v2862 = vadd.f32 %v2666, 0.2548296
        %v2863 = vadd.f32 %v2667, 0.2548296
        %v2864 = vadd.f32 %v2668, 0.2548296
        %v2865 = vadd.f32 %v2669, 0.2548296
        %v2866 = vadd.f32 %v2670, 0.2548296
        %v2867 = vadd.f32 %v2671, 0.2548296
        %v2868 = vadd.f32 %v2672, 0.2548296
        %v2869 = vadd.f32 %v2673, 0.2548296
        %v2870 = vadd.f32 %v2674, 0.2548296
        %v2871 = vadd.f32 %v2675, 0.2548296
        %v2872 = vadd.f32 %v2676, 0.2548296
        %v2873 = vadd.f32 %v2677, 0.2548296
        %v2874 = vadd.f32 %v2678, 0.2548296
        %v2875 = vadd.f32 %v2679, 0.2548296
        %v2876 = vadd.f32 %v2680, 0.2548296
        %v2877 = vadd.f32 %v2681, 0.2548296
        %v2878 = vadd.f32 %v2682, 0.2548296
        %v2879 = vadd.f32 %v2683, 0.2548296
        %v2880 = vadd.f32 %v2684, 0.2548296
        %v2881 = vadd.f32 %v2685, 0.2548296
        %v2882 = vmul.f32 %v2686, %v1118
        %v2883 = vmul.f32 %v2687, %v1119
        %v2884 = vmul.f32 %v2688, %v1120
        %v2885 = vmul.f32 %v2689, %v1121
        %v2886 = vmul.f32 %v2690, %v1122
        %v2887 = vmul.f32 %v2691, %v1123
        %v2888 = vmul.f32 %v2692, %v1124
        %v2889 = vmul.f32 %v2693, %v1125
        %v2890 = vmul.f32 %v2694, %v1126
        %v2891 = vmul.f32 %v2695, %v1127
        %v2892 = vmul.f32 %v2696, %v1128
        %v2893 = vmul.f32 %v2697, %v1129
        %v2894 = vmul.f32 %v2698, %v1130
        %v2895 = vmul.f32 %v2699, %v1131
        %v2896 = vmul.f32 %v2700, %v1132
        %v2897 = vmul.f32 %v2701, %v1133
        %v2898 = vmul.f32 %v2702, %v1134
        %v2899 = vmul.f32 %v2703, %v1135
        %v2900 = vmul.f32 %v2704, %v1136
        %v2901 = vmul.f32 %v2705, %v1137
        %v2902 = vmul.f32 %v2706, %v1138
        %v2903 = vmul.f32 %v2707, %v1139
        %v2904 = vmul.f32 %v2708, %v1140
        %v2905 = vmul.f32 %v2709, %v1141
        %v2906 = vmul.f32 %v2710, %v1142
        %v2907 = vmul.f32 %v2711, %v1143
        %v2908 = vmul.f32 %v2712, %v1144
        %v2909 = vmul.f32 %v2713, %v1145
        %v2910 = vmul.f32 %v2714, %v1146
        %v2911 = vmul.f32 %v2715, %v1147
        %v2912 = vmul.f32 %v2716, %v1148
        %v2913 = vmul.f32 %v2717, %v1149
        %v2914 = vmul.f32 %v2718, %v1150
        %v2915 = vmul.f32 %v2719, %v1151
        %v2916 = vmul.f32 %v2720, %v1152
        %v2917 = vmul.f32 %v2721, %v1153
        %v2918 = vmul.f32 %v2722, %v1154
        %v2919 = vmul.f32 %v2723, %v1155
        %v2920 = vmul.f32 %v2724, %v1156
        %v2921 = vmul.f32 %v2725, %v1157
        %v2922 = vmul.f32 %v2726, %v1158
        %v2923 = vmul.f32 %v2727, %v1159
        %v2924 = vmul.f32 %v2728, %v1160
        %v2925 = vmul.f32 %v2729, %v1161
        %v2926 = vmul.f32 %v2730, %v1162
        %v2927 = vmul.f32 %v2731, %v1163
        %v2928 = vmul.f32 %v2732, %v1164
        %v2929 = vmul.f32 %v2733, %v1165
        %v2930 = vmul.f32 %v2734, %v1166
        %v2931 = vmul.f32 %v2735, %v1167
        %v2932 = vmul.f32 %v2736, %v1168
        %v2933 = vmul.f32 %v2737, %v1169
        %v2934 = vmul.f32 %v2738, %v1170
        %v2935 = vmul.f32 %v2739, %v1171
        %v2936 = vmul.f32 %v2740, %v1172
        %v2937 = vmul.f32 %v2741, %v1173
        %v2938 = vmul.f32 %v2742, %v1174
        %v2939 = vmul.f32 %v2743, %v1175
        %v2940 = vmul.f32 %v2744, %v1176
        %v2941 = vmul.f32 %v2745, %v1177
        %v2942 = vmul.f32 %v2746, %v1178
        %v2943 = vmul.f32 %v2747, %v1179
        %v2944 = vmul.f32 %v2748, %v1180
        %v2945 = vmul.f32 %v2749, %v1181
        %v2946 = vmul.f32 %v2750, %v1182
        %v2947 = vmul.f32 %v2751, %v1183
        %v2948 = vmul.f32 %v2752, %v1184
        %v2949 = vmul.f32 %v2753, %v1185
        %v2950 = vmul.f32 %v2754, %v1186
        %v2951 = vmul.f32 %v2755, %v1187
        %v2952 = vmul.f32 %v2756, %v1188
        %v2953 = vmul.f32 %v2757, %v1189
        %v2954 = vmul.f32 %v2758, %v1190
        %v2955 = vmul.f32 %v2759, %v1191
        %v2956 = vmul.f32 %v2760, %v1192
        %v2957 = vmul.f32 %v2761, %v1193
        %v2958 = vmul.f32 %v2762, %v1194
        %v2959 = vmul.f32 %v2763, %v1195
        %v2960 = vmul.f32 %v2764, %v1196
        %v2961 = vmul.f32 %v2765, %v1197
        %v2962 = vmul.f32 %v2766, %v1198
        %v2963 = vmul.f32 %v2767, %v1199
        %v2964 = vmul.f32 %v2768, %v1200
        %v2965 = vmul.f32 %v2769, %v1201
        %v2966 = vmul.f32 %v2770, %v1202
        %v2967 = vmul.f32 %v2771, %v1203
        %v2968 = vmul.f32 %v2772, %v1204
        %v2969 = vmul.f32 %v2773, %v1205
        %v2970 = vmul.f32 %v2774, %v1206
        %v2971 = vmul.f32 %v2775, %v1207
        %v2972 = vmul.f32 %v2776, %v1208
        %v2973 = vmul.f32 %v2777, %v1209
        %v2974 = vmul.f32 %v2778, %v1210
        %v2975 = vmul.f32 %v2779, %v1211
        %v2976 = vmul.f32 %v2780, %v1212
        %v2977 = vmul.f32 %v2781, %v1213
        %v2978 = vmul.f32 %v2782, %v1214
        %v2979 = vmul.f32 %v2783, %v1215
        %v2980 = vmul.f32 %v2784, %v1216
        %v2981 = vmul.f32 %v2785, %v1217
        %v2982 = vmul.f32 %v2786, %v1218
        %v2983 = vmul.f32 %v2787, %v1219
        %v2984 = vmul.f32 %v2788, %v1220
        %v2985 = vmul.f32 %v2789, %v1221
        %v2986 = vmul.f32 %v2790, %v1222
        %v2987 = vmul.f32 %v2791, %v1223
        %v2988 = vmul.f32 %v2792, %v1224
        %v2989 = vmul.f32 %v2793, %v1225
        %v2990 = vmul.f32 %v2794, %v1226
        %v2991 = vmul.f32 %v2795, %v1227
        %v2992 = vmul.f32 %v2796, %v1228
        %v2993 = vmul.f32 %v2797, %v1229
        %v2994 = vmul.f32 %v2798, %v1230
        %v2995 = vmul.f32 %v2799, %v1231
        %v2996 = vmul.f32 %v2800, %v1232
        %v2997 = vmul.f32 %v2801, %v1233
        %v2998 = vmul.f32 %v2802, %v1234
        %v2999 = vmul.f32 %v2803, %v1235
        %v3000 = vmul.f32 %v2804, %v1236
        %v3001 = vmul.f32 %v2805, %v1237
        %v3002 = vmul.f32 %v2806, %v1238
        %v3003 = vmul.f32 %v2807, %v1239
        %v3004 = vmul.f32 %v2808, %v1240
        %v3005 = vmul.f32 %v2809, %v1241
        %v3006 = vmul.f32 %v2810, %v1242
        %v3007 = vmul.f32 %v2811, %v1243
        %v3008 = vmul.f32 %v2812, %v1244
        %v3009 = vmul.f32 %v2813, %v1245
        %v3010 = vmul.f32 %v2814, %v1246
        %v3011 = vmul.f32 %v2815, %v1247
        %v3012 = vmul.f32 %v2816, %v1248
        %v3013 = vmul.f32 %v2817, %v1249
        %v3014 = vmul.f32 %v2818, %v1250
        %v3015 = vmul.f32 %v2819, %v1251
        %v3016 = vmul.f32 %v2820, %v1252
        %v3017 = vmul.f32 %v2821, %v1253
        %v3018 = vmul.f32 %v2822, %v1254
        %v3019 = vmul.f32 %v2823, %v1255
        %v3020 = vmul.f32 %v2824, %v1256
        %v3021 = vmul.f32 %v2825, %v1257
        %v3022 = vmul.f32 %v2826, %v1258
        %v3023 = vmul.f32 %v2827, %v1259
        %v3024 = vmul.f32 %v2828, %v1260
        %v3025 = vmul.f32 %v2829, %v1261
        %v3026 = vmul.f32 %v2830, %v1262
        %v3027 = vmul.f32 %v2831, %v1263
        %v3028 = vmul.f32 %v2832, %v1264
        %v3029 = vmul.f32 %v2833, %v1265
        %v3030 = vmul.f32 %v2834, %v1266
        %v3031 = vmul.f32 %v2835, %v1267
        %v3032 = vmul.f32 %v2836, %v1268
        %v3033 = vmul.f32 %v2837, %v1269
        %v3034 = vmul.f32 %v2838, %v1270
        %v3035 = vmul.f32 %v2839, %v1271
        %v3036 = vmul.f32 %v2840, %v1272
        %v3037 = vmul.f32 %v2841, %v1273
        %v3038 = vmul.f32 %v2842, %v1274
        %v3039 = vmul.f32 %v2843, %v1275
        %v3040 = vmul.f32 %v2844, %v1276
        %v3041 = vmul.f32 %v2845, %v1277
        %v3042 = vmul.f32 %v2846, %v1278
        %v3043 = vmul.f32 %v2847, %v1279
        %v3044 = vmul.f32 %v2848, %v1280
        %v3045 = vmul.f32 %v2849, %v1281
        %v3046 = vmul.f32 %v2850, %v1282
        %v3047 = vmul.f32 %v2851, %v1283
        %v3048 = vmul.f32 %v2852, %v1284
        %v3049 = vmul.f32 %v2853, %v1285
        %v3050 = vmul.f32 %v2854, %v1286
        %v3051 = vmul.f32 %v2855, %v1287
        %v3052 = vmul.f32 %v2856, %v1288
        %v3053 = vmul.f32 %v2857, %v1289
        %v3054 = vmul.f32 %v2858, %v1290
        %v3055 = vmul.f32 %v2859, %v1291
        %v3056 = vmul.f32 %v2860, %v1292
        %v3057 = vmul.f32 %v2861, %v1293
        %v3058 = vmul.f32 %v2862, %v1294
        %v3059 = vmul.f32 %v2863, %v1295
        %v3060 = vmul.f32 %v2864, %v1296
        %v3061 = vmul.f32 %v2865, %v1297
        %v3062 = vmul.f32 %v2866, %v1298
        %v3063 = vmul.f32 %v2867, %v1299
        %v3064 = vmul.f32 %v2868, %v1300
        %v3065 = vmul.f32 %v2869, %v1301
        %v3066 = vmul.f32 %v2870, %v1302
        %v3067 = vmul.f32 %v2871, %v1303
        %v3068 = vmul.f32 %v2872, %v1304
        %v3069 = vmul.f32 %v2873, %v1305
        %v3070 = vmul.f32 %v2874, %v1306
        %v3071 = vmul.f32 %v2875, %v1307
        %v3072 = vmul.f32 %v2876, %v1308
        %v3073 = vmul.f32 %v2877, %v1309
        %v3074 = vmul.f32 %v2878, %v1310
        %v3075 = vmul.f32 %v2879, %v1311
        %v3076 = vmul.f32 %v2880, %v1312
        %v3077 = vmul.f32 %v2881, %v1313
        %v3078 = vsub.f32 0.0, %v530
        %v3079 = vsub.f32 0.0, %v531
        %v3080 = vsub.f32 0.0, %v532
        %v3081 = vsub.f32 0.0, %v533
        %v3082 = vsub.f32 0.0, %v534
        %v3083 = vsub.f32 0.0, %v535
        %v3084 = vsub.f32 0.0, %v536
        %v3085 = vsub.f32 0.0, %v537
        %v3086 = vsub.f32 0.0, %v538
        %v3087 = vsub.f32 0.0, %v539
        %v3088 = vsub.f32 0.0, %v540
        %v3089 = vsub.f32 0.0, %v541
        %v3090 = vsub.f32 0.0, %v542
        %v3091 = vsub.f32 0.0, %v543
        %v3092 = vsub.f32 0.0, %v544
        %v3093 = vsub.f32 0.0, %v545
        %v3094 = vsub.f32 0.0, %v546
        %v3095 = vsub.f32 0.0, %v547
        %v3096 = vsub.f32 0.0, %v548
        %v3097 = vsub.f32 0.0, %v549
        %v3098 = vsub.f32 0.0, %v550
        %v3099 = vsub.f32 0.0, %v551
        %v3100 = vsub.f32 0.0, %v552
        %v3101 = vsub.f32 0.0, %v553
        %v3102 = vsub.f32 0.0, %v554
        %v3103 = vsub.f32 0.0, %v555
        %v3104 = vsub.f32 0.0, %v556
        %v3105 = vsub.f32 0.0, %v557
        %v3106 = vsub.f32 0.0, %v558
        %v3107 = vsub.f32 0.0, %v559
        %v3108 = vsub.f32 0.0, %v560
        %v3109 = vsub.f32 0.0, %v561
        %v3110 = vsub.f32 0.0, %v562
        %v3111 = vsub.f32 0.0, %v563
        %v3112 = vsub.f32 0.0, %v564
        %v3113 = vsub.f32 0.0, %v565
        %v3114 = vsub.f32 0.0, %v566
        %v3115 = vsub.f32 0.0, %v567
        %v3116 = vsub.f32 0.0, %v568
        %v3117 = vsub.f32 0.0, %v569
        %v3118 = vsub.f32 0.0, %v570
        %v3119 = vsub.f32 0.0, %v571
        %v3120 = vsub.f32 0.0, %v572
        %v3121 = vsub.f32 0.0, %v573
        %v3122 = vsub.f32 0.0, %v574
        %v3123 = vsub.f32 0.0, %v575
        %v3124 = vsub.f32 0.0, %v576
        %v3125 = vsub.f32 0.0, %v577
        %v3126 = vsub.f32 0.0, %v578
        %v3127 = vsub.f32 0.0, %v579
        %v3128 = vsub.f32 0.0, %v580
        %v3129 = vsub.f32 0.0, %v581
        %v3130 = vsub.f32 0.0, %v582
        %v3131 = vsub.f32 0.0, %v583
        %v3132 = vsub.f32 0.0, %v584
        %v3133 = vsub.f32 0.0, %v585
        %v3134 = vsub.f32 0.0, %v586
        %v3135 = vsub.f32 0.0, %v587
        %v3136 = vsub.f32 0.0, %v588
        %v3137 = vsub.f32 0.0, %v589
        %v3138 = vsub.f32 0.0, %v590
        %v3139 = vsub.f32 0.0, %v591
        %v3140 = vsub.f32 0.0, %v592
        %v3141 = vsub.f32 0.0, %v593
        %v3142 = vsub.f32 0.0, %v594
        %v3143 = vsub.f32 0.0, %v595
        %v3144 = vsub.f32 0.0, %v596
        %v3145 = vsub.f32 0.0, %v597
        %v3146 = vsub.f32 0.0, %v598
        %v3147 = vsub.f32 0.0, %v599
        %v3148 = vsub.f32 0.0, %v600
        %v3149 = vsub.f32 0.0, %v601
        %v3150 = vsub.f32 0.0, %v602
        %v3151 = vsub.f32 0.0, %v603
        %v3152 = vsub.f32 0.0, %v604
        %v3153 = vsub.f32 0.0, %v605
        %v3154 = vsub.f32 0.0, %v606
        %v3155 = vsub.f32 0.0, %v607
        %v3156 = vsub.f32 0.0, %v608
        %v3157 = vsub.f32 0.0, %v609
        %v3158 = vsub.f32 0.0, %v610
        %v3159 = vsub.f32 0.0, %v611
        %v3160 = vsub.f32 0.0, %v612
        %v3161 = vsub.f32 0.0, %v613
        %v3162 = vsub.f32 0.0, %v614
        %v3163 = vsub.f32 0.0, %v615
        %v3164 = vsub.f32 0.0, %v616
        %v3165 = vsub.f32 0.0, %v617
        %v3166 = vsub.f32 0.0, %v618
        %v3167 = vsub.f32 0.0, %v619
        %v3168 = vsub.f32 0.0, %v620
        %v3169 = vsub.f32 0.0, %v621
        %v3170 = vsub.f32 0.0, %v622
        %v3171 = vsub.f32 0.0, %v623
        %v3172 = vsub.f32 0.0, %v624
        %v3173 = vsub.f32 0.0, %v625
        %v3174 = vsub.f32 0.0, %v626
        %v3175 = vsub.f32 0.0, %v627
        %v3176 = vsub.f32 0.0, %v628
        %v3177 = vsub.f32 0.0, %v629
        %v3178 = vsub.f32 0.0, %v630
        %v3179 = vsub.f32 0.0, %v631
        %v3180 = vsub.f32 0.0, %v632
        %v3181 = vsub.f32 0.0, %v633
        %v3182 = vsub.f32 0.0, %v634
        %v3183 = vsub.f32 0.0, %v635
        %v3184 = vsub.f32 0.0, %v636
        %v3185 = vsub.f32 0.0, %v637
        %v3186 = vsub.f32 0.0, %v638
        %v3187 = vsub.f32 0.0, %v639
        %v3188 = vsub.f32 0.0, %v640
        %v3189 = vsub.f32 0.0, %v641
        %v3190 = vsub.f32 0.0, %v642
        %v3191 = vsub.f32 0.0, %v643
        %v3192 = vsub.f32 0.0, %v644
        %v3193 = vsub.f32 0.0, %v645
        %v3194 = vsub.f32 0.0, %v646
        %v3195 = vsub.f32 0.0, %v647
        %v3196 = vsub.f32 0.0, %v648
        %v3197 = vsub.f32 0.0, %v649
        %v3198 = vsub.f32 0.0, %v650
        %v3199 = vsub.f32 0.0, %v651
        %v3200 = vsub.f32 0.0, %v652
        %v3201 = vsub.f32 0.0, %v653
        %v3202 = vsub.f32 0.0, %v654
        %v3203 = vsub.f32 0.0, %v655
        %v3204 = vsub.f32 0.0, %v656
        %v3205 = vsub.f32 0.0, %v657
        %v3206 = vsub.f32 0.0, %v658
        %v3207 = vsub.f32 0.0, %v659
        %v3208 = vsub.f32 0.0, %v660
        %v3209 = vsub.f32 0.0, %v661
        %v3210 = vsub.f32 0.0, %v662
        %v3211 = vsub.f32 0.0, %v663
        %v3212 = vsub.f32 0.0, %v664
        %v3213 = vsub.f32 0.0, %v665
        %v3214 = vsub.f32 0.0, %v666
        %v3215 = vsub.f32 0.0, %v667
        %v3216 = vsub.f32 0.0, %v668
        %v3217 = vsub.f32 0.0, %v669
        %v3218 = vsub.f32 0.0, %v670
        %v3219 = vsub.f32 0.0, %v671
        %v3220 = vsub.f32 0.0, %v672
        %v3221 = vsub.f32 0.0, %v673
        %v3222 = vsub.f32 0.0, %v674
        %v3223 = vsub.f32 0.0, %v675
        %v3224 = vsub.f32 0.0, %v676
        %v3225 = vsub.f32 0.0, %v677
        %v3226 = vsub.f32 0.0, %v678
        %v3227 = vsub.f32 0.0, %v679
        %v3228 = vsub.f32 0.0, %v680
        %v3229 = vsub.f32 0.0, %v681
        %v3230 = vsub.f32 0.0, %v682
        %v3231 = vsub.f32 0.0, %v683
        %v3232 = vsub.f32 0.0, %v684
        %v3233 = vsub.f32 0.0, %v685
        %v3234 = vsub.f32 0.0, %v686
        %v3235 = vsub.f32 0.0, %v687
        %v3236 = vsub.f32 0.0, %v688
        %v3237 = vsub.f32 0.0, %v689
        %v3238 = vsub.f32 0.0, %v690
        %v3239 = vsub.f32 0.0, %v691
        %v3240 = vsub.f32 0.0, %v692
        %v3241 = vsub.f32 0.0, %v693
        %v3242 = vsub.f32 0.0, %v694
        %v3243 = vsub.f32 0.0, %v695
        %v3244 = vsub.f32 0.0, %v696
        %v3245 = vsub.f32 0.0, %v697
        %v3246 = vsub.f32 0.0, %v698
        %v3247 = vsub.f32 0.0, %v699
        %v3248 = vsub.f32 0.0, %v700
        %v3249 = vsub.f32 0.0, %v701
        %v3250 = vsub.f32 0.0, %v702
        %v3251 = vsub.f32 0.0, %v703
        %v3252 = vsub.f32 0.0, %v704
        %v3253 = vsub.f32 0.0, %v705
        %v3254 = vsub.f32 0.0, %v706
        %v3255 = vsub.f32 0.0, %v707
        %v3256 = vsub.f32 0.0, %v708
        %v3257 = vsub.f32 0.0, %v709
        %v3258 = vsub.f32 0.0, %v710
        %v3259 = vsub.f32 0.0, %v711
        %v3260 = vsub.f32 0.0, %v712
        %v3261 = vsub.f32 0.0, %v713
        %v3262 = vsub.f32 0.0, %v714
        %v3263 = vsub.f32 0.0, %v715
        %v3264 = vsub.f32 0.0, %v716
        %v3265 = vsub.f32 0.0, %v717
        %v3266 = vsub.f32 0.0, %v718
        %v3267 = vsub.f32 0.0, %v719
        %v3268 = vsub.f32 0.0, %v720
        %v3269 = vsub.f32 0.0, %v721
        %v3270 = vsub.f32 0.0, %v722
        %v3271 = vsub.f32 0.0, %v723
        %v3272 = vsub.f32 0.0, %v724
        %v3273 = vsub.f32 0.0, %v725
        %v3274 = vmul.f32 %v3078, %v530
        %v3275 = vmul.f32 %v3079, %v531
        %v3276 = vmul.f32 %v3080, %v532
        %v3277 = vmul.f32 %v3081, %v533
        %v3278 = vmul.f32 %v3082, %v534
        %v3279 = vmul.f32 %v3083, %v535
        %v3280 = vmul.f32 %v3084, %v536
        %v3281 = vmul.f32 %v3085, %v537
        %v3282 = vmul.f32 %v3086, %v538
        %v3283 = vmul.f32 %v3087, %v539
        %v3284 = vmul.f32 %v3088, %v540
        %v3285 = vmul.f32 %v3089, %v541
        %v3286 = vmul.f32 %v3090, %v542
        %v3287 = vmul.f32 %v3091, %v543
        %v3288 = vmul.f32 %v3092, %v544
        %v3289 = vmul.f32 %v3093, %v545
        %v3290 = vmul.f32 %v3094, %v546
        %v3291 = vmul.f32 %v3095, %v547
        %v3292 = vmul.f32 %v3096, %v548
        %v3293 = vmul.f32 %v3097, %v549
        %v3294 = vmul.f32 %v3098, %v550
        %v3295 = vmul.f32 %v3099, %v551
        %v3296 = vmul.f32 %v3100, %v552
        %v3297 = vmul.f32 %v3101, %v553
        %v3298 = vmul.f32 %v3102, %v554
        %v3299 = vmul.f32 %v3103, %v555
        %v3300 = vmul.f32 %v3104, %v556
        %v3301 = vmul.f32 %v3105, %v557
        %v3302 = vmul.f32 %v3106, %v558
        %v3303 = vmul.f32 %v3107, %v559
        %v3304 = vmul.f32 %v3108, %v560
        %v3305 = vmul.f32 %v3109, %v561
        %v3306 = vmul.f32 %v3110, %v562
        %v3307 = vmul.f32 %v3111, %v563
        %v3308 = vmul.f32 %v3112, %v564
        %v3309 = vmul.f32 %v3113, %v565
        %v3310 = vmul.f32 %v3114, %v566
        %v3311 = vmul.f32 %v3115, %v567
        %v3312 = vmul.f32 %v3116, %v568
        %v3313 = vmul.f32 %v3117, %v569
        %v3314 = vmul.f32 %v3118, %v570
        %v3315 = vmul.f32 %v3119, %v571
        %v3316 = vmul.f32 %v3120, %v572
        %v3317 = vmul.f32 %v3121, %v573
        %v3318 = vmul.f32 %v3122, %v574
        %v3319 = vmul.f32 %v3123, %v575
        %v3320 = vmul.f32 %v3124, %v576
        %v3321 = vmul.f32 %v3125, %v577
        %v3322 = vmul.f32 %v3126, %v578
        %v3323 = vmul.f32 %v3127, %v579
        %v3324 = vmul.f32 %v3128, %v580
        %v3325 = vmul.f32 %v3129, %v581
        %v3326 = vmul.f32 %v3130, %v582
        %v3327 = vmul.f32 %v3131, %v583
        %v3328 = vmul.f32 %v3132, %v584
        %v3329 = vmul.f32 %v3133, %v585
        %v3330 = vmul.f32 %v3134, %v586
        %v3331 = vmul.f32 %v3135, %v587
        %v3332 = vmul.f32 %v3136, %v588
        %v3333 = vmul.f32 %v3137, %v589
        %v3334 = vmul.f32 %v3138, %v590
        %v3335 = vmul.f32 %v3139, %v591
        %v3336 = vmul.f32 %v3140, %v592
        %v3337 = vmul.f32 %v3141, %v593
        %v3338 = vmul.f32 %v3142, %v594
        %v3339 = vmul.f32 %v3143, %v595
        %v3340 = vmul.f32 %v3144, %v596
        %v3341 = vmul.f32 %v3145, %v597
        %v3342 = vmul.f32 %v3146, %v598
        %v3343 = vmul.f32 %v3147, %v599
        %v3344 = vmul.f32 %v3148, %v600
        %v3345 = vmul.f32 %v3149, %v601
        %v3346 = vmul.f32 %v3150, %v602
        %v3347 = vmul.f32 %v3151, %v603
        %v3348 = vmul.f32 %v3152, %v604
        %v3349 = vmul.f32 %v3153, %v605
        %v3350 = vmul.f32 %v3154, %v606
        %v3351 = vmul.f32 %v3155, %v607
        %v3352 = vmul.f32 %v3156, %v608
        %v3353 = vmul.f32 %v3157, %v609
        %v3354 = vmul.f32 %v3158, %v610
        %v3355 = vmul.f32 %v3159, %v611
        %v3356 = vmul.f32 %v3160, %v612
        %v3357 = vmul.f32 %v3161, %v613
        %v3358 = vmul.f32 %v3162, %v614
        %v3359 = vmul.f32 %v3163, %v615
        %v3360 = vmul.f32 %v3164, %v616
        %v3361 = vmul.f32 %v3165, %v617
        %v3362 = vmul.f32 %v3166, %v618
        %v3363 = vmul.f32 %v3167, %v619
        %v3364 = vmul.f32 %v3168, %v620
        %v3365 = vmul.f32 %v3169, %v621
        %v3366 = vmul.f32 %v3170, %v622
        %v3367 = vmul.f32 %v3171, %v623
        %v3368 = vmul.f32 %v3172, %v624
        %v3369 = vmul.f32 %v3173, %v625
        %v3370 = vmul.f32 %v3174, %v626
        %v3371 = vmul.f32 %v3175, %v627
        %v3372 = vmul.f32 %v3176, %v628
        %v3373 = vmul.f32 %v3177, %v629
        %v3374 = vmul.f32 %v3178, %v630
        %v3375 = vmul.f32 %v3179, %v631
        %v3376 = vmul.f32 %v3180, %v632
        %v3377 = vmul.f32 %v3181, %v633
        %v3378 = vmul.f32 %v3182, %v634
        %v3379 = vmul.f32 %v3183, %v635
        %v3380 = vmul.f32 %v3184, %v636
        %v3381 = vmul.f32 %v3185, %v637
        %v3382 = vmul.f32 %v3186, %v638
        %v3383 = vmul.f32 %v3187, %v639
        %v3384 = vmul.f32 %v3188, %v640
        %v3385 = vmul.f32 %v3189, %v641
        %v3386 = vmul.f32 %v3190, %v642
        %v3387 = vmul.f32 %v3191, %v643
        %v3388 = vmul.f32 %v3192, %v644
        %v3389 = vmul.f32 %v3193, %v645
        %v3390 = vmul.f32 %v3194, %v646
        %v3391 = vmul.f32 %v3195, %v647
        %v3392 = vmul.f32 %v3196, %v648
        %v3393 = vmul.f32 %v3197, %v649
        %v3394 = vmul.f32 %v3198, %v650
        %v3395 = vmul.f32 %v3199, %v651
        %v3396 = vmul.f32 %v3200, %v652
        %v3397 = vmul.f32 %v3201, %v653
        %v3398 = vmul.f32 %v3202, %v654
        %v3399 = vmul.f32 %v3203, %v655
        %v3400 = vmul.f32 %v3204, %v656
        %v3401 = vmul.f32 %v3205, %v657
        %v3402 = vmul.f32 %v3206, %v658
        %v3403 = vmul.f32 %v3207, %v659
        %v3404 = vmul.f32 %v3208, %v660
        %v3405 = vmul.f32 %v3209, %v661
        %v3406 = vmul.f32 %v3210, %v662
        %v3407 = vmul.f32 %v3211, %v663
        %v3408 = vmul.f32 %v3212, %v664
        %v3409 = vmul.f32 %v3213, %v665
        %v3410 = vmul.f32 %v3214, %v666
        %v3411 = vmul.f32 %v3215, %v667
        %v3412 = vmul.f32 %v3216, %v668
        %v3413 = vmul.f32 %v3217, %v669
        %v3414 = vmul.f32 %v3218, %v670
        %v3415 = vmul.f32 %v3219, %v671
        %v3416 = vmul.f32 %v3220, %v672
        %v3417 = vmul.f32 %v3221, %v673
        %v3418 = vmul.f32 %v3222, %v674
        %v3419 = vmul.f32 %v3223, %v675
        %v3420 = vmul.f32 %v3224, %v676
        %v3421 = vmul.f32 %v3225, %v677
        %v3422 = vmul.f32 %v3226, %v678
        %v3423 = vmul.f32 %v3227, %v679
        %v3424 = vmul.f32 %v3228, %v680
        %v3425 = vmul.f32 %v3229, %v681
        %v3426 = vmul.f32 %v3230, %v682
        %v3427 = vmul.f32 %v3231, %v683
        %v3428 = vmul.f32 %v3232, %v684
        %v3429 = vmul.f32 %v3233, %v685
        %v3430 = vmul.f32 %v3234, %v686
        %v3431 = vmul.f32 %v3235, %v687
        %v3432 = vmul.f32 %v3236, %v688
        %v3433 = vmul.f32 %v3237, %v689
        %v3434 = vmul.f32 %v3238, %v690
        %v3435 = vmul.f32 %v3239, %v691
        %v3436 = vmul.f32 %v3240, %v692
        %v3437 = vmul.f32 %v3241, %v693
        %v3438 = vmul.f32 %v3242, %v694
        %v3439 = vmul.f32 %v3243, %v695
        %v3440 = vmul.f32 %v3244, %v696
        %v3441 = vmul.f32 %v3245, %v697
        %v3442 = vmul.f32 %v3246, %v698
        %v3443 = vmul.f32 %v3247, %v699
        %v3444 = vmul.f32 %v3248, %v700
        %v3445 = vmul.f32 %v3249, %v701
        %v3446 = vmul.f32 %v3250, %v702
        %v3447 = vmul.f32 %v3251, %v703
        %v3448 = vmul.f32 %v3252, %v704
        %v3449 = vmul.f32 %v3253, %v705
        %v3450 = vmul.f32 %v3254, %v706
        %v3451 = vmul.f32 %v3255, %v707
        %v3452 = vmul.f32 %v3256, %v708
        %v3453 = vmul.f32 %v3257, %v709
        %v3454 = vmul.f32 %v3258, %v710
        %v3455 = vmul.f32 %v3259, %v711
        %v3456 = vmul.f32 %v3260, %v712
        %v3457 = vmul.f32 %v3261, %v713
        %v3458 = vmul.f32 %v3262, %v714
        %v3459 = vmul.f32 %v3263, %v715
        %v3460 = vmul.f32 %v3264, %v716
        %v3461 = vmul.f32 %v3265, %v717
        %v3462 = vmul.f32 %v3266, %v718
        %v3463 = vmul.f32 %v3267, %v719
        %v3464 = vmul.f32 %v3268, %v720
        %v3465 = vmul.f32 %v3269, %v721
        %v3466 = vmul.f32 %v3270, %v722
        %v3467 = vmul.f32 %v3271, %v723
        %v3468 = vmul.f32 %v3272, %v724
        %v3469 = vmul.f32 %v3273, %v725
        %v3470 = vmul.f32 %v3274, 1.442695
        %v3471 = vpow.pop %v3470
        %v3472 = vmul.f32 %v3275, 1.442695
        %v3473 = vpow.pop %v3472
        %v3474 = vmul.f32 %v3276, 1.442695
        %v3475 = vpow.pop %v3474
        %v3476 = vmul.f32 %v3277, 1.442695
        %v3477 = vpow.pop %v3476
        %v3478 = vmul.f32 %v3278, 1.442695
        %v3479 = vpow.pop %v3478
        %v3480 = vmul.f32 %v3279, 1.442695
        %v3481 = vpow.pop %v3480
        %v3482 = vmul.f32 %v3280, 1.442695
        %v3483 = vpow.pop %v3482
        %v3484 = vmul.f32 %v3281, 1.442695
        %v3485 = vpow.pop %v3484
        %v3486 = vmul.f32 %v3282, 1.442695
        %v3487 = vpow.pop %v3486
        %v3488 = vmul.f32 %v3283, 1.442695
        %v3489 = vpow.pop %v3488
        %v3490 = vmul.f32 %v3284, 1.442695
        %v3491 = vpow.pop %v3490
        %v3492 = vmul.f32 %v3285, 1.442695
        %v3493 = vpow.pop %v3492
        %v3494 = vmul.f32 %v3286, 1.442695
        %v3495 = vpow.pop %v3494
        %v3496 = vmul.f32 %v3287, 1.442695
        %v3497 = vpow.pop %v3496
        %v3498 = vmul.f32 %v3288, 1.442695
        %v3499 = vpow.pop %v3498
        %v3500 = vmul.f32 %v3289, 1.442695
        %v3501 = vpow.pop %v3500
        %v3502 = vmul.f32 %v3290, 1.442695
        %v3503 = vpow.pop %v3502
        %v3504 = vmul.f32 %v3291, 1.442695
        %v3505 = vpow.pop %v3504
        %v3506 = vmul.f32 %v3292, 1.442695
        %v3507 = vpow.pop %v3506
        %v3508 = vmul.f32 %v3293, 1.442695
        %v3509 = vpow.pop %v3508
        %v3510 = vmul.f32 %v3294, 1.442695
        %v3511 = vpow.pop %v3510
        %v3512 = vmul.f32 %v3295, 1.442695
        %v3513 = vpow.pop %v3512
        %v3514 = vmul.f32 %v3296, 1.442695
        %v3515 = vpow.pop %v3514
        %v3516 = vmul.f32 %v3297, 1.442695
        %v3517 = vpow.pop %v3516
        %v3518 = vmul.f32 %v3298, 1.442695
        %v3519 = vpow.pop %v3518
        %v3520 = vmul.f32 %v3299, 1.442695
        %v3521 = vpow.pop %v3520
        %v3522 = vmul.f32 %v3300, 1.442695
        %v3523 = vpow.pop %v3522
        %v3524 = vmul.f32 %v3301, 1.442695
        %v3525 = vpow.pop %v3524
        %v3526 = vmul.f32 %v3302, 1.442695
        %v3527 = vpow.pop %v3526
        %v3528 = vmul.f32 %v3303, 1.442695
        %v3529 = vpow.pop %v3528
        %v3530 = vmul.f32 %v3304, 1.442695
        %v3531 = vpow.pop %v3530
        %v3532 = vmul.f32 %v3305, 1.442695
        %v3533 = vpow.pop %v3532
        %v3534 = vmul.f32 %v3306, 1.442695
        %v3535 = vpow.pop %v3534
        %v3536 = vmul.f32 %v3307, 1.442695
        %v3537 = vpow.pop %v3536
        %v3538 = vmul.f32 %v3308, 1.442695
        %v3539 = vpow.pop %v3538
        %v3540 = vmul.f32 %v3309, 1.442695
        %v3541 = vpow.pop %v3540
        %v3542 = vmul.f32 %v3310, 1.442695
        %v3543 = vpow.pop %v3542
        %v3544 = vmul.f32 %v3311, 1.442695
        %v3545 = vpow.pop %v3544
        %v3546 = vmul.f32 %v3312, 1.442695
        %v3547 = vpow.pop %v3546
        %v3548 = vmul.f32 %v3313, 1.442695
        %v3549 = vpow.pop %v3548
        %v3550 = vmul.f32 %v3314, 1.442695
        %v3551 = vpow.pop %v3550
        %v3552 = vmul.f32 %v3315, 1.442695
        %v3553 = vpow.pop %v3552
        %v3554 = vmul.f32 %v3316, 1.442695
        %v3555 = vpow.pop %v3554
        %v3556 = vmul.f32 %v3317, 1.442695
        %v3557 = vpow.pop %v3556
        %v3558 = vmul.f32 %v3318, 1.442695
        %v3559 = vpow.pop %v3558
        %v3560 = vmul.f32 %v3319, 1.442695
        %v3561 = vpow.pop %v3560
        %v3562 = vmul.f32 %v3320, 1.442695
        %v3563 = vpow.pop %v3562
        %v3564 = vmul.f32 %v3321, 1.442695
        %v3565 = vpow.pop %v3564
        %v3566 = vmul.f32 %v3322, 1.442695
        %v3567 = vpow.pop %v3566
        %v3568 = vmul.f32 %v3323, 1.442695
        %v3569 = vpow.pop %v3568
        %v3570 = vmul.f32 %v3324, 1.442695
        %v3571 = vpow.pop %v3570
        %v3572 = vmul.f32 %v3325, 1.442695
        %v3573 = vpow.pop %v3572
        %v3574 = vmul.f32 %v3326, 1.442695
        %v3575 = vpow.pop %v3574
        %v3576 = vmul.f32 %v3327, 1.442695
        %v3577 = vpow.pop %v3576
        %v3578 = vmul.f32 %v3328, 1.442695
        %v3579 = vpow.pop %v3578
        %v3580 = vmul.f32 %v3329, 1.442695
        %v3581 = vpow.pop %v3580
        %v3582 = vmul.f32 %v3330, 1.442695
        %v3583 = vpow.pop %v3582
        %v3584 = vmul.f32 %v3331, 1.442695
        %v3585 = vpow.pop %v3584
        %v3586 = vmul.f32 %v3332, 1.442695
        %v3587 = vpow.pop %v3586
        %v3588 = vmul.f32 %v3333, 1.442695
        %v3589 = vpow.pop %v3588
        %v3590 = vmul.f32 %v3334, 1.442695
        %v3591 = vpow.pop %v3590
        %v3592 = vmul.f32 %v3335, 1.442695
        %v3593 = vpow.pop %v3592
        %v3594 = vmul.f32 %v3336, 1.442695
        %v3595 = vpow.pop %v3594
        %v3596 = vmul.f32 %v3337, 1.442695
        %v3597 = vpow.pop %v3596
        %v3598 = vmul.f32 %v3338, 1.442695
        %v3599 = vpow.pop %v3598
        %v3600 = vmul.f32 %v3339, 1.442695
        %v3601 = vpow.pop %v3600
        %v3602 = vmul.f32 %v3340, 1.442695
        %v3603 = vpow.pop %v3602
        %v3604 = vmul.f32 %v3341, 1.442695
        %v3605 = vpow.pop %v3604
        %v3606 = vmul.f32 %v3342, 1.442695
        %v3607 = vpow.pop %v3606
        %v3608 = vmul.f32 %v3343, 1.442695
        %v3609 = vpow.pop %v3608
        %v3610 = vmul.f32 %v3344, 1.442695
        %v3611 = vpow.pop %v3610
        %v3612 = vmul.f32 %v3345, 1.442695
        %v3613 = vpow.pop %v3612
        %v3614 = vmul.f32 %v3346, 1.442695
        %v3615 = vpow.pop %v3614
        %v3616 = vmul.f32 %v3347, 1.442695
        %v3617 = vpow.pop %v3616
        %v3618 = vmul.f32 %v3348, 1.442695
        %v3619 = vpow.pop %v3618
        %v3620 = vmul.f32 %v3349, 1.442695
        %v3621 = vpow.pop %v3620
        %v3622 = vmul.f32 %v3350, 1.442695
        %v3623 = vpow.pop %v3622
        %v3624 = vmul.f32 %v3351, 1.442695
        %v3625 = vpow.pop %v3624
        %v3626 = vmul.f32 %v3352, 1.442695
        %v3627 = vpow.pop %v3626
        %v3628 = vmul.f32 %v3353, 1.442695
        %v3629 = vpow.pop %v3628
        %v3630 = vmul.f32 %v3354, 1.442695
        %v3631 = vpow.pop %v3630
        %v3632 = vmul.f32 %v3355, 1.442695
        %v3633 = vpow.pop %v3632
        %v3634 = vmul.f32 %v3356, 1.442695
        %v3635 = vpow.pop %v3634
        %v3636 = vmul.f32 %v3357, 1.442695
        %v3637 = vpow.pop %v3636
        %v3638 = vmul.f32 %v3358, 1.442695
        %v3639 = vpow.pop %v3638
        %v3640 = vmul.f32 %v3359, 1.442695
        %v3641 = vpow.pop %v3640
        %v3642 = vmul.f32 %v3360, 1.442695
        %v3643 = vpow.pop %v3642
        %v3644 = vmul.f32 %v3361, 1.442695
        %v3645 = vpow.pop %v3644
        %v3646 = vmul.f32 %v3362, 1.442695
        %v3647 = vpow.pop %v3646
        %v3648 = vmul.f32 %v3363, 1.442695
        %v3649 = vpow.pop %v3648
        %v3650 = vmul.f32 %v3364, 1.442695
        %v3651 = vpow.pop %v3650
        %v3652 = vmul.f32 %v3365, 1.442695
        %v3653 = vpow.pop %v3652
        %v3654 = vmul.f32 %v3366, 1.442695
        %v3655 = vpow.pop %v3654
        %v3656 = vmul.f32 %v3367, 1.442695
        %v3657 = vpow.pop %v3656
        %v3658 = vmul.f32 %v3368, 1.442695
        %v3659 = vpow.pop %v3658
        %v3660 = vmul.f32 %v3369, 1.442695
        %v3661 = vpow.pop %v3660
        %v3662 = vmul.f32 %v3370, 1.442695
        %v3663 = vpow.pop %v3662
        %v3664 = vmul.f32 %v3371, 1.442695
        %v3665 = vpow.pop %v3664
        %v3666 = vmul.f32 %v3372, 1.442695
        %v3667 = vpow.pop %v3666
        %v3668 = vmul.f32 %v3373, 1.442695
        %v3669 = vpow.pop %v3668
        %v3670 = vmul.f32 %v3374, 1.442695
        %v3671 = vpow.pop %v3670
        %v3672 = vmul.f32 %v3375, 1.442695
        %v3673 = vpow.pop %v3672
        %v3674 = vmul.f32 %v3376, 1.442695
        %v3675 = vpow.pop %v3674
        %v3676 = vmul.f32 %v3377, 1.442695
        %v3677 = vpow.pop %v3676
        %v3678 = vmul.f32 %v3378, 1.442695
        %v3679 = vpow.pop %v3678
        %v3680 = vmul.f32 %v3379, 1.442695
        %v3681 = vpow.pop %v3680
        %v3682 = vmul.f32 %v3380, 1.442695
        %v3683 = vpow.pop %v3682
        %v3684 = vmul.f32 %v3381, 1.442695
        %v3685 = vpow.pop %v3684
        %v3686 = vmul.f32 %v3382, 1.442695
        %v3687 = vpow.pop %v3686
        %v3688 = vmul.f32 %v3383, 1.442695
        %v3689 = vpow.pop %v3688
        %v3690 = vmul.f32 %v3384, 1.442695
        %v3691 = vpow.pop %v3690
        %v3692 = vmul.f32 %v3385, 1.442695
        %v3693 = vpow.pop %v3692
        %v3694 = vmul.f32 %v3386, 1.442695
        %v3695 = vpow.pop %v3694
        %v3696 = vmul.f32 %v3387, 1.442695
        %v3697 = vpow.pop %v3696
        %v3698 = vmul.f32 %v3388, 1.442695
        %v3699 = vpow.pop %v3698
        %v3700 = vmul.f32 %v3389, 1.442695
        %v3701 = vpow.pop %v3700
        %v3702 = vmul.f32 %v3390, 1.442695
        %v3703 = vpow.pop %v3702
        %v3704 = vmul.f32 %v3391, 1.442695
        %v3705 = vpow.pop %v3704
        %v3706 = vmul.f32 %v3392, 1.442695
        %v3707 = vpow.pop %v3706
        %v3708 = vmul.f32 %v3393, 1.442695
        %v3709 = vpow.pop %v3708
        %v3710 = vmul.f32 %v3394, 1.442695
        %v3711 = vpow.pop %v3710
        %v3712 = vmul.f32 %v3395, 1.442695
        %v3713 = vpow.pop %v3712
        %v3714 = vmul.f32 %v3396, 1.442695
        %v3715 = vpow.pop %v3714
        %v3716 = vmul.f32 %v3397, 1.442695
        %v3717 = vpow.pop %v3716
        %v3718 = vmul.f32 %v3398, 1.442695
        %v3719 = vpow.pop %v3718
        %v3720 = vmul.f32 %v3399, 1.442695
        %v3721 = vpow.pop %v3720
        %v3722 = vmul.f32 %v3400, 1.442695
        %v3723 = vpow.pop %v3722
        %v3724 = vmul.f32 %v3401, 1.442695
        %v3725 = vpow.pop %v3724
        %v3726 = vmul.f32 %v3402, 1.442695
        %v3727 = vpow.pop %v3726
        %v3728 = vmul.f32 %v3403, 1.442695
        %v3729 = vpow.pop %v3728
        %v3730 = vmul.f32 %v3404, 1.442695
        %v3731 = vpow.pop %v3730
        %v3732 = vmul.f32 %v3405, 1.442695
        %v3733 = vpow.pop %v3732
        %v3734 = vmul.f32 %v3406, 1.442695
        %v3735 = vpow.pop %v3734
        %v3736 = vmul.f32 %v3407, 1.442695
        %v3737 = vpow.pop %v3736
        %v3738 = vmul.f32 %v3408, 1.442695
        %v3739 = vpow.pop %v3738
        %v3740 = vmul.f32 %v3409, 1.442695
        %v3741 = vpow.pop %v3740
        %v3742 = vmul.f32 %v3410, 1.442695
        %v3743 = vpow.pop %v3742
        %v3744 = vmul.f32 %v3411, 1.442695
        %v3745 = vpow.pop %v3744
        %v3746 = vmul.f32 %v3412, 1.442695
        %v3747 = vpow.pop %v3746
        %v3748 = vmul.f32 %v3413, 1.442695
        %v3749 = vpow.pop %v3748
        %v3750 = vmul.f32 %v3414, 1.442695
        %v3751 = vpow.pop %v3750
        %v3752 = vmul.f32 %v3415, 1.442695
        %v3753 = vpow.pop %v3752
        %v3754 = vmul.f32 %v3416, 1.442695
        %v3755 = vpow.pop %v3754
        %v3756 = vmul.f32 %v3417, 1.442695
        %v3757 = vpow.pop %v3756
        %v3758 = vmul.f32 %v3418, 1.442695
        %v3759 = vpow.pop %v3758
        %v3760 = vmul.f32 %v3419, 1.442695
        %v3761 = vpow.pop %v3760
        %v3762 = vmul.f32 %v3420, 1.442695
        %v3763 = vpow.pop %v3762
        %v3764 = vmul.f32 %v3421, 1.442695
        %v3765 = vpow.pop %v3764
        %v3766 = vmul.f32 %v3422, 1.442695
        %v3767 = vpow.pop %v3766
        %v3768 = vmul.f32 %v3423, 1.442695
        %v3769 = vpow.pop %v3768
        %v3770 = vmul.f32 %v3424, 1.442695
        %v3771 = vpow.pop %v3770
        %v3772 = vmul.f32 %v3425, 1.442695
        %v3773 = vpow.pop %v3772
        %v3774 = vmul.f32 %v3426, 1.442695
        %v3775 = vpow.pop %v3774
        %v3776 = vmul.f32 %v3427, 1.442695
        %v3777 = vpow.pop %v3776
        %v3778 = vmul.f32 %v3428, 1.442695
        %v3779 = vpow.pop %v3778
        %v3780 = vmul.f32 %v3429, 1.442695
        %v3781 = vpow.pop %v3780
        %v3782 = vmul.f32 %v3430, 1.442695
        %v3783 = vpow.pop %v3782
        %v3784 = vmul.f32 %v3431, 1.442695
        %v3785 = vpow.pop %v3784
        %v3786 = vmul.f32 %v3432, 1.442695
        %v3787 = vpow.pop %v3786
        %v3788 = vmul.f32 %v3433, 1.442695
        %v3789 = vpow.pop %v3788
        %v3790 = vmul.f32 %v3434, 1.442695
        %v3791 = vpow.pop %v3790
        %v3792 = vmul.f32 %v3435, 1.442695
        %v3793 = vpow.pop %v3792
        %v3794 = vmul.f32 %v3436, 1.442695
        %v3795 = vpow.pop %v3794
        %v3796 = vmul.f32 %v3437, 1.442695
        %v3797 = vpow.pop %v3796
        %v3798 = vmul.f32 %v3438, 1.442695
        %v3799 = vpow.pop %v3798
        %v3800 = vmul.f32 %v3439, 1.442695
        %v3801 = vpow.pop %v3800
        %v3802 = vmul.f32 %v3440, 1.442695
        %v3803 = vpow.pop %v3802
        %v3804 = vmul.f32 %v3441, 1.442695
        %v3805 = vpow.pop %v3804
        %v3806 = vmul.f32 %v3442, 1.442695
        %v3807 = vpow.pop %v3806
        %v3808 = vmul.f32 %v3443, 1.442695
        %v3809 = vpow.pop %v3808
        %v3810 = vmul.f32 %v3444, 1.442695
        %v3811 = vpow.pop %v3810
        %v3812 = vmul.f32 %v3445, 1.442695
        %v3813 = vpow.pop %v3812
        %v3814 = vmul.f32 %v3446, 1.442695
        %v3815 = vpow.pop %v3814
        %v3816 = vmul.f32 %v3447, 1.442695
        %v3817 = vpow.pop %v3816
        %v3818 = vmul.f32 %v3448, 1.442695
        %v3819 = vpow.pop %v3818
        %v3820 = vmul.f32 %v3449, 1.442695
        %v3821 = vpow.pop %v3820
        %v3822 = vmul.f32 %v3450, 1.442695
        %v3823 = vpow.pop %v3822
        %v3824 = vmul.f32 %v3451, 1.442695
        %v3825 = vpow.pop %v3824
        %v3826 = vmul.f32 %v3452, 1.442695
        %v3827 = vpow.pop %v3826
        %v3828 = vmul.f32 %v3453, 1.442695
        %v3829 = vpow.pop %v3828
        %v3830 = vmul.f32 %v3454, 1.442695
        %v3831 = vpow.pop %v3830
        %v3832 = vmul.f32 %v3455, 1.442695
        %v3833 = vpow.pop %v3832
        %v3834 = vmul.f32 %v3456, 1.442695
        %v3835 = vpow.pop %v3834
        %v3836 = vmul.f32 %v3457, 1.442695
        %v3837 = vpow.pop %v3836
        %v3838 = vmul.f32 %v3458, 1.442695
        %v3839 = vpow.pop %v3838
        %v3840 = vmul.f32 %v3459, 1.442695
        %v3841 = vpow.pop %v3840
        %v3842 = vmul.f32 %v3460, 1.442695
        %v3843 = vpow.pop %v3842
        %v3844 = vmul.f32 %v3461, 1.442695
        %v3845 = vpow.pop %v3844
        %v3846 = vmul.f32 %v3462, 1.442695
        %v3847 = vpow.pop %v3846
        %v3848 = vmul.f32 %v3463, 1.442695
        %v3849 = vpow.pop %v3848
        %v3850 = vmul.f32 %v3464, 1.442695
        %v3851 = vpow.pop %v3850
        %v3852 = vmul.f32 %v3465, 1.442695
        %v3853 = vpow.pop %v3852
        %v3854 = vmul.f32 %v3466, 1.442695
        %v3855 = vpow.pop %v3854
        %v3856 = vmul.f32 %v3467, 1.442695
        %v3857 = vpow.pop %v3856
        %v3858 = vmul.f32 %v3468, 1.442695
        %v3859 = vpow.pop %v3858
        %v3860 = vmul.f32 %v3469, 1.442695
        %v3861 = vpow.pop %v3860
        %v3862 = vmul.f32 %v2882, %v3471
        %v3863 = vmul.f32 %v2883, %v3473
        %v3864 = vmul.f32 %v2884, %v3475
        %v3865 = vmul.f32 %v2885, %v3477
        %v3866 = vmul.f32 %v2886, %v3479
        %v3867 = vmul.f32 %v2887, %v3481
        %v3868 = vmul.f32 %v2888, %v3483
        %v3869 = vmul.f32 %v2889, %v3485
        %v3870 = vmul.f32 %v2890, %v3487
        %v3871 = vmul.f32 %v2891, %v3489
        %v3872 = vmul.f32 %v2892, %v3491
        %v3873 = vmul.f32 %v2893, %v3493
        %v3874 = vmul.f32 %v2894, %v3495
        %v3875 = vmul.f32 %v2895, %v3497
        %v3876 = vmul.f32 %v2896, %v3499
        %v3877 = vmul.f32 %v2897, %v3501
        %v3878 = vmul.f32 %v2898, %v3503
        %v3879 = vmul.f32 %v2899, %v3505
        %v3880 = vmul.f32 %v2900, %v3507
        %v3881 = vmul.f32 %v2901, %v3509
        %v3882 = vmul.f32 %v2902, %v3511
        %v3883 = vmul.f32 %v2903, %v3513
        %v3884 = vmul.f32 %v2904, %v3515
        %v3885 = vmul.f32 %v2905, %v3517
        %v3886 = vmul.f32 %v2906, %v3519
        %v3887 = vmul.f32 %v2907, %v3521
        %v3888 = vmul.f32 %v2908, %v3523
        %v3889 = vmul.f32 %v2909, %v3525
        %v3890 = vmul.f32 %v2910, %v3527
        %v3891 = vmul.f32 %v2911, %v3529
        %v3892 = vmul.f32 %v2912, %v3531
        %v3893 = vmul.f32 %v2913, %v3533
        %v3894 = vmul.f32 %v2914, %v3535
        %v3895 = vmul.f32 %v2915, %v3537
        %v3896 = vmul.f32 %v2916, %v3539
        %v3897 = vmul.f32 %v2917, %v3541
        %v3898 = vmul.f32 %v2918, %v3543
        %v3899 = vmul.f32 %v2919, %v3545
        %v3900 = vmul.f32 %v2920, %v3547
        %v3901 = vmul.f32 %v2921, %v3549
        %v3902 = vmul.f32 %v2922, %v3551
        %v3903 = vmul.f32 %v2923, %v3553
        %v3904 = vmul.f32 %v2924, %v3555
        %v3905 = vmul.f32 %v2925, %v3557
        %v3906 = vmul.f32 %v2926, %v3559
        %v3907 = vmul.f32 %v2927, %v3561
        %v3908 = vmul.f32 %v2928, %v3563
        %v3909 = vmul.f32 %v2929, %v3565
        %v3910 = vmul.f32 %v2930, %v3567
        %v3911 = vmul.f32 %v2931, %v3569
        %v3912 = vmul.f32 %v2932, %v3571
        %v3913 = vmul.f32 %v2933, %v3573
        %v3914 = vmul.f32 %v2934, %v3575
        %v3915 = vmul.f32 %v2935, %v3577
        %v3916 = vmul.f32 %v2936, %v3579
        %v3917 = vmul.f32 %v2937, %v3581
        %v3918 = vmul.f32 %v2938, %v3583
        %v3919 = vmul.f32 %v2939, %v3585
        %v3920 = vmul.f32 %v2940, %v3587
        %v3921 = vmul.f32 %v2941, %v3589
        %v3922 = vmul.f32 %v2942, %v3591
        %v3923 = vmul.f32 %v2943, %v3593
        %v3924 = vmul.f32 %v2944, %v3595
        %v3925 = vmul.f32 %v2945, %v3597
        %v3926 = vmul.f32 %v2946, %v3599
        %v3927 = vmul.f32 %v2947, %v3601
        %v3928 = vmul.f32 %v2948, %v3603
        %v3929 = vmul.f32 %v2949, %v3605
        %v3930 = vmul.f32 %v2950, %v3607
        %v3931 = vmul.f32 %v2951, %v3609
        %v3932 = vmul.f32 %v2952, %v3611
        %v3933 = vmul.f32 %v2953, %v3613
        %v3934 = vmul.f32 %v2954, %v3615
        %v3935 = vmul.f32 %v2955, %v3617
        %v3936 = vmul.f32 %v2956, %v3619
        %v3937 = vmul.f32 %v2957, %v3621
        %v3938 = vmul.f32 %v2958, %v3623
        %v3939 = vmul.f32 %v2959, %v3625
        %v3940 = vmul.f32 %v2960, %v3627
        %v3941 = vmul.f32 %v2961, %v3629
        %v3942 = vmul.f32 %v2962, %v3631
        %v3943 = vmul.f32 %v2963, %v3633
        %v3944 = vmul.f32 %v2964, %v3635
        %v3945 = vmul.f32 %v2965, %v3637
        %v3946 = vmul.f32 %v2966, %v3639
        %v3947 = vmul.f32 %v2967, %v3641
        %v3948 = vmul.f32 %v2968, %v3643
        %v3949 = vmul.f32 %v2969, %v3645
        %v3950 = vmul.f32 %v2970, %v3647
        %v3951 = vmul.f32 %v2971, %v3649
        %v3952 = vmul.f32 %v2972, %v3651
        %v3953 = vmul.f32 %v2973, %v3653
        %v3954 = vmul.f32 %v2974, %v3655
        %v3955 = vmul.f32 %v2975, %v3657
        %v3956 = vmul.f32 %v2976, %v3659
        %v3957 = vmul.f32 %v2977, %v3661
        %v3958 = vmul.f32 %v2978, %v3663
        %v3959 = vmul.f32 %v2979, %v3665
        %v3960 = vmul.f32 %v2980, %v3667
        %v3961 = vmul.f32 %v2981, %v3669
        %v3962 = vmul.f32 %v2982, %v3671
        %v3963 = vmul.f32 %v2983, %v3673
        %v3964 = vmul.f32 %v2984, %v3675
        %v3965 = vmul.f32 %v2985, %v3677
        %v3966 = vmul.f32 %v2986, %v3679
        %v3967 = vmul.f32 %v2987, %v3681
        %v3968 = vmul.f32 %v2988, %v3683
        %v3969 = vmul.f32 %v2989, %v3685
        %v3970 = vmul.f32 %v2990, %v3687
        %v3971 = vmul.f32 %v2991, %v3689
        %v3972 = vmul.f32 %v2992, %v3691
        %v3973 = vmul.f32 %v2993, %v3693
        %v3974 = vmul.f32 %v2994, %v3695
        %v3975 = vmul.f32 %v2995, %v3697
        %v3976 = vmul.f32 %v2996, %v3699
        %v3977 = vmul.f32 %v2997, %v3701
        %v3978 = vmul.f32 %v2998, %v3703
        %v3979 = vmul.f32 %v2999, %v3705
        %v3980 = vmul.f32 %v3000, %v3707
        %v3981 = vmul.f32 %v3001, %v3709
        %v3982 = vmul.f32 %v3002, %v3711
        %v3983 = vmul.f32 %v3003, %v3713
        %v3984 = vmul.f32 %v3004, %v3715
        %v3985 = vmul.f32 %v3005, %v3717
        %v3986 = vmul.f32 %v3006, %v3719
        %v3987 = vmul.f32 %v3007, %v3721
        %v3988 = vmul.f32 %v3008, %v3723
        %v3989 = vmul.f32 %v3009, %v3725
        %v3990 = vmul.f32 %v3010, %v3727
        %v3991 = vmul.f32 %v3011, %v3729
        %v3992 = vmul.f32 %v3012, %v3731
        %v3993 = vmul.f32 %v3013, %v3733
        %v3994 = vmul.f32 %v3014, %v3735
        %v3995 = vmul.f32 %v3015, %v3737
        %v3996 = vmul.f32 %v3016, %v3739
        %v3997 = vmul.f32 %v3017, %v3741
        %v3998 = vmul.f32 %v3018, %v3743
        %v3999 = vmul.f32 %v3019, %v3745
        %v4000 = vmul.f32 %v3020, %v3747
        %v4001 = vmul.f32 %v3021, %v3749
        %v4002 = vmul.f32 %v3022, %v3751
        %v4003 = vmul.f32 %v3023, %v3753
        %v4004 = vmul.f32 %v3024, %v3755
        %v4005 = vmul.f32 %v3025, %v3757
        %v4006 = vmul.f32 %v3026, %v3759
        %v4007 = vmul.f32 %v3027, %v3761
        %v4008 = vmul.f32 %v3028, %v3763
        %v4009 = vmul.f32 %v3029, %v3765
        %v4010 = vmul.f32 %v3030, %v3767
        %v4011 = vmul.f32 %v3031, %v3769
        %v4012 = vmul.f32 %v3032, %v3771
        %v4013 = vmul.f32 %v3033, %v3773
        %v4014 = vmul.f32 %v3034, %v3775
        %v4015 = vmul.f32 %v3035, %v3777
        %v4016 = vmul.f32 %v3036, %v3779
        %v4017 = vmul.f32 %v3037, %v3781
        %v4018 = vmul.f32 %v3038, %v3783
        %v4019 = vmul.f32 %v3039, %v3785
        %v4020 = vmul.f32 %v3040, %v3787
        %v4021 = vmul.f32 %v3041, %v3789
        %v4022 = vmul.f32 %v3042, %v3791
        %v4023 = vmul.f32 %v3043, %v3793
        %v4024 = vmul.f32 %v3044, %v3795
        %v4025 = vmul.f32 %v3045, %v3797
        %v4026 = vmul.f32 %v3046, %v3799
        %v4027 = vmul.f32 %v3047, %v3801
        %v4028 = vmul.f32 %v3048, %v3803
        %v4029 = vmul.f32 %v3049, %v3805
        %v4030 = vmul.f32 %v3050, %v3807
        %v4031 = vmul.f32 %v3051, %v3809
        %v4032 = vmul.f32 %v3052, %v3811
        %v4033 = vmul.f32 %v3053, %v3813
        %v4034 = vmul.f32 %v3054, %v3815
        %v4035 = vmul.f32 %v3055, %v3817
        %v4036 = vmul.f32 %v3056, %v3819
        %v4037 = vmul.f32 %v3057, %v3821
        %v4038 = vmul.f32 %v3058, %v3823
        %v4039 = vmul.f32 %v3059, %v3825
        %v4040 = vmul.f32 %v3060, %v3827
        %v4041 = vmul.f32 %v3061, %v3829
        %v4042 = vmul.f32 %v3062, %v3831
        %v4043 = vmul.f32 %v3063, %v3833
        %v4044 = vmul.f32 %v3064, %v3835
        %v4045 = vmul.f32 %v3065, %v3837
        %v4046 = vmul.f32 %v3066, %v3839
        %v4047 = vmul.f32 %v3067, %v3841
        %v4048 = vmul.f32 %v3068, %v3843
        %v4049 = vmul.f32 %v3069, %v3845
        %v4050 = vmul.f32 %v3070, %v3847
        %v4051 = vmul.f32 %v3071, %v3849
        %v4052 = vmul.f32 %v3072, %v3851
        %v4053 = vmul.f32 %v3073, %v3853
        %v4054 = vmul.f32 %v3074, %v3855
        %v4055 = vmul.f32 %v3075, %v3857
        %v4056 = vmul.f32 %v3076, %v3859
        %v4057 = vmul.f32 %v3077, %v3861
        %vm4058 = vcmp.ge.f32.partialorder %v334, 0.0
        %vm4059 = vcmp.ge.f32.partialorder %v335, 0.0
        %vm4060 = vcmp.ge.f32.partialorder %v336, 0.0
        %vm4061 = vcmp.ge.f32.partialorder %v337, 0.0
        %vm4062 = vcmp.ge.f32.partialorder %v338, 0.0
        %vm4063 = vcmp.ge.f32.partialorder %v339, 0.0
        %vm4064 = vcmp.ge.f32.partialorder %v340, 0.0
        %vm4065 = vcmp.ge.f32.partialorder %v341, 0.0
        %vm4066 = vcmp.ge.f32.partialorder %v342, 0.0
        %vm4067 = vcmp.ge.f32.partialorder %v343, 0.0
        %vm4068 = vcmp.ge.f32.partialorder %v344, 0.0
        %vm4069 = vcmp.ge.f32.partialorder %v345, 0.0
        %vm4070 = vcmp.ge.f32.partialorder %v346, 0.0
        %vm4071 = vcmp.ge.f32.partialorder %v347, 0.0
        %vm4072 = vcmp.ge.f32.partialorder %v348, 0.0
        %vm4073 = vcmp.ge.f32.partialorder %v349, 0.0
        %vm4074 = vcmp.ge.f32.partialorder %v350, 0.0
        %vm4075 = vcmp.ge.f32.partialorder %v351, 0.0
        %vm4076 = vcmp.ge.f32.partialorder %v352, 0.0
        %vm4077 = vcmp.ge.f32.partialorder %v353, 0.0
        %vm4078 = vcmp.ge.f32.partialorder %v354, 0.0
        %vm4079 = vcmp.ge.f32.partialorder %v355, 0.0
        %vm4080 = vcmp.ge.f32.partialorder %v356, 0.0
        %vm4081 = vcmp.ge.f32.partialorder %v357, 0.0
        %vm4082 = vcmp.ge.f32.partialorder %v358, 0.0
        %vm4083 = vcmp.ge.f32.partialorder %v359, 0.0
        %vm4084 = vcmp.ge.f32.partialorder %v360, 0.0
        %vm4085 = vcmp.ge.f32.partialorder %v361, 0.0
        %vm4086 = vcmp.ge.f32.partialorder %v362, 0.0
        %vm4087 = vcmp.ge.f32.partialorder %v363, 0.0
        %vm4088 = vcmp.ge.f32.partialorder %v364, 0.0
        %vm4089 = vcmp.ge.f32.partialorder %v365, 0.0
        %vm4090 = vcmp.ge.f32.partialorder %v366, 0.0
        %vm4091 = vcmp.ge.f32.partialorder %v367, 0.0
        %vm4092 = vcmp.ge.f32.partialorder %v368, 0.0
        %vm4093 = vcmp.ge.f32.partialorder %v369, 0.0
        %vm4094 = vcmp.ge.f32.partialorder %v370, 0.0
        %vm4095 = vcmp.ge.f32.partialorder %v371, 0.0
        %vm4096 = vcmp.ge.f32.partialorder %v372, 0.0
        %vm4097 = vcmp.ge.f32.partialorder %v373, 0.0
        %vm4098 = vcmp.ge.f32.partialorder %v374, 0.0
        %vm4099 = vcmp.ge.f32.partialorder %v375, 0.0
        %vm4100 = vcmp.ge.f32.partialorder %v376, 0.0
        %vm4101 = vcmp.ge.f32.partialorder %v377, 0.0
        %vm4102 = vcmp.ge.f32.partialorder %v378, 0.0
        %vm4103 = vcmp.ge.f32.partialorder %v379, 0.0
        %vm4104 = vcmp.ge.f32.partialorder %v380, 0.0
        %vm4105 = vcmp.ge.f32.partialorder %v381, 0.0
        %vm4106 = vcmp.ge.f32.partialorder %v382, 0.0
        %vm4107 = vcmp.ge.f32.partialorder %v383, 0.0
        %vm4108 = vcmp.ge.f32.partialorder %v384, 0.0
        %vm4109 = vcmp.ge.f32.partialorder %v385, 0.0
        %vm4110 = vcmp.ge.f32.partialorder %v386, 0.0
        %vm4111 = vcmp.ge.f32.partialorder %v387, 0.0
        %vm4112 = vcmp.ge.f32.partialorder %v388, 0.0
        %vm4113 = vcmp.ge.f32.partialorder %v389, 0.0
        %vm4114 = vcmp.ge.f32.partialorder %v390, 0.0
        %vm4115 = vcmp.ge.f32.partialorder %v391, 0.0
        %vm4116 = vcmp.ge.f32.partialorder %v392, 0.0
        %vm4117 = vcmp.ge.f32.partialorder %v393, 0.0
        %vm4118 = vcmp.ge.f32.partialorder %v394, 0.0
        %vm4119 = vcmp.ge.f32.partialorder %v395, 0.0
        %vm4120 = vcmp.ge.f32.partialorder %v396, 0.0
        %vm4121 = vcmp.ge.f32.partialorder %v397, 0.0
        %vm4122 = vcmp.ge.f32.partialorder %v398, 0.0
        %vm4123 = vcmp.ge.f32.partialorder %v399, 0.0
        %vm4124 = vcmp.ge.f32.partialorder %v400, 0.0
        %vm4125 = vcmp.ge.f32.partialorder %v401, 0.0
        %vm4126 = vcmp.ge.f32.partialorder %v402, 0.0
        %vm4127 = vcmp.ge.f32.partialorder %v403, 0.0
        %vm4128 = vcmp.ge.f32.partialorder %v404, 0.0
        %vm4129 = vcmp.ge.f32.partialorder %v405, 0.0
        %vm4130 = vcmp.ge.f32.partialorder %v406, 0.0
        %vm4131 = vcmp.ge.f32.partialorder %v407, 0.0
        %vm4132 = vcmp.ge.f32.partialorder %v408, 0.0
        %vm4133 = vcmp.ge.f32.partialorder %v409, 0.0
        %vm4134 = vcmp.ge.f32.partialorder %v410, 0.0
        %vm4135 = vcmp.ge.f32.partialorder %v411, 0.0
        %vm4136 = vcmp.ge.f32.partialorder %v412, 0.0
        %vm4137 = vcmp.ge.f32.partialorder %v413, 0.0
        %vm4138 = vcmp.ge.f32.partialorder %v414, 0.0
        %vm4139 = vcmp.ge.f32.partialorder %v415, 0.0
        %vm4140 = vcmp.ge.f32.partialorder %v416, 0.0
        %vm4141 = vcmp.ge.f32.partialorder %v417, 0.0
        %vm4142 = vcmp.ge.f32.partialorder %v418, 0.0
        %vm4143 = vcmp.ge.f32.partialorder %v419, 0.0
        %vm4144 = vcmp.ge.f32.partialorder %v420, 0.0
        %vm4145 = vcmp.ge.f32.partialorder %v421, 0.0
        %vm4146 = vcmp.ge.f32.partialorder %v422, 0.0
        %vm4147 = vcmp.ge.f32.partialorder %v423, 0.0
        %vm4148 = vcmp.ge.f32.partialorder %v424, 0.0
        %vm4149 = vcmp.ge.f32.partialorder %v425, 0.0
        %vm4150 = vcmp.ge.f32.partialorder %v426, 0.0
        %vm4151 = vcmp.ge.f32.partialorder %v427, 0.0
        %vm4152 = vcmp.ge.f32.partialorder %v428, 0.0
        %vm4153 = vcmp.ge.f32.partialorder %v429, 0.0
        %vm4154 = vcmp.ge.f32.partialorder %v430, 0.0
        %vm4155 = vcmp.ge.f32.partialorder %v431, 0.0
        %vm4156 = vcmp.ge.f32.partialorder %v432, 0.0
        %vm4157 = vcmp.ge.f32.partialorder %v433, 0.0
        %vm4158 = vcmp.ge.f32.partialorder %v434, 0.0
        %vm4159 = vcmp.ge.f32.partialorder %v435, 0.0
        %vm4160 = vcmp.ge.f32.partialorder %v436, 0.0
        %vm4161 = vcmp.ge.f32.partialorder %v437, 0.0
        %vm4162 = vcmp.ge.f32.partialorder %v438, 0.0
        %vm4163 = vcmp.ge.f32.partialorder %v439, 0.0
        %vm4164 = vcmp.ge.f32.partialorder %v440, 0.0
        %vm4165 = vcmp.ge.f32.partialorder %v441, 0.0
        %vm4166 = vcmp.ge.f32.partialorder %v442, 0.0
        %vm4167 = vcmp.ge.f32.partialorder %v443, 0.0
        %vm4168 = vcmp.ge.f32.partialorder %v444, 0.0
        %vm4169 = vcmp.ge.f32.partialorder %v445, 0.0
        %vm4170 = vcmp.ge.f32.partialorder %v446, 0.0
        %vm4171 = vcmp.ge.f32.partialorder %v447, 0.0
        %vm4172 = vcmp.ge.f32.partialorder %v448, 0.0
        %vm4173 = vcmp.ge.f32.partialorder %v449, 0.0
        %vm4174 = vcmp.ge.f32.partialorder %v450, 0.0
        %vm4175 = vcmp.ge.f32.partialorder %v451, 0.0
        %vm4176 = vcmp.ge.f32.partialorder %v452, 0.0
        %vm4177 = vcmp.ge.f32.partialorder %v453, 0.0
        %vm4178 = vcmp.ge.f32.partialorder %v454, 0.0
        %vm4179 = vcmp.ge.f32.partialorder %v455, 0.0
        %vm4180 = vcmp.ge.f32.partialorder %v456, 0.0
        %vm4181 = vcmp.ge.f32.partialorder %v457, 0.0
        %vm4182 = vcmp.ge.f32.partialorder %v458, 0.0
        %vm4183 = vcmp.ge.f32.partialorder %v459, 0.0
        %vm4184 = vcmp.ge.f32.partialorder %v460, 0.0
        %vm4185 = vcmp.ge.f32.partialorder %v461, 0.0
        %vm4186 = vcmp.ge.f32.partialorder %v462, 0.0
        %vm4187 = vcmp.ge.f32.partialorder %v463, 0.0
        %vm4188 = vcmp.ge.f32.partialorder %v464, 0.0
        %vm4189 = vcmp.ge.f32.partialorder %v465, 0.0
        %vm4190 = vcmp.ge.f32.partialorder %v466, 0.0
        %vm4191 = vcmp.ge.f32.partialorder %v467, 0.0
        %vm4192 = vcmp.ge.f32.partialorder %v468, 0.0
        %vm4193 = vcmp.ge.f32.partialorder %v469, 0.0
        %vm4194 = vcmp.ge.f32.partialorder %v470, 0.0
        %vm4195 = vcmp.ge.f32.partialorder %v471, 0.0
        %vm4196 = vcmp.ge.f32.partialorder %v472, 0.0
        %vm4197 = vcmp.ge.f32.partialorder %v473, 0.0
        %vm4198 = vcmp.ge.f32.partialorder %v474, 0.0
        %vm4199 = vcmp.ge.f32.partialorder %v475, 0.0
        %vm4200 = vcmp.ge.f32.partialorder %v476, 0.0
        %vm4201 = vcmp.ge.f32.partialorder %v477, 0.0
        %vm4202 = vcmp.ge.f32.partialorder %v478, 0.0
        %vm4203 = vcmp.ge.f32.partialorder %v479, 0.0
        %vm4204 = vcmp.ge.f32.partialorder %v480, 0.0
        %vm4205 = vcmp.ge.f32.partialorder %v481, 0.0
        %vm4206 = vcmp.ge.f32.partialorder %v482, 0.0
        %vm4207 = vcmp.ge.f32.partialorder %v483, 0.0
        %vm4208 = vcmp.ge.f32.partialorder %v484, 0.0
        %vm4209 = vcmp.ge.f32.partialorder %v485, 0.0
        %vm4210 = vcmp.ge.f32.partialorder %v486, 0.0
        %vm4211 = vcmp.ge.f32.partialorder %v487, 0.0
        %vm4212 = vcmp.ge.f32.partialorder %v488, 0.0
        %vm4213 = vcmp.ge.f32.partialorder %v489, 0.0
        %vm4214 = vcmp.ge.f32.partialorder %v490, 0.0
        %vm4215 = vcmp.ge.f32.partialorder %v491, 0.0
        %vm4216 = vcmp.ge.f32.partialorder %v492, 0.0
        %vm4217 = vcmp.ge.f32.partialorder %v493, 0.0
        %vm4218 = vcmp.ge.f32.partialorder %v494, 0.0
        %vm4219 = vcmp.ge.f32.partialorder %v495, 0.0
        %vm4220 = vcmp.ge.f32.partialorder %v496, 0.0
        %vm4221 = vcmp.ge.f32.partialorder %v497, 0.0
        %vm4222 = vcmp.ge.f32.partialorder %v498, 0.0
        %vm4223 = vcmp.ge.f32.partialorder %v499, 0.0
        %vm4224 = vcmp.ge.f32.partialorder %v500, 0.0
        %vm4225 = vcmp.ge.f32.partialorder %v501, 0.0
        %vm4226 = vcmp.ge.f32.partialorder %v502, 0.0
        %vm4227 = vcmp.ge.f32.partialorder %v503, 0.0
        %vm4228 = vcmp.ge.f32.partialorder %v504, 0.0
        %vm4229 = vcmp.ge.f32.partialorder %v505, 0.0
        %vm4230 = vcmp.ge.f32.partialorder %v506, 0.0
        %vm4231 = vcmp.ge.f32.partialorder %v507, 0.0
        %vm4232 = vcmp.ge.f32.partialorder %v508, 0.0
        %vm4233 = vcmp.ge.f32.partialorder %v509, 0.0
        %vm4234 = vcmp.ge.f32.partialorder %v510, 0.0
        %vm4235 = vcmp.ge.f32.partialorder %v511, 0.0
        %vm4236 = vcmp.ge.f32.partialorder %v512, 0.0
        %vm4237 = vcmp.ge.f32.partialorder %v513, 0.0
        %vm4238 = vcmp.ge.f32.partialorder %v514, 0.0
        %vm4239 = vcmp.ge.f32.partialorder %v515, 0.0
        %vm4240 = vcmp.ge.f32.partialorder %v516, 0.0
        %vm4241 = vcmp.ge.f32.partialorder %v517, 0.0
        %vm4242 = vcmp.ge.f32.partialorder %v518, 0.0
        %vm4243 = vcmp.ge.f32.partialorder %v519, 0.0
        %vm4244 = vcmp.ge.f32.partialorder %v520, 0.0
        %vm4245 = vcmp.ge.f32.partialorder %v521, 0.0
        %vm4246 = vcmp.ge.f32.partialorder %v522, 0.0
        %vm4247 = vcmp.ge.f32.partialorder %v523, 0.0
        %vm4248 = vcmp.ge.f32.partialorder %v524, 0.0
        %vm4249 = vcmp.ge.f32.partialorder %v525, 0.0
        %vm4250 = vcmp.ge.f32.partialorder %v526, 0.0
        %vm4251 = vcmp.ge.f32.partialorder %v527, 0.0
        %vm4252 = vcmp.ge.f32.partialorder %v528, 0.0
        %vm4253 = vcmp.ge.f32.partialorder %v529, 0.0
        %v4254 = vmul.f32 %v3862, 0.5
        %v4255 = vmul.f32 %v3863, 0.5
        %v4256 = vmul.f32 %v3864, 0.5
        %v4257 = vmul.f32 %v3865, 0.5
        %v4258 = vmul.f32 %v3866, 0.5
        %v4259 = vmul.f32 %v3867, 0.5
        %v4260 = vmul.f32 %v3868, 0.5
        %v4261 = vmul.f32 %v3869, 0.5
        %v4262 = vmul.f32 %v3870, 0.5
        %v4263 = vmul.f32 %v3871, 0.5
        %v4264 = vmul.f32 %v3872, 0.5
        %v4265 = vmul.f32 %v3873, 0.5
        %v4266 = vmul.f32 %v3874, 0.5
        %v4267 = vmul.f32 %v3875, 0.5
        %v4268 = vmul.f32 %v3876, 0.5
        %v4269 = vmul.f32 %v3877, 0.5
        %v4270 = vmul.f32 %v3878, 0.5
        %v4271 = vmul.f32 %v3879, 0.5
        %v4272 = vmul.f32 %v3880, 0.5
        %v4273 = vmul.f32 %v3881, 0.5
        %v4274 = vmul.f32 %v3882, 0.5
        %v4275 = vmul.f32 %v3883, 0.5
        %v4276 = vmul.f32 %v3884, 0.5
        %v4277 = vmul.f32 %v3885, 0.5
        %v4278 = vmul.f32 %v3886, 0.5
        %v4279 = vmul.f32 %v3887, 0.5
        %v4280 = vmul.f32 %v3888, 0.5
        %v4281 = vmul.f32 %v3889, 0.5
        %v4282 = vmul.f32 %v3890, 0.5
        %v4283 = vmul.f32 %v3891, 0.5
        %v4284 = vmul.f32 %v3892, 0.5
        %v4285 = vmul.f32 %v3893, 0.5
        %v4286 = vmul.f32 %v3894, 0.5
        %v4287 = vmul.f32 %v3895, 0.5
        %v4288 = vmul.f32 %v3896, 0.5
        %v4289 = vmul.f32 %v3897, 0.5
        %v4290 = vmul.f32 %v3898, 0.5
        %v4291 = vmul.f32 %v3899, 0.5
        %v4292 = vmul.f32 %v3900, 0.5
        %v4293 = vmul.f32 %v3901, 0.5
        %v4294 = vmul.f32 %v3902, 0.5
        %v4295 = vmul.f32 %v3903, 0.5
        %v4296 = vmul.f32 %v3904, 0.5
        %v4297 = vmul.f32 %v3905, 0.5
        %v4298 = vmul.f32 %v3906, 0.5
        %v4299 = vmul.f32 %v3907, 0.5
        %v4300 = vmul.f32 %v3908, 0.5
        %v4301 = vmul.f32 %v3909, 0.5
        %v4302 = vmul.f32 %v3910, 0.5
        %v4303 = vmul.f32 %v3911, 0.5
        %v4304 = vmul.f32 %v3912, 0.5
        %v4305 = vmul.f32 %v3913, 0.5
        %v4306 = vmul.f32 %v3914, 0.5
        %v4307 = vmul.f32 %v3915, 0.5
        %v4308 = vmul.f32 %v3916, 0.5
        %v4309 = vmul.f32 %v3917, 0.5
        %v4310 = vmul.f32 %v3918, 0.5
        %v4311 = vmul.f32 %v3919, 0.5
        %v4312 = vmul.f32 %v3920, 0.5
        %v4313 = vmul.f32 %v3921, 0.5
        %v4314 = vmul.f32 %v3922, 0.5
        %v4315 = vmul.f32 %v3923, 0.5
        %v4316 = vmul.f32 %v3924, 0.5
        %v4317 = vmul.f32 %v3925, 0.5
        %v4318 = vmul.f32 %v3926, 0.5
        %v4319 = vmul.f32 %v3927, 0.5
        %v4320 = vmul.f32 %v3928, 0.5
        %v4321 = vmul.f32 %v3929, 0.5
        %v4322 = vmul.f32 %v3930, 0.5
        %v4323 = vmul.f32 %v3931, 0.5
        %v4324 = vmul.f32 %v3932, 0.5
        %v4325 = vmul.f32 %v3933, 0.5
        %v4326 = vmul.f32 %v3934, 0.5
        %v4327 = vmul.f32 %v3935, 0.5
        %v4328 = vmul.f32 %v3936, 0.5
        %v4329 = vmul.f32 %v3937, 0.5
        %v4330 = vmul.f32 %v3938, 0.5
        %v4331 = vmul.f32 %v3939, 0.5
        %v4332 = vmul.f32 %v3940, 0.5
        %v4333 = vmul.f32 %v3941, 0.5
        %v4334 = vmul.f32 %v3942, 0.5
        %v4335 = vmul.f32 %v3943, 0.5
        %v4336 = vmul.f32 %v3944, 0.5
        %v4337 = vmul.f32 %v3945, 0.5
        %v4338 = vmul.f32 %v3946, 0.5
        %v4339 = vmul.f32 %v3947, 0.5
        %v4340 = vmul.f32 %v3948, 0.5
        %v4341 = vmul.f32 %v3949, 0.5
        %v4342 = vmul.f32 %v3950, 0.5
        %v4343 = vmul.f32 %v3951, 0.5
        %v4344 = vmul.f32 %v3952, 0.5
        %v4345 = vmul.f32 %v3953, 0.5
        %v4346 = vmul.f32 %v3954, 0.5
        %v4347 = vmul.f32 %v3955, 0.5
        %v4348 = vmul.f32 %v3956, 0.5
        %v4349 = vmul.f32 %v3957, 0.5
        %v4350 = vmul.f32 %v3958, 0.5
        %v4351 = vmul.f32 %v3959, 0.5
        %v4352 = vmul.f32 %v3960, 0.5
        %v4353 = vmul.f32 %v3961, 0.5
        %v4354 = vmul.f32 %v3962, 0.5
        %v4355 = vmul.f32 %v3963, 0.5
        %v4356 = vmul.f32 %v3964, 0.5
        %v4357 = vmul.f32 %v3965, 0.5
        %v4358 = vmul.f32 %v3966, 0.5
        %v4359 = vmul.f32 %v3967, 0.5
        %v4360 = vmul.f32 %v3968, 0.5
        %v4361 = vmul.f32 %v3969, 0.5
        %v4362 = vmul.f32 %v3970, 0.5
        %v4363 = vmul.f32 %v3971, 0.5
        %v4364 = vmul.f32 %v3972, 0.5
        %v4365 = vmul.f32 %v3973, 0.5
        %v4366 = vmul.f32 %v3974, 0.5
        %v4367 = vmul.f32 %v3975, 0.5
        %v4368 = vmul.f32 %v3976, 0.5
        %v4369 = vmul.f32 %v3977, 0.5
        %v4370 = vmul.f32 %v3978, 0.5
        %v4371 = vmul.f32 %v3979, 0.5
        %v4372 = vmul.f32 %v3980, 0.5
        %v4373 = vmul.f32 %v3981, 0.5
        %v4374 = vmul.f32 %v3982, 0.5
        %v4375 = vmul.f32 %v3983, 0.5
        %v4376 = vmul.f32 %v3984, 0.5
        %v4377 = vmul.f32 %v3985, 0.5
        %v4378 = vmul.f32 %v3986, 0.5
        %v4379 = vmul.f32 %v3987, 0.5
        %v4380 = vmul.f32 %v3988, 0.5
        %v4381 = vmul.f32 %v3989, 0.5
        %v4382 = vmul.f32 %v3990, 0.5
        %v4383 = vmul.f32 %v3991, 0.5
        %v4384 = vmul.f32 %v3992, 0.5
        %v4385 = vmul.f32 %v3993, 0.5
        %v4386 = vmul.f32 %v3994, 0.5
        %v4387 = vmul.f32 %v3995, 0.5
        %v4388 = vmul.f32 %v3996, 0.5
        %v4389 = vmul.f32 %v3997, 0.5
        %v4390 = vmul.f32 %v3998, 0.5
        %v4391 = vmul.f32 %v3999, 0.5
        %v4392 = vmul.f32 %v4000, 0.5
        %v4393 = vmul.f32 %v4001, 0.5
        %v4394 = vmul.f32 %v4002, 0.5
        %v4395 = vmul.f32 %v4003, 0.5
        %v4396 = vmul.f32 %v4004, 0.5
        %v4397 = vmul.f32 %v4005, 0.5
        %v4398 = vmul.f32 %v4006, 0.5
        %v4399 = vmul.f32 %v4007, 0.5
        %v4400 = vmul.f32 %v4008, 0.5
        %v4401 = vmul.f32 %v4009, 0.5
        %v4402 = vmul.f32 %v4010, 0.5
        %v4403 = vmul.f32 %v4011, 0.5
        %v4404 = vmul.f32 %v4012, 0.5
        %v4405 = vmul.f32 %v4013, 0.5
        %v4406 = vmul.f32 %v4014, 0.5
        %v4407 = vmul.f32 %v4015, 0.5
        %v4408 = vmul.f32 %v4016, 0.5
        %v4409 = vmul.f32 %v4017, 0.5
        %v4410 = vmul.f32 %v4018, 0.5
        %v4411 = vmul.f32 %v4019, 0.5
        %v4412 = vmul.f32 %v4020, 0.5
        %v4413 = vmul.f32 %v4021, 0.5
        %v4414 = vmul.f32 %v4022, 0.5
        %v4415 = vmul.f32 %v4023, 0.5
        %v4416 = vmul.f32 %v4024, 0.5
        %v4417 = vmul.f32 %v4025, 0.5
        %v4418 = vmul.f32 %v4026, 0.5
        %v4419 = vmul.f32 %v4027, 0.5
        %v4420 = vmul.f32 %v4028, 0.5
        %v4421 = vmul.f32 %v4029, 0.5
        %v4422 = vmul.f32 %v4030, 0.5
        %v4423 = vmul.f32 %v4031, 0.5
        %v4424 = vmul.f32 %v4032, 0.5
        %v4425 = vmul.f32 %v4033, 0.5
        %v4426 = vmul.f32 %v4034, 0.5
        %v4427 = vmul.f32 %v4035, 0.5
        %v4428 = vmul.f32 %v4036, 0.5
        %v4429 = vmul.f32 %v4037, 0.5
        %v4430 = vmul.f32 %v4038, 0.5
        %v4431 = vmul.f32 %v4039, 0.5
        %v4432 = vmul.f32 %v4040, 0.5
        %v4433 = vmul.f32 %v4041, 0.5
        %v4434 = vmul.f32 %v4042, 0.5
        %v4435 = vmul.f32 %v4043, 0.5
        %v4436 = vmul.f32 %v4044, 0.5
        %v4437 = vmul.f32 %v4045, 0.5
        %v4438 = vmul.f32 %v4046, 0.5
        %v4439 = vmul.f32 %v4047, 0.5
        %v4440 = vmul.f32 %v4048, 0.5
        %v4441 = vmul.f32 %v4049, 0.5
        %v4442 = vmul.f32 %v4050, 0.5
        %v4443 = vmul.f32 %v4051, 0.5
        %v4444 = vmul.f32 %v4052, 0.5
        %v4445 = vmul.f32 %v4053, 0.5
        %v4446 = vmul.f32 %v4054, 0.5
        %v4447 = vmul.f32 %v4055, 0.5
        %v4448 = vmul.f32 %v4056, 0.5
        %v4449 = vmul.f32 %v4057, 0.5
        %v4450 = vsub.f32 1.0, %v4254
        %v4451 = vsub.f32 1.0, %v4255
        %v4452 = vsub.f32 1.0, %v4256
        %v4453 = vsub.f32 1.0, %v4257
        %v4454 = vsub.f32 1.0, %v4258
        %v4455 = vsub.f32 1.0, %v4259
        %v4456 = vsub.f32 1.0, %v4260
        %v4457 = vsub.f32 1.0, %v4261
        %v4458 = vsub.f32 1.0, %v4262
        %v4459 = vsub.f32 1.0, %v4263
        %v4460 = vsub.f32 1.0, %v4264
        %v4461 = vsub.f32 1.0, %v4265
        %v4462 = vsub.f32 1.0, %v4266
        %v4463 = vsub.f32 1.0, %v4267
        %v4464 = vsub.f32 1.0, %v4268
        %v4465 = vsub.f32 1.0, %v4269
        %v4466 = vsub.f32 1.0, %v4270
        %v4467 = vsub.f32 1.0, %v4271
        %v4468 = vsub.f32 1.0, %v4272
        %v4469 = vsub.f32 1.0, %v4273
        %v4470 = vsub.f32 1.0, %v4274
        %v4471 = vsub.f32 1.0, %v4275
        %v4472 = vsub.f32 1.0, %v4276
        %v4473 = vsub.f32 1.0, %v4277
        %v4474 = vsub.f32 1.0, %v4278
        %v4475 = vsub.f32 1.0, %v4279
        %v4476 = vsub.f32 1.0, %v4280
        %v4477 = vsub.f32 1.0, %v4281
        %v4478 = vsub.f32 1.0, %v4282
        %v4479 = vsub.f32 1.0, %v4283
        %v4480 = vsub.f32 1.0, %v4284
        %v4481 = vsub.f32 1.0, %v4285
        %v4482 = vsub.f32 1.0, %v4286
        %v4483 = vsub.f32 1.0, %v4287
        %v4484 = vsub.f32 1.0, %v4288
        %v4485 = vsub.f32 1.0, %v4289
        %v4486 = vsub.f32 1.0, %v4290
        %v4487 = vsub.f32 1.0, %v4291
        %v4488 = vsub.f32 1.0, %v4292
        %v4489 = vsub.f32 1.0, %v4293
        %v4490 = vsub.f32 1.0, %v4294
        %v4491 = vsub.f32 1.0, %v4295
        %v4492 = vsub.f32 1.0, %v4296
        %v4493 = vsub.f32 1.0, %v4297
        %v4494 = vsub.f32 1.0, %v4298
        %v4495 = vsub.f32 1.0, %v4299
        %v4496 = vsub.f32 1.0, %v4300
        %v4497 = vsub.f32 1.0, %v4301
        %v4498 = vsub.f32 1.0, %v4302
        %v4499 = vsub.f32 1.0, %v4303
        %v4500 = vsub.f32 1.0, %v4304
        %v4501 = vsub.f32 1.0, %v4305
        %v4502 = vsub.f32 1.0, %v4306
        %v4503 = vsub.f32 1.0, %v4307
        %v4504 = vsub.f32 1.0, %v4308
        %v4505 = vsub.f32 1.0, %v4309
        %v4506 = vsub.f32 1.0, %v4310
        %v4507 = vsub.f32 1.0, %v4311
        %v4508 = vsub.f32 1.0, %v4312
        %v4509 = vsub.f32 1.0, %v4313
        %v4510 = vsub.f32 1.0, %v4314
        %v4511 = vsub.f32 1.0, %v4315
        %v4512 = vsub.f32 1.0, %v4316
        %v4513 = vsub.f32 1.0, %v4317
        %v4514 = vsub.f32 1.0, %v4318
        %v4515 = vsub.f32 1.0, %v4319
        %v4516 = vsub.f32 1.0, %v4320
        %v4517 = vsub.f32 1.0, %v4321
        %v4518 = vsub.f32 1.0, %v4322
        %v4519 = vsub.f32 1.0, %v4323
        %v4520 = vsub.f32 1.0, %v4324
        %v4521 = vsub.f32 1.0, %v4325
        %v4522 = vsub.f32 1.0, %v4326
        %v4523 = vsub.f32 1.0, %v4327
        %v4524 = vsub.f32 1.0, %v4328
        %v4525 = vsub.f32 1.0, %v4329
        %v4526 = vsub.f32 1.0, %v4330
        %v4527 = vsub.f32 1.0, %v4331
        %v4528 = vsub.f32 1.0, %v4332
        %v4529 = vsub.f32 1.0, %v4333
        %v4530 = vsub.f32 1.0, %v4334
        %v4531 = vsub.f32 1.0, %v4335
        %v4532 = vsub.f32 1.0, %v4336
        %v4533 = vsub.f32 1.0, %v4337
        %v4534 = vsub.f32 1.0, %v4338
        %v4535 = vsub.f32 1.0, %v4339
        %v4536 = vsub.f32 1.0, %v4340
        %v4537 = vsub.f32 1.0, %v4341
        %v4538 = vsub.f32 1.0, %v4342
        %v4539 = vsub.f32 1.0, %v4343
        %v4540 = vsub.f32 1.0, %v4344
        %v4541 = vsub.f32 1.0, %v4345
        %v4542 = vsub.f32 1.0, %v4346
        %v4543 = vsub.f32 1.0, %v4347
        %v4544 = vsub.f32 1.0, %v4348
        %v4545 = vsub.f32 1.0, %v4349
        %v4546 = vsub.f32 1.0, %v4350
        %v4547 = vsub.f32 1.0, %v4351
        %v4548 = vsub.f32 1.0, %v4352
        %v4549 = vsub.f32 1.0, %v4353
        %v4550 = vsub.f32 1.0, %v4354
        %v4551 = vsub.f32 1.0, %v4355
        %v4552 = vsub.f32 1.0, %v4356
        %v4553 = vsub.f32 1.0, %v4357
        %v4554 = vsub.f32 1.0, %v4358
        %v4555 = vsub.f32 1.0, %v4359
        %v4556 = vsub.f32 1.0, %v4360
        %v4557 = vsub.f32 1.0, %v4361
        %v4558 = vsub.f32 1.0, %v4362
        %v4559 = vsub.f32 1.0, %v4363
        %v4560 = vsub.f32 1.0, %v4364
        %v4561 = vsub.f32 1.0, %v4365
        %v4562 = vsub.f32 1.0, %v4366
        %v4563 = vsub.f32 1.0, %v4367
        %v4564 = vsub.f32 1.0, %v4368
        %v4565 = vsub.f32 1.0, %v4369
        %v4566 = vsub.f32 1.0, %v4370
        %v4567 = vsub.f32 1.0, %v4371
        %v4568 = vsub.f32 1.0, %v4372
        %v4569 = vsub.f32 1.0, %v4373
        %v4570 = vsub.f32 1.0, %v4374
        %v4571 = vsub.f32 1.0, %v4375
        %v4572 = vsub.f32 1.0, %v4376
        %v4573 = vsub.f32 1.0, %v4377
        %v4574 = vsub.f32 1.0, %v4378
        %v4575 = vsub.f32 1.0, %v4379
        %v4576 = vsub.f32 1.0, %v4380
        %v4577 = vsub.f32 1.0, %v4381
        %v4578 = vsub.f32 1.0, %v4382
        %v4579 = vsub.f32 1.0, %v4383
        %v4580 = vsub.f32 1.0, %v4384
        %v4581 = vsub.f32 1.0, %v4385
        %v4582 = vsub.f32 1.0, %v4386
        %v4583 = vsub.f32 1.0, %v4387
        %v4584 = vsub.f32 1.0, %v4388
        %v4585 = vsub.f32 1.0, %v4389
        %v4586 = vsub.f32 1.0, %v4390
        %v4587 = vsub.f32 1.0, %v4391
        %v4588 = vsub.f32 1.0, %v4392
        %v4589 = vsub.f32 1.0, %v4393
        %v4590 = vsub.f32 1.0, %v4394
        %v4591 = vsub.f32 1.0, %v4395
        %v4592 = vsub.f32 1.0, %v4396
        %v4593 = vsub.f32 1.0, %v4397
        %v4594 = vsub.f32 1.0, %v4398
        %v4595 = vsub.f32 1.0, %v4399
        %v4596 = vsub.f32 1.0, %v4400
        %v4597 = vsub.f32 1.0, %v4401
        %v4598 = vsub.f32 1.0, %v4402
        %v4599 = vsub.f32 1.0, %v4403
        %v4600 = vsub.f32 1.0, %v4404
        %v4601 = vsub.f32 1.0, %v4405
        %v4602 = vsub.f32 1.0, %v4406
        %v4603 = vsub.f32 1.0, %v4407
        %v4604 = vsub.f32 1.0, %v4408
        %v4605 = vsub.f32 1.0, %v4409
        %v4606 = vsub.f32 1.0, %v4410
        %v4607 = vsub.f32 1.0, %v4411
        %v4608 = vsub.f32 1.0, %v4412
        %v4609 = vsub.f32 1.0, %v4413
        %v4610 = vsub.f32 1.0, %v4414
        %v4611 = vsub.f32 1.0, %v4415
        %v4612 = vsub.f32 1.0, %v4416
        %v4613 = vsub.f32 1.0, %v4417
        %v4614 = vsub.f32 1.0, %v4418
        %v4615 = vsub.f32 1.0, %v4419
        %v4616 = vsub.f32 1.0, %v4420
        %v4617 = vsub.f32 1.0, %v4421
        %v4618 = vsub.f32 1.0, %v4422
        %v4619 = vsub.f32 1.0, %v4423
        %v4620 = vsub.f32 1.0, %v4424
        %v4621 = vsub.f32 1.0, %v4425
        %v4622 = vsub.f32 1.0, %v4426
        %v4623 = vsub.f32 1.0, %v4427
        %v4624 = vsub.f32 1.0, %v4428
        %v4625 = vsub.f32 1.0, %v4429
        %v4626 = vsub.f32 1.0, %v4430
        %v4627 = vsub.f32 1.0, %v4431
        %v4628 = vsub.f32 1.0, %v4432
        %v4629 = vsub.f32 1.0, %v4433
        %v4630 = vsub.f32 1.0, %v4434
        %v4631 = vsub.f32 1.0, %v4435
        %v4632 = vsub.f32 1.0, %v4436
        %v4633 = vsub.f32 1.0, %v4437
        %v4634 = vsub.f32 1.0, %v4438
        %v4635 = vsub.f32 1.0, %v4439
        %v4636 = vsub.f32 1.0, %v4440
        %v4637 = vsub.f32 1.0, %v4441
        %v4638 = vsub.f32 1.0, %v4442
        %v4639 = vsub.f32 1.0, %v4443
        %v4640 = vsub.f32 1.0, %v4444
        %v4641 = vsub.f32 1.0, %v4445
        %v4642 = vsub.f32 1.0, %v4446
        %v4643 = vsub.f32 1.0, %v4447
        %v4644 = vsub.f32 1.0, %v4448
        %v4645 = vsub.f32 1.0, %v4449
        %v4646 = vsel %vm4058, %v4450, %v4254
        %v4647 = vsel %vm4059, %v4451, %v4255
        %v4648 = vsel %vm4060, %v4452, %v4256
        %v4649 = vsel %vm4061, %v4453, %v4257
        %v4650 = vsel %vm4062, %v4454, %v4258
        %v4651 = vsel %vm4063, %v4455, %v4259
        %v4652 = vsel %vm4064, %v4456, %v4260
        %v4653 = vsel %vm4065, %v4457, %v4261
        %v4654 = vsel %vm4066, %v4458, %v4262
        %v4655 = vsel %vm4067, %v4459, %v4263
        %v4656 = vsel %vm4068, %v4460, %v4264
        %v4657 = vsel %vm4069, %v4461, %v4265
        %v4658 = vsel %vm4070, %v4462, %v4266
        %v4659 = vsel %vm4071, %v4463, %v4267
        %v4660 = vsel %vm4072, %v4464, %v4268
        %v4661 = vsel %vm4073, %v4465, %v4269
        %v4662 = vsel %vm4074, %v4466, %v4270
        %v4663 = vsel %vm4075, %v4467, %v4271
        %v4664 = vsel %vm4076, %v4468, %v4272
        %v4665 = vsel %vm4077, %v4469, %v4273
        %v4666 = vsel %vm4078, %v4470, %v4274
        %v4667 = vsel %vm4079, %v4471, %v4275
        %v4668 = vsel %vm4080, %v4472, %v4276
        %v4669 = vsel %vm4081, %v4473, %v4277
        %v4670 = vsel %vm4082, %v4474, %v4278
        %v4671 = vsel %vm4083, %v4475, %v4279
        %v4672 = vsel %vm4084, %v4476, %v4280
        %v4673 = vsel %vm4085, %v4477, %v4281
        %v4674 = vsel %vm4086, %v4478, %v4282
        %v4675 = vsel %vm4087, %v4479, %v4283
        %v4676 = vsel %vm4088, %v4480, %v4284
        %v4677 = vsel %vm4089, %v4481, %v4285
        %v4678 = vsel %vm4090, %v4482, %v4286
        %v4679 = vsel %vm4091, %v4483, %v4287
        %v4680 = vsel %vm4092, %v4484, %v4288
        %v4681 = vsel %vm4093, %v4485, %v4289
        %v4682 = vsel %vm4094, %v4486, %v4290
        %v4683 = vsel %vm4095, %v4487, %v4291
        %v4684 = vsel %vm4096, %v4488, %v4292
        %v4685 = vsel %vm4097, %v4489, %v4293
        %v4686 = vsel %vm4098, %v4490, %v4294
        %v4687 = vsel %vm4099, %v4491, %v4295
        %v4688 = vsel %vm4100, %v4492, %v4296
        %v4689 = vsel %vm4101, %v4493, %v4297
        %v4690 = vsel %vm4102, %v4494, %v4298
        %v4691 = vsel %vm4103, %v4495, %v4299
        %v4692 = vsel %vm4104, %v4496, %v4300
        %v4693 = vsel %vm4105, %v4497, %v4301
        %v4694 = vsel %vm4106, %v4498, %v4302
        %v4695 = vsel %vm4107, %v4499, %v4303
        %v4696 = vsel %vm4108, %v4500, %v4304
        %v4697 = vsel %vm4109, %v4501, %v4305
        %v4698 = vsel %vm4110, %v4502, %v4306
        %v4699 = vsel %vm4111, %v4503, %v4307
        %v4700 = vsel %vm4112, %v4504, %v4308
        %v4701 = vsel %vm4113, %v4505, %v4309
        %v4702 = vsel %vm4114, %v4506, %v4310
        %v4703 = vsel %vm4115, %v4507, %v4311
        %v4704 = vsel %vm4116, %v4508, %v4312
        %v4705 = vsel %vm4117, %v4509, %v4313
        %v4706 = vsel %vm4118, %v4510, %v4314
        %v4707 = vsel %vm4119, %v4511, %v4315
        %v4708 = vsel %vm4120, %v4512, %v4316
        %v4709 = vsel %vm4121, %v4513, %v4317
        %v4710 = vsel %vm4122, %v4514, %v4318
        %v4711 = vsel %vm4123, %v4515, %v4319
        %v4712 = vsel %vm4124, %v4516, %v4320
        %v4713 = vsel %vm4125, %v4517, %v4321
        %v4714 = vsel %vm4126, %v4518, %v4322
        %v4715 = vsel %vm4127, %v4519, %v4323
        %v4716 = vsel %vm4128, %v4520, %v4324
        %v4717 = vsel %vm4129, %v4521, %v4325
        %v4718 = vsel %vm4130, %v4522, %v4326
        %v4719 = vsel %vm4131, %v4523, %v4327
        %v4720 = vsel %vm4132, %v4524, %v4328
        %v4721 = vsel %vm4133, %v4525, %v4329
        %v4722 = vsel %vm4134, %v4526, %v4330
        %v4723 = vsel %vm4135, %v4527, %v4331
        %v4724 = vsel %vm4136, %v4528, %v4332
        %v4725 = vsel %vm4137, %v4529, %v4333
        %v4726 = vsel %vm4138, %v4530, %v4334
        %v4727 = vsel %vm4139, %v4531, %v4335
        %v4728 = vsel %vm4140, %v4532, %v4336
        %v4729 = vsel %vm4141, %v4533, %v4337
        %v4730 = vsel %vm4142, %v4534, %v4338
        %v4731 = vsel %vm4143, %v4535, %v4339
        %v4732 = vsel %vm4144, %v4536, %v4340
        %v4733 = vsel %vm4145, %v4537, %v4341
        %v4734 = vsel %vm4146, %v4538, %v4342
        %v4735 = vsel %vm4147, %v4539, %v4343
        %v4736 = vsel %vm4148, %v4540, %v4344
        %v4737 = vsel %vm4149, %v4541, %v4345
        %v4738 = vsel %vm4150, %v4542, %v4346
        %v4739 = vsel %vm4151, %v4543, %v4347
        %v4740 = vsel %vm4152, %v4544, %v4348
        %v4741 = vsel %vm4153, %v4545, %v4349
        %v4742 = vsel %vm4154, %v4546, %v4350
        %v4743 = vsel %vm4155, %v4547, %v4351
        %v4744 = vsel %vm4156, %v4548, %v4352
        %v4745 = vsel %vm4157, %v4549, %v4353
        %v4746 = vsel %vm4158, %v4550, %v4354
        %v4747 = vsel %vm4159, %v4551, %v4355
        %v4748 = vsel %vm4160, %v4552, %v4356
        %v4749 = vsel %vm4161, %v4553, %v4357
        %v4750 = vsel %vm4162, %v4554, %v4358
        %v4751 = vsel %vm4163, %v4555, %v4359
        %v4752 = vsel %vm4164, %v4556, %v4360
        %v4753 = vsel %vm4165, %v4557, %v4361
        %v4754 = vsel %vm4166, %v4558, %v4362
        %v4755 = vsel %vm4167, %v4559, %v4363
        %v4756 = vsel %vm4168, %v4560, %v4364
        %v4757 = vsel %vm4169, %v4561, %v4365
        %v4758 = vsel %vm4170, %v4562, %v4366
        %v4759 = vsel %vm4171, %v4563, %v4367
        %v4760 = vsel %vm4172, %v4564, %v4368
        %v4761 = vsel %vm4173, %v4565, %v4369
        %v4762 = vsel %vm4174, %v4566, %v4370
        %v4763 = vsel %vm4175, %v4567, %v4371
        %v4764 = vsel %vm4176, %v4568, %v4372
        %v4765 = vsel %vm4177, %v4569, %v4373
        %v4766 = vsel %vm4178, %v4570, %v4374
        %v4767 = vsel %vm4179, %v4571, %v4375
        %v4768 = vsel %vm4180, %v4572, %v4376
        %v4769 = vsel %vm4181, %v4573, %v4377
        %v4770 = vsel %vm4182, %v4574, %v4378
        %v4771 = vsel %vm4183, %v4575, %v4379
        %v4772 = vsel %vm4184, %v4576, %v4380
        %v4773 = vsel %vm4185, %v4577, %v4381
        %v4774 = vsel %vm4186, %v4578, %v4382
        %v4775 = vsel %vm4187, %v4579, %v4383
        %v4776 = vsel %vm4188, %v4580, %v4384
        %v4777 = vsel %vm4189, %v4581, %v4385
        %v4778 = vsel %vm4190, %v4582, %v4386
        %v4779 = vsel %vm4191, %v4583, %v4387
        %v4780 = vsel %vm4192, %v4584, %v4388
        %v4781 = vsel %vm4193, %v4585, %v4389
        %v4782 = vsel %vm4194, %v4586, %v4390
        %v4783 = vsel %vm4195, %v4587, %v4391
        %v4784 = vsel %vm4196, %v4588, %v4392
        %v4785 = vsel %vm4197, %v4589, %v4393
        %v4786 = vsel %vm4198, %v4590, %v4394
        %v4787 = vsel %vm4199, %v4591, %v4395
        %v4788 = vsel %vm4200, %v4592, %v4396
        %v4789 = vsel %vm4201, %v4593, %v4397
        %v4790 = vsel %vm4202, %v4594, %v4398
        %v4791 = vsel %vm4203, %v4595, %v4399
        %v4792 = vsel %vm4204, %v4596, %v4400
        %v4793 = vsel %vm4205, %v4597, %v4401
        %v4794 = vsel %vm4206, %v4598, %v4402
        %v4795 = vsel %vm4207, %v4599, %v4403
        %v4796 = vsel %vm4208, %v4600, %v4404
        %v4797 = vsel %vm4209, %v4601, %v4405
        %v4798 = vsel %vm4210, %v4602, %v4406
        %v4799 = vsel %vm4211, %v4603, %v4407
        %v4800 = vsel %vm4212, %v4604, %v4408
        %v4801 = vsel %vm4213, %v4605, %v4409
        %v4802 = vsel %vm4214, %v4606, %v4410
        %v4803 = vsel %vm4215, %v4607, %v4411
        %v4804 = vsel %vm4216, %v4608, %v4412
        %v4805 = vsel %vm4217, %v4609, %v4413
        %v4806 = vsel %vm4218, %v4610, %v4414
        %v4807 = vsel %vm4219, %v4611, %v4415
        %v4808 = vsel %vm4220, %v4612, %v4416
        %v4809 = vsel %vm4221, %v4613, %v4417
        %v4810 = vsel %vm4222, %v4614, %v4418
        %v4811 = vsel %vm4223, %v4615, %v4419
        %v4812 = vsel %vm4224, %v4616, %v4420
        %v4813 = vsel %vm4225, %v4617, %v4421
        %v4814 = vsel %vm4226, %v4618, %v4422
        %v4815 = vsel %vm4227, %v4619, %v4423
        %v4816 = vsel %vm4228, %v4620, %v4424
        %v4817 = vsel %vm4229, %v4621, %v4425
        %v4818 = vsel %vm4230, %v4622, %v4426
        %v4819 = vsel %vm4231, %v4623, %v4427
        %v4820 = vsel %vm4232, %v4624, %v4428
        %v4821 = vsel %vm4233, %v4625, %v4429
        %v4822 = vsel %vm4234, %v4626, %v4430
        %v4823 = vsel %vm4235, %v4627, %v4431
        %v4824 = vsel %vm4236, %v4628, %v4432
        %v4825 = vsel %vm4237, %v4629, %v4433
        %v4826 = vsel %vm4238, %v4630, %v4434
        %v4827 = vsel %vm4239, %v4631, %v4435
        %v4828 = vsel %vm4240, %v4632, %v4436
        %v4829 = vsel %vm4241, %v4633, %v4437
        %v4830 = vsel %vm4242, %v4634, %v4438
        %v4831 = vsel %vm4243, %v4635, %v4439
        %v4832 = vsel %vm4244, %v4636, %v4440
        %v4833 = vsel %vm4245, %v4637, %v4441
        %v4834 = vsel %vm4246, %v4638, %v4442
        %v4835 = vsel %vm4247, %v4639, %v4443
        %v4836 = vsel %vm4248, %v4640, %v4444
        %v4837 = vsel %vm4249, %v4641, %v4445
        %v4838 = vsel %vm4250, %v4642, %v4446
        %v4839 = vsel %vm4251, %v4643, %v4447
        %v4840 = vsel %vm4252, %v4644, %v4448
        %v4841 = vsel %vm4253, %v4645, %v4449
        %v4842 = vmul.f32 %v138, %v4646
        %v4843 = vmul.f32 %v139, %v4647
        %v4844 = vmul.f32 %v140, %v4648
        %v4845 = vmul.f32 %v141, %v4649
        %v4846 = vmul.f32 %v142, %v4650
        %v4847 = vmul.f32 %v143, %v4651
        %v4848 = vmul.f32 %v144, %v4652
        %v4849 = vmul.f32 %v145, %v4653
        %v4850 = vmul.f32 %v146, %v4654
        %v4851 = vmul.f32 %v147, %v4655
        %v4852 = vmul.f32 %v148, %v4656
        %v4853 = vmul.f32 %v149, %v4657
        %v4854 = vmul.f32 %v150, %v4658
        %v4855 = vmul.f32 %v151, %v4659
        %v4856 = vmul.f32 %v152, %v4660
        %v4857 = vmul.f32 %v153, %v4661
        %v4858 = vmul.f32 %v154, %v4662
        %v4859 = vmul.f32 %v155, %v4663
        %v4860 = vmul.f32 %v156, %v4664
        %v4861 = vmul.f32 %v157, %v4665
        %v4862 = vmul.f32 %v158, %v4666
        %v4863 = vmul.f32 %v159, %v4667
        %v4864 = vmul.f32 %v160, %v4668
        %v4865 = vmul.f32 %v161, %v4669
        %v4866 = vmul.f32 %v162, %v4670
        %v4867 = vmul.f32 %v163, %v4671
        %v4868 = vmul.f32 %v164, %v4672
        %v4869 = vmul.f32 %v165, %v4673
        %v4870 = vmul.f32 %v166, %v4674
        %v4871 = vmul.f32 %v167, %v4675
        %v4872 = vmul.f32 %v168, %v4676
        %v4873 = vmul.f32 %v169, %v4677
        %v4874 = vmul.f32 %v170, %v4678
        %v4875 = vmul.f32 %v171, %v4679
        %v4876 = vmul.f32 %v172, %v4680
        %v4877 = vmul.f32 %v173, %v4681
        %v4878 = vmul.f32 %v174, %v4682
        %v4879 = vmul.f32 %v175, %v4683
        %v4880 = vmul.f32 %v176, %v4684
        %v4881 = vmul.f32 %v177, %v4685
        %v4882 = vmul.f32 %v178, %v4686
        %v4883 = vmul.f32 %v179, %v4687
        %v4884 = vmul.f32 %v180, %v4688
        %v4885 = vmul.f32 %v181, %v4689
        %v4886 = vmul.f32 %v182, %v4690
        %v4887 = vmul.f32 %v183, %v4691
        %v4888 = vmul.f32 %v184, %v4692
        %v4889 = vmul.f32 %v185, %v4693
        %v4890 = vmul.f32 %v186, %v4694
        %v4891 = vmul.f32 %v187, %v4695
        %v4892 = vmul.f32 %v188, %v4696
        %v4893 = vmul.f32 %v189, %v4697
        %v4894 = vmul.f32 %v190, %v4698
        %v4895 = vmul.f32 %v191, %v4699
        %v4896 = vmul.f32 %v192, %v4700
        %v4897 = vmul.f32 %v193, %v4701
        %v4898 = vmul.f32 %v194, %v4702
        %v4899 = vmul.f32 %v195, %v4703
        %v4900 = vmul.f32 %v196, %v4704
        %v4901 = vmul.f32 %v197, %v4705
        %v4902 = vmul.f32 %v198, %v4706
        %v4903 = vmul.f32 %v199, %v4707
        %v4904 = vmul.f32 %v200, %v4708
        %v4905 = vmul.f32 %v201, %v4709
        %v4906 = vmul.f32 %v202, %v4710
        %v4907 = vmul.f32 %v203, %v4711
        %v4908 = vmul.f32 %v204, %v4712
        %v4909 = vmul.f32 %v205, %v4713
        %v4910 = vmul.f32 %v206, %v4714
        %v4911 = vmul.f32 %v207, %v4715
        %v4912 = vmul.f32 %v208, %v4716
        %v4913 = vmul.f32 %v209, %v4717
        %v4914 = vmul.f32 %v210, %v4718
        %v4915 = vmul.f32 %v211, %v4719
        %v4916 = vmul.f32 %v212, %v4720
        %v4917 = vmul.f32 %v213, %v4721
        %v4918 = vmul.f32 %v214, %v4722
        %v4919 = vmul.f32 %v215, %v4723
        %v4920 = vmul.f32 %v216, %v4724
        %v4921 = vmul.f32 %v217, %v4725
        %v4922 = vmul.f32 %v218, %v4726
        %v4923 = vmul.f32 %v219, %v4727
        %v4924 = vmul.f32 %v220, %v4728
        %v4925 = vmul.f32 %v221, %v4729
        %v4926 = vmul.f32 %v222, %v4730
        %v4927 = vmul.f32 %v223, %v4731
        %v4928 = vmul.f32 %v224, %v4732
        %v4929 = vmul.f32 %v225, %v4733
        %v4930 = vmul.f32 %v226, %v4734
        %v4931 = vmul.f32 %v227, %v4735
        %v4932 = vmul.f32 %v228, %v4736
        %v4933 = vmul.f32 %v229, %v4737
        %v4934 = vmul.f32 %v230, %v4738
        %v4935 = vmul.f32 %v231, %v4739
        %v4936 = vmul.f32 %v232, %v4740
        %v4937 = vmul.f32 %v233, %v4741
        %v4938 = vmul.f32 %v234, %v4742
        %v4939 = vmul.f32 %v235, %v4743
        %v4940 = vmul.f32 %v236, %v4744
        %v4941 = vmul.f32 %v237, %v4745
        %v4942 = vmul.f32 %v238, %v4746
        %v4943 = vmul.f32 %v239, %v4747
        %v4944 = vmul.f32 %v240, %v4748
        %v4945 = vmul.f32 %v241, %v4749
        %v4946 = vmul.f32 %v242, %v4750
        %v4947 = vmul.f32 %v243, %v4751
        %v4948 = vmul.f32 %v244, %v4752
        %v4949 = vmul.f32 %v245, %v4753
        %v4950 = vmul.f32 %v246, %v4754
        %v4951 = vmul.f32 %v247, %v4755
        %v4952 = vmul.f32 %v248, %v4756
        %v4953 = vmul.f32 %v249, %v4757
        %v4954 = vmul.f32 %v250, %v4758
        %v4955 = vmul.f32 %v251, %v4759
        %v4956 = vmul.f32 %v252, %v4760
        %v4957 = vmul.f32 %v253, %v4761
        %v4958 = vmul.f32 %v254, %v4762
        %v4959 = vmul.f32 %v255, %v4763
        %v4960 = vmul.f32 %v256, %v4764
        %v4961 = vmul.f32 %v257, %v4765
        %v4962 = vmul.f32 %v258, %v4766
        %v4963 = vmul.f32 %v259, %v4767
        %v4964 = vmul.f32 %v260, %v4768
        %v4965 = vmul.f32 %v261, %v4769
        %v4966 = vmul.f32 %v262, %v4770
        %v4967 = vmul.f32 %v263, %v4771
        %v4968 = vmul.f32 %v264, %v4772
        %v4969 = vmul.f32 %v265, %v4773
        %v4970 = vmul.f32 %v266, %v4774
        %v4971 = vmul.f32 %v267, %v4775
        %v4972 = vmul.f32 %v268, %v4776
        %v4973 = vmul.f32 %v269, %v4777
        %v4974 = vmul.f32 %v270, %v4778
        %v4975 = vmul.f32 %v271, %v4779
        %v4976 = vmul.f32 %v272, %v4780
        %v4977 = vmul.f32 %v273, %v4781
        %v4978 = vmul.f32 %v274, %v4782
        %v4979 = vmul.f32 %v275, %v4783
        %v4980 = vmul.f32 %v276, %v4784
        %v4981 = vmul.f32 %v277, %v4785
        %v4982 = vmul.f32 %v278, %v4786
        %v4983 = vmul.f32 %v279, %v4787
        %v4984 = vmul.f32 %v280, %v4788
        %v4985 = vmul.f32 %v281, %v4789
        %v4986 = vmul.f32 %v282, %v4790
        %v4987 = vmul.f32 %v283, %v4791
        %v4988 = vmul.f32 %v284, %v4792
        %v4989 = vmul.f32 %v285, %v4793
        %v4990 = vmul.f32 %v286, %v4794
        %v4991 = vmul.f32 %v287, %v4795
        %v4992 = vmul.f32 %v288, %v4796
        %v4993 = vmul.f32 %v289, %v4797
        %v4994 = vmul.f32 %v290, %v4798
        %v4995 = vmul.f32 %v291, %v4799
        %v4996 = vmul.f32 %v292, %v4800
        %v4997 = vmul.f32 %v293, %v4801
        %v4998 = vmul.f32 %v294, %v4802
        %v4999 = vmul.f32 %v295, %v4803
        %v5000 = vmul.f32 %v296, %v4804
        %v5001 = vmul.f32 %v297, %v4805
        %v5002 = vmul.f32 %v298, %v4806
        %v5003 = vmul.f32 %v299, %v4807
        %v5004 = vmul.f32 %v300, %v4808
        %v5005 = vmul.f32 %v301, %v4809
        %v5006 = vmul.f32 %v302, %v4810
        %v5007 = vmul.f32 %v303, %v4811
        %v5008 = vmul.f32 %v304, %v4812
        %v5009 = vmul.f32 %v305, %v4813
        %v5010 = vmul.f32 %v306, %v4814
        %v5011 = vmul.f32 %v307, %v4815
        %v5012 = vmul.f32 %v308, %v4816
        %v5013 = vmul.f32 %v309, %v4817
        %v5014 = vmul.f32 %v310, %v4818
        %v5015 = vmul.f32 %v311, %v4819
        %v5016 = vmul.f32 %v312, %v4820
        %v5017 = vmul.f32 %v313, %v4821
        %v5018 = vmul.f32 %v314, %v4822
        %v5019 = vmul.f32 %v315, %v4823
        %v5020 = vmul.f32 %v316, %v4824
        %v5021 = vmul.f32 %v317, %v4825
        %v5022 = vmul.f32 %v318, %v4826
        %v5023 = vmul.f32 %v319, %v4827
        %v5024 = vmul.f32 %v320, %v4828
        %v5025 = vmul.f32 %v321, %v4829
        %v5026 = vmul.f32 %v322, %v4830
        %v5027 = vmul.f32 %v323, %v4831
        %v5028 = vmul.f32 %v324, %v4832
        %v5029 = vmul.f32 %v325, %v4833
        %v5030 = vmul.f32 %v326, %v4834
        %v5031 = vmul.f32 %v327, %v4835
        %v5032 = vmul.f32 %v328, %v4836
        %v5033 = vmul.f32 %v329, %v4837
        %v5034 = vmul.f32 %v330, %v4838
        %v5035 = vmul.f32 %v331, %v4839
        %v5036 = vmul.f32 %v332, %v4840
        %v5037 = vmul.f32 %v333, %v4841
        %5038 = vst [vmem:[%s135] sm:$0xff] %v4842
        %5039 = vst [vmem:[%s135 + $0x8] sm:$0xff] %v4843
        %5040 = vst [vmem:[%s135 + $0x10] sm:$0xff] %v4844
        %5041 = vst [vmem:[%s135 + $0x18] sm:$0xff] %v4845
        %5042 = vst [vmem:[%s135 + $0x20] sm:$0xff] %v4846
        %5043 = vst [vmem:[%s135 + $0x28] sm:$0xff] %v4847
        %5044 = vst [vmem:[%s135 + $0x30] sm:$0xff] %v4848
        %5045 = vst [vmem:[%s135 + $0x38] sm:$0xff] %v4849
        %5046 = vst [vmem:[%s135 + $0x40] sm:$0xff] %v4850
        %5047 = vst [vmem:[%s135 + $0x48] sm:$0xff] %v4851
        %5048 = vst [vmem:[%s135 + $0x50] sm:$0xff] %v4852
        %5049 = vst [vmem:[%s135 + $0x58] sm:$0xff] %v4853
        %5050 = vst [vmem:[%s135 + $0x60] sm:$0xff] %v4854
        %5051 = vst [vmem:[%s135 + $0x68] sm:$0xff] %v4855
        %5052 = vst [vmem:[%s135 + $0x70] sm:$0xff] %v4856
        %5053 = vst [vmem:[%s135 + $0x78] sm:$0xff] %v4857
        %5054 = vst [vmem:[%s135 + $0x80] sm:$0xff] %v4858
        %5055 = vst [vmem:[%s135 + $0x88] sm:$0xff] %v4859
        %5056 = vst [vmem:[%s135 + $0x90] sm:$0xff] %v4860
        %5057 = vst [vmem:[%s135 + $0x98] sm:$0xff] %v4861
        %5058 = vst [vmem:[%s135 + $0xa0] sm:$0xff] %v4862
        %5059 = vst [vmem:[%s135 + $0xa8] sm:$0xff] %v4863
        %5060 = vst [vmem:[%s135 + $0xb0] sm:$0xff] %v4864
        %5061 = vst [vmem:[%s135 + $0xb8] sm:$0xff] %v4865
        %5062 = vst [vmem:[%s135 + $0xc0] sm:$0xff] %v4866
        %5063 = vst [vmem:[%s135 + $0xc8] sm:$0xff] %v4867
        %5064 = vst [vmem:[%s135 + $0xd0] sm:$0xff] %v4868
        %5065 = vst [vmem:[%s135 + $0xd8] sm:$0xff] %v4869
        %5066 = vst [vmem:[%s135 + $0xe0] sm:$0xff] %v4870
        %5067 = vst [vmem:[%s135 + $0xe8] sm:$0xff] %v4871
        %5068 = vst [vmem:[%s135 + $0xf0] sm:$0xff] %v4872
        %5069 = vst [vmem:[%s135 + $0xf8] sm:$0xff] %v4873
        %5070 = vst [vmem:[%s135 + $0x100] sm:$0xff] %v4874
        %5071 = vst [vmem:[%s135 + $0x108] sm:$0xff] %v4875
        %5072 = vst [vmem:[%s135 + $0x110] sm:$0xff] %v4876
        %5073 = vst [vmem:[%s135 + $0x118] sm:$0xff] %v4877
        %5074 = vst [vmem:[%s135 + $0x120] sm:$0xff] %v4878
        %5075 = vst [vmem:[%s135 + $0x128] sm:$0xff] %v4879
        %5076 = vst [vmem:[%s135 + $0x130] sm:$0xff] %v4880
        %5077 = vst [vmem:[%s135 + $0x138] sm:$0xff] %v4881
        %5078 = vst [vmem:[%s135 + $0x140] sm:$0xff] %v4882
        %5079 = vst [vmem:[%s135 + $0x148] sm:$0xff] %v4883
        %5080 = vst [vmem:[%s135 + $0x150] sm:$0xff] %v4884
        %5081 = vst [vmem:[%s135 + $0x158] sm:$0xff] %v4885
        %5082 = vst [vmem:[%s135 + $0x160] sm:$0xff] %v4886
        %5083 = vst [vmem:[%s135 + $0x168] sm:$0xff] %v4887
        %5084 = vst [vmem:[%s135 + $0x170] sm:$0xff] %v4888
        %5085 = vst [vmem:[%s135 + $0x178] sm:$0xff] %v4889
        %5086 = vst [vmem:[%s135 + $0x180] sm:$0xff] %v4890
        %5087 = vst [vmem:[%s135 + $0x188] sm:$0xff] %v4891
        %5088 = vst [vmem:[%s135 + $0x190] sm:$0xff] %v4892
        %5089 = vst [vmem:[%s135 + $0x198] sm:$0xff] %v4893
        %5090 = vst [vmem:[%s135 + $0x1a0] sm:$0xff] %v4894
        %5091 = vst [vmem:[%s135 + $0x1a8] sm:$0xff] %v4895
        %5092 = vst [vmem:[%s135 + $0x1b0] sm:$0xff] %v4896
        %5093 = vst [vmem:[%s135 + $0x1b8] sm:$0xff] %v4897
        %5094 = vst [vmem:[%s135 + $0x1c0] sm:$0xff] %v4898
        %5095 = vst [vmem:[%s135 + $0x1c8] sm:$0xff] %v4899
        %5096 = vst [vmem:[%s135 + $0x1d0] sm:$0xff] %v4900
        %5097 = vst [vmem:[%s135 + $0x1d8] sm:$0xff] %v4901
        %5098 = vst [vmem:[%s135 + $0x1e0] sm:$0xff] %v4902
        %5099 = vst [vmem:[%s135 + $0x1e8] sm:$0xff] %v4903
        %5100 = vst [vmem:[%s135 + $0x1f0] sm:$0xff] %v4904
        %5101 = vst [vmem:[%s135 + $0x1f8] sm:$0xff] %v4905
        %5102 = vst [vmem:[%s135 + $0x200] sm:$0xff] %v4906
        %5103 = vst [vmem:[%s135 + $0x208] sm:$0xff] %v4907
        %5104 = vst [vmem:[%s135 + $0x210] sm:$0xff] %v4908
        %5105 = vst [vmem:[%s135 + $0x218] sm:$0xff] %v4909
        %5106 = vst [vmem:[%s135 + $0x220] sm:$0xff] %v4910
        %5107 = vst [vmem:[%s135 + $0x228] sm:$0xff] %v4911
        %5108 = vst [vmem:[%s135 + $0x230] sm:$0xff] %v4912
        %5109 = vst [vmem:[%s135 + $0x238] sm:$0xff] %v4913
        %5110 = vst [vmem:[%s135 + $0x240] sm:$0xff] %v4914
        %5111 = vst [vmem:[%s135 + $0x248] sm:$0xff] %v4915
        %5112 = vst [vmem:[%s135 + $0x250] sm:$0xff] %v4916
        %5113 = vst [vmem:[%s135 + $0x258] sm:$0xff] %v4917
        %5114 = vst [vmem:[%s135 + $0x260] sm:$0xff] %v4918
        %5115 = vst [vmem:[%s135 + $0x268] sm:$0xff] %v4919
        %5116 = vst [vmem:[%s135 + $0x270] sm:$0xff] %v4920
        %5117 = vst [vmem:[%s135 + $0x278] sm:$0xff] %v4921
        %5118 = vst [vmem:[%s135 + $0x280] sm:$0xff] %v4922
        %5119 = vst [vmem:[%s135 + $0x288] sm:$0xff] %v4923
        %5120 = vst [vmem:[%s135 + $0x290] sm:$0xff] %v4924
        %5121 = vst [vmem:[%s135 + $0x298] sm:$0xff] %v4925
        %5122 = vst [vmem:[%s135 + $0x2a0] sm:$0xff] %v4926
        %5123 = vst [vmem:[%s135 + $0x2a8] sm:$0xff] %v4927
        %5124 = vst [vmem:[%s135 + $0x2b0] sm:$0xff] %v4928
        %5125 = vst [vmem:[%s135 + $0x2b8] sm:$0xff] %v4929
        %5126 = vst [vmem:[%s135 + $0x2c0] sm:$0xff] %v4930
        %5127 = vst [vmem:[%s135 + $0x2c8] sm:$0xff] %v4931
        %5128 = vst [vmem:[%s135 + $0x2d0] sm:$0xff] %v4932
        %5129 = vst [vmem:[%s135 + $0x2d8] sm:$0xff] %v4933
        %5130 = vst [vmem:[%s135 + $0x2e0] sm:$0xff] %v4934
        %5131 = vst [vmem:[%s135 + $0x2e8] sm:$0xff] %v4935
        %5132 = vst [vmem:[%s135 + $0x2f0] sm:$0xff] %v4936
        %5133 = vst [vmem:[%s135 + $0x2f8] sm:$0xff] %v4937
        %5134 = vst [vmem:[%s135 + $0x300] sm:$0xff] %v4938
        %5135 = vst [vmem:[%s135 + $0x308] sm:$0xff] %v4939
        %5136 = vst [vmem:[%s135 + $0x310] sm:$0xff] %v4940
        %5137 = vst [vmem:[%s135 + $0x318] sm:$0xff] %v4941
        %5138 = vst [vmem:[%s135 + $0x320] sm:$0xff] %v4942
        %5139 = vst [vmem:[%s135 + $0x328] sm:$0xff] %v4943
        %5140 = vst [vmem:[%s135 + $0x330] sm:$0xff] %v4944
        %5141 = vst [vmem:[%s135 + $0x338] sm:$0xff] %v4945
        %5142 = vst [vmem:[%s135 + $0x340] sm:$0xff] %v4946
        %5143 = vst [vmem:[%s135 + $0x348] sm:$0xff] %v4947
        %5144 = vst [vmem:[%s135 + $0x350] sm:$0xff] %v4948
        %5145 = vst [vmem:[%s135 + $0x358] sm:$0xff] %v4949
        %5146 = vst [vmem:[%s135 + $0x360] sm:$0xff] %v4950
        %5147 = vst [vmem:[%s135 + $0x368] sm:$0xff] %v4951
        %5148 = vst [vmem:[%s135 + $0x370] sm:$0xff] %v4952
        %5149 = vst [vmem:[%s135 + $0x378] sm:$0xff] %v4953
        %5150 = vst [vmem:[%s135 + $0x380] sm:$0xff] %v4954
        %5151 = vst [vmem:[%s135 + $0x388] sm:$0xff] %v4955
        %5152 = vst [vmem:[%s135 + $0x390] sm:$0xff] %v4956
        %5153 = vst [vmem:[%s135 + $0x398] sm:$0xff] %v4957
        %5154 = vst [vmem:[%s135 + $0x3a0] sm:$0xff] %v4958
        %5155 = vst [vmem:[%s135 + $0x3a8] sm:$0xff] %v4959
        %5156 = vst [vmem:[%s135 + $0x3b0] sm:$0xff] %v4960
        %5157 = vst [vmem:[%s135 + $0x3b8] sm:$0xff] %v4961
        %5158 = vst [vmem:[%s135 + $0x3c0] sm:$0xff] %v4962
        %5159 = vst [vmem:[%s135 + $0x3c8] sm:$0xff] %v4963
        %5160 = vst [vmem:[%s135 + $0x3d0] sm:$0xff] %v4964
        %5161 = vst [vmem:[%s135 + $0x3d8] sm:$0xff] %v4965
        %5162 = vst [vmem:[%s135 + $0x3e0] sm:$0xff] %v4966
        %5163 = vst [vmem:[%s135 + $0x3e8] sm:$0xff] %v4967
        %5164 = vst [vmem:[%s135 + $0x3f0] sm:$0xff] %v4968
        %5165 = vst [vmem:[%s135 + $0x3f8] sm:$0xff] %v4969
        %5166 = vst [vmem:[%s135 + $0x400] sm:$0xff] %v4970
        %5167 = vst [vmem:[%s135 + $0x408] sm:$0xff] %v4971
        %5168 = vst [vmem:[%s135 + $0x410] sm:$0xff] %v4972
        %5169 = vst [vmem:[%s135 + $0x418] sm:$0xff] %v4973
        %5170 = vst [vmem:[%s135 + $0x420] sm:$0xff] %v4974
        %5171 = vst [vmem:[%s135 + $0x428] sm:$0xff] %v4975
        %5172 = vst [vmem:[%s135 + $0x430] sm:$0xff] %v4976
        %5173 = vst [vmem:[%s135 + $0x438] sm:$0xff] %v4977
        %5174 = vst [vmem:[%s135 + $0x440] sm:$0xff] %v4978
        %5175 = vst [vmem:[%s135 + $0x448] sm:$0xff] %v4979
        %5176 = vst [vmem:[%s135 + $0x450] sm:$0xff] %v4980
        %5177 = vst [vmem:[%s135 + $0x458] sm:$0xff] %v4981
        %5178 = vst [vmem:[%s135 + $0x460] sm:$0xff] %v4982
        %5179 = vst [vmem:[%s135 + $0x468] sm:$0xff] %v4983
        %5180 = vst [vmem:[%s135 + $0x470] sm:$0xff] %v4984
        %5181 = vst [vmem:[%s135 + $0x478] sm:$0xff] %v4985
        %5182 = vst [vmem:[%s135 + $0x480] sm:$0xff] %v4986
        %5183 = vst [vmem:[%s135 + $0x488] sm:$0xff] %v4987
        %5184 = vst [vmem:[%s135 + $0x490] sm:$0xff] %v4988
        %5185 = vst [vmem:[%s135 + $0x498] sm:$0xff] %v4989
        %5186 = vst [vmem:[%s135 + $0x4a0] sm:$0xff] %v4990
        %5187 = vst [vmem:[%s135 + $0x4a8] sm:$0xff] %v4991
        %5188 = vst [vmem:[%s135 + $0x4b0] sm:$0xff] %v4992
        %5189 = vst [vmem:[%s135 + $0x4b8] sm:$0xff] %v4993
        %5190 = vst [vmem:[%s135 + $0x4c0] sm:$0xff] %v4994
        %5191 = vst [vmem:[%s135 + $0x4c8] sm:$0xff] %v4995
        %5192 = vst [vmem:[%s135 + $0x4d0] sm:$0xff] %v4996
        %5193 = vst [vmem:[%s135 + $0x4d8] sm:$0xff] %v4997
        %5194 = vst [vmem:[%s135 + $0x4e0] sm:$0xff] %v4998
        %5195 = vst [vmem:[%s135 + $0x4e8] sm:$0xff] %v4999
        %5196 = vst [vmem:[%s135 + $0x4f0] sm:$0xff] %v5000
        %5197 = vst [vmem:[%s135 + $0x4f8] sm:$0xff] %v5001
        %5198 = vst [vmem:[%s135 + $0x500] sm:$0xff] %v5002
        %5199 = vst [vmem:[%s135 + $0x508] sm:$0xff] %v5003
        %5200 = vst [vmem:[%s135 + $0x510] sm:$0xff] %v5004
        %5201 = vst [vmem:[%s135 + $0x518] sm:$0xff] %v5005
        %5202 = vst [vmem:[%s135 + $0x520] sm:$0xff] %v5006
        %5203 = vst [vmem:[%s135 + $0x528] sm:$0xff] %v5007
        %5204 = vst [vmem:[%s135 + $0x530] sm:$0xff] %v5008
        %5205 = vst [vmem:[%s135 + $0x538] sm:$0xff] %v5009
        %5206 = vst [vmem:[%s135 + $0x540] sm:$0xff] %v5010
        %5207 = vst [vmem:[%s135 + $0x548] sm:$0xff] %v5011
        %5208 = vst [vmem:[%s135 + $0x550] sm:$0xff] %v5012
        %5209 = vst [vmem:[%s135 + $0x558] sm:$0xff] %v5013
        %5210 = vst [vmem:[%s135 + $0x560] sm:$0xff] %v5014
        %5211 = vst [vmem:[%s135 + $0x568] sm:$0xff] %v5015
        %5212 = vst [vmem:[%s135 + $0x570] sm:$0xff] %v5016
        %5213 = vst [vmem:[%s135 + $0x578] sm:$0xff] %v5017
        %5214 = vst [vmem:[%s135 + $0x580] sm:$0xff] %v5018
        %5215 = vst [vmem:[%s135 + $0x588] sm:$0xff] %v5019
        %5216 = vst [vmem:[%s135 + $0x590] sm:$0xff] %v5020
        %5217 = vst [vmem:[%s135 + $0x598] sm:$0xff] %v5021
        %5218 = vst [vmem:[%s135 + $0x5a0] sm:$0xff] %v5022
        %5219 = vst [vmem:[%s135 + $0x5a8] sm:$0xff] %v5023
        %5220 = vst [vmem:[%s135 + $0x5b0] sm:$0xff] %v5024
        %5221 = vst [vmem:[%s135 + $0x5b8] sm:$0xff] %v5025
        %5222 = vst [vmem:[%s135 + $0x5c0] sm:$0xff] %v5026
        %5223 = vst [vmem:[%s135 + $0x5c8] sm:$0xff] %v5027
        %5224 = vst [vmem:[%s135 + $0x5d0] sm:$0xff] %v5028
        %5225 = vst [vmem:[%s135 + $0x5d8] sm:$0xff] %v5029
        %5226 = vst [vmem:[%s135 + $0x5e0] sm:$0xff] %v5030
        %5227 = vst [vmem:[%s135 + $0x5e8] sm:$0xff] %v5031
        %5228 = vst [vmem:[%s135 + $0x5f0] sm:$0xff] %v5032
        %5229 = vst [vmem:[%s135 + $0x5f8] sm:$0xff] %v5033
        %5230 = vst [vmem:[%s135 + $0x600] sm:$0xff] %v5034
        %5231 = vst [vmem:[%s135 + $0x608] sm:$0xff] %v5035
        %5232 = vst [vmem:[%s135 + $0x610] sm:$0xff] %v5036
        %5233 = vst [vmem:[%s135 + $0x618] sm:$0xff] %v5037
        %s5234 = sand.u32 %s52, 1
        %s5235 = scalar_lea.sflag [#allocation4], %s5234
        %s5236 = sand.u32 %s52, 1
        %s5237 = smul.addr %s5236, 1568
        %s5238 = scalar_lea.vmem [#allocation5], %s5237
        // Predicated region
        $region29: #{tpu_custom_call.1} parent=23 // pred_check
          %p5239 = pneg %p62
        $region30: #{tpu_custom_call.1} parent=23 // pred_check_branch
          %5241 = sbr.rel (%p5239) target = $region32
        $region31: #{tpu_custom_call.1} parent=23 // pred_region
          %s5242 = smul.u32 49, %s18
          %s5244 = ssub.s32 25088, 25088
          %5245 = vsyncadd %s5235, %s5244
          %s5246 = smul.addr %s5242, 4
          %s5247 = smul.addr %s5246, 128
          %s5248 = scalar_lea.hbm %s1, %s5247
          %s5249 = sshll.u32 %s5238, 4
          %s5250 = int_to_ptr.vmem [resolvable:$true] %s5249
          %5255 = dma.vmem_to_hbm [thread:$0]  %s5250, 25088, %s5248, %s5235, 512, 512, 32
        $region32: #{tpu_custom_call.1} parent=23 // pred_fallthru
          _
      $region24: #{tpu_custom_call.1} parent=5 // pred_fallthru
        _
      %p5256 = scmp.le.s32.totalorder 2, %s13
      // Predicated region
      $region33: #{tpu_custom_call.1} parent=5 // pred_check
        %p5257 = pneg %p5256
      $region34: #{tpu_custom_call.1} parent=5 // pred_check_branch
        %5259 = sbr.rel (%p5257) target = $region36
      $region35: #{tpu_custom_call.1} parent=5 // pred_region
        %s5260 = ssub.s32 %s13, 2
        // Predicated region
        $region37: #{tpu_custom_call.1} parent=35 // pred_check
          %p5261 = pneg %p68
        $region38: #{tpu_custom_call.1} parent=35 // pred_check_branch
          %5263 = sbr.rel (%p5261) target = $region40
        $region39: #{tpu_custom_call.1} parent=35 // pred_region
          %s5264 = sand.u32 %s53, 1
          %s5265 = scalar_lea.sflag [#allocation4], %s5264
          %s5266 = sand.u32 %s53, 1
          %s5267 = smul.addr %s5266, 1568
          %s5268 = scalar_lea.vmem [#allocation5], %s5267
          %5269 = dma.done %s5265, 25088
        $region40: #{tpu_custom_call.1} parent=35 // pred_fallthru
          _
      $region36: #{tpu_custom_call.1} parent=5 // pred_fallthru
        _
    $region6: #{tpu_custom_call.1} parent=1 // loop_footer
      %s17 = sadd.s32 1, %s13
    $region7: #{tpu_custom_call.1} parent=1 // loop_footer_branch
      %12 = sbr.rel target = $region3
    $region8: #{tpu_custom_call.1} parent=1 // loop_exit
      _
    %5270 = vsyncpa [#allocation3], 1
    %s5271 = scalar_lea.sflag [#allocation3], 1
    %5272 = vsyncpa %s5271, 1
    %5273 = vsyncpa [#allocation4], 1
    %s5274 = scalar_lea.sflag [#allocation4], 1
    %5275 = vsyncpa %s5274, 1

</llo_original>
